<compile_context>
chip_gen: v6e
topology: v6e:2x2x1
jax: 0.10.0
libtpu: 0.0.40
codegen_flags: <defaults>
</compile_context>

<pallas_src>
import math

import jax
import jax.numpy as jnp
from jax import lax
from jax.experimental import pallas as pl
from jax.experimental.pallas import tpu as pltpu


LAYER_NORM_EPS_DEFAULT = 1e-12  # BERT-style config.layer_norm_eps (verify against real config)


def _layer_norm(v, gamma, beta, eps):
    # PyTorch LayerNorm: biased variance, eps inside sqrt. All in f32.
    mu = jnp.mean(v, axis=-1, keepdims=True)
    var = jnp.mean((v - mu) ** 2, axis=-1, keepdims=True)
    return (v - mu) * lax.rsqrt(var + eps) * gamma + beta


def _gelu_exact(v):
    # nn.GELU() default == exact erf formulation.
    return 0.5 * v * (1.0 + lax.erf(v * 0.7071067811865476))


def _make_kernel(eps):
    def kernel(x_ref, wpc_ref, bp_ref, g1_ref, be1_ref,
               w1_ref, b1_ref, w2_ref, b2_ref, g2_ref, be2_ref, o_ref):
        BB, T, H = x_ref.shape
        cdt = w1_ref.dtype                      # matmul compute dtype (bf16 in the demo)
        f32 = jnp.float32

        x = x_ref[...].astype(f32)              # (BB, T, H)

        # --- token mixing on the VPU (full f32): y = x + bp + sum_k Wp[:, k] * x[:, k, :] ---
        # wpc[k, t, 0] = Wp[t, k] so wpc_ref[k] is already laid out along the token (sublane) dim.
        # NOTE: this unrolled loop assumes token_size is small (ResMLP token mixing); for very
        # large T a single MXU matmul over a (T, BB*H) view would be preferable.
        y = x + bp_ref[...][None, :, :]                      # bp (T,1) -> (1,T,1) broadcast
        for k in range(T):                                    # static unroll, T iterations
            col_k = wpc_ref[k][None, :, :]                    # (1, T, 1)
            y = y + col_k * x[:, k:k + 1, :]                  # (BB, 1, H) sublane-broadcast slab

        # --- LayerNorm1 over the hidden dim (f32) ---
        x1 = _layer_norm(y, g1_ref[...], be1_ref[...], eps)   # (BB, T, H)

        # --- channel MLP on a lane-dense (BB*T, H) slab (reshape free when T % 8 == 0) ---
        x1f = x1.reshape(BB * T, H)
        h = jnp.dot(x1f.astype(cdt), w1_ref[...],
                    preferred_element_type=f32) + b1_ref[...]
        h = _gelu_exact(h)                                    # exact erf in f32 (v5e-safe)
        res2 = jnp.dot(h.astype(cdt), w2_ref[...],
                       preferred_element_type=f32) + b2_ref[...]

        # --- LayerNorm2 over the hidden dim (f32) ---
        out = _layer_norm(x1f + res2, g2_ref[...], be2_ref[...], eps)
        o_ref[...] = out.reshape(BB, T, H).astype(o_ref.dtype)

    return kernel


def _vmem_bytes_estimate(bb, T, H, cdt_itemsize, single_buffer_weights):
    f32 = 4
    lane = 128
    act = bb * T * H * f32
    n_wbuf = 1 if single_buffer_weights else 2
    weights = n_wbuf * 2 * H * H * cdt_itemsize
    small = n_wbuf * (T * T * lane * f32 + T * lane * f32 + 6 * 8 * max(H, lane) * f32)
    return 4 * act + weights + small        # x + out, each double-buffered, plus parameters


def _default_block_batch(B, T, H, cdt_itemsize, vmem_budget=40 * 2**20):
    """Pick batches-per-step: BB*T ideally 256-1024 MXU rows, >=4 grid steps, within VMEM."""
    divs = [d for d in range(1, B + 1) if B % d == 0]
    fit = [d for d in divs
           if _vmem_bytes_estimate(d, T, H, cdt_itemsize, True) <= vmem_budget] or [1]
    steps_ok = ([d for d in fit if B // d >= 4]
                or [d for d in fit if B // d >= 2] or fit)
    big = [d for d in steps_ok if 256 <= d * T <= 1024]
    if big:
        return min(big)                     # reach >=256 rows while keeping the most grid steps
    capped = [d for d in steps_ok if d * T <= 1024]
    return max(capped) if capped else min(steps_ok)


def resmlp_block(x, kernel_params, *, block_batch=None, eps=LAYER_NORM_EPS_DEFAULT):
    """x: (B, T, H). kernel_params: output of prepare_params() (weight casts cached once)."""
    B, T, H = x.shape
    p = kernel_params
    cdt_itemsize = jnp.dtype(p["w1"].dtype).itemsize

    if block_batch is None:
        block_batch = _default_block_batch(B, T, H, cdt_itemsize)
    BB = block_batch
    if B % BB != 0:
        raise ValueError(f"block_batch={BB} must divide batch={B}")

    est = _vmem_bytes_estimate(BB, T, H, cdt_itemsize, True)
    # Size the VMEM request from the actual buffers; cap at 56 MiB so it fits v7x's 64 MiB VMEM.
    vmem_limit = int(min(max(2 * est, 32 * 2**20), 56 * 2**20))

    flops = 2 * B * T * H * (T + 2 * H)
    transcendentals = B * T * H
    bytes_accessed = (2 * B * T * H * x.dtype.itemsize
                      + 2 * H * H * cdt_itemsize + (T * T + T + 6 * H) * 4)

    def build(single_buffer_weights):
        def const_spec(shape):
            idx = lambda b, _n=len(shape): (0,) * _n          # grid-invariant: DMA'd once
            if single_buffer_weights:
                return pl.BlockSpec(shape, idx, pipeline_mode=pl.Buffered(1))
            return pl.BlockSpec(shape, idx)

        grid_spec = pl.GridSpec(
            grid=(B // BB,),
            in_specs=[
                pl.BlockSpec((BB, T, H), lambda b: (b, 0, 0)),   # x
                const_spec((T, T, 1)),                           # Wp columns (token mixing)
                const_spec((T, 1)),                              # bp
                const_spec((1, H)), const_spec((1, H)),          # LN1 gamma / beta
                const_spec((H, H)), const_spec((1, H)),          # fc1 weight (in,out) / bias
                const_spec((H, H)), const_spec((1, H)),          # fc2 weight (in,out) / bias
                const_spec((1, H)), const_spec((1, H)),          # LN2 gamma / beta
            ],
            out_specs=pl.BlockSpec((BB, T, H), lambda b: (b, 0, 0)),
        )
        return pl.pallas_call(
            _make_kernel(eps),
            out_shape=jax.ShapeDtypeStruct((B, T, H), x.dtype),
            grid_spec=grid_spec,
            compiler_params=pltpu.CompilerParams(
                dimension_semantics=("parallel",),
                vmem_limit_bytes=vmem_limit,
            ),
            cost_estimate=pl.CostEstimate(
                flops=flops, transcendentals=transcendentals,
                bytes_accessed=bytes_accessed,
            ),
        )

    args = (x, p["wpc"], p["bp"], p["g1"], p["be1"],
            p["w1"], p["b1"], p["w2"], p["b2"], p["g2"], p["be2"])
    try:
        return build(True)(*args)
    except Exception:
        # pipeline_mode=pl.Buffered(1) unsupported on this JAX version: fall back to the default
        # double-buffered parameter pipeline (costs one extra VMEM copy of each weight).
        return build(False)(*args)


def init_torch_params(key, token_size, hidden_size):
    """Random parameters in PyTorch layout: nn.Linear weights are (out, in)."""
    ks = jax.random.split(key, 10)
    st = 1.0 / math.sqrt(token_size)
    sh = 1.0 / math.sqrt(hidden_size)
    u = jax.random.uniform
    return {
        "wp":    u(ks[0], (token_size, token_size), jnp.float32, -st, st),
        "bp":    u(ks[1], (token_size,), jnp.float32, -st, st),
        "ln1_g": u(ks[2], (hidden_size,), jnp.float32, 0.5, 1.5),
        "ln1_b": u(ks[3], (hidden_size,), jnp.float32, -0.1, 0.1),
        "fc1_w": u(ks[4], (hidden_size, hidden_size), jnp.float32, -sh, sh),
        "fc1_b": u(ks[5], (hidden_size,), jnp.float32, -sh, sh),
        "fc2_w": u(ks[6], (hidden_size, hidden_size), jnp.float32, -sh, sh),
        "fc2_b": u(ks[7], (hidden_size,), jnp.float32, -sh, sh),
        "ln2_g": u(ks[8], (hidden_size,), jnp.float32, 0.5, 1.5),
        "ln2_b": u(ks[9], (hidden_size,), jnp.float32, -0.1, 0.1),
    }


def prepare_params(torch_params, compute_dtype=jnp.bfloat16):
    """One-time conversion to kernel layout; caches the bf16 weight casts outside the call path."""
    p = torch_params
    cdt = jnp.dtype(compute_dtype)
    f32 = jnp.float32
    T = p["wp"].shape[0]
    H = p["fc1_w"].shape[0]
    return {
        # wpc[k, t, 0] = Wp[t, k]: column k of Wp laid out along sublanes for the VPU token mix.
        "wpc": jnp.asarray(p["wp"], f32).T.reshape(T, T, 1),
        "bp":  jnp.asarray(p["bp"], f32).reshape(T, 1),
        "g1":  jnp.asarray(p["ln1_g"], f32).reshape(1, H),
        "be1": jnp.asarray(p["ln1_b"], f32).reshape(1, H),
        "w1":  jnp.asarray(p["fc1_w"], f32).T.astype(cdt),   # (in, out)
        "b1":  jnp.asarray(p["fc1_b"], f32).reshape(1, H),
        "w2":  jnp.asarray(p["fc2_w"], f32).T.astype(cdt),   # (in, out)
        "b2":  jnp.asarray(p["fc2_b"], f32).reshape(1, H),
        "g2":  jnp.asarray(p["ln2_g"], f32).reshape(1, H),
        "be2": jnp.asarray(p["ln2_b"], f32).reshape(1, H),
    }


def resmlp_block_ref(x, torch_params, compute_dtype=None, eps=LAYER_NORM_EPS_DEFAULT):
    """Pure-JAX reference mirroring the PyTorch forward.

    With compute_dtype set, the channel-MLP matmul operands are cast to it (f32 accumulation),
    mirroring the kernel's mixed-precision path; with None this is the full-f32 PyTorch
    semantics. Token mixing is always f32, same as the kernel.
    """
    p = torch_params
    c = (lambda a: a.astype(compute_dtype)) if compute_dtype is not None else (lambda a: a)
    res1 = jnp.einsum('tk,bkh->bth', p["wp"], x,
                      preferred_element_type=jnp.float32) + p["bp"][None, :, None]
    x1 = _layer_norm(x + res1, p["ln1_g"], p["ln1_b"], eps)
    h = jnp.dot(c(x1), c(p["fc1_w"].T), preferred_element_type=jnp.float32) + p["fc1_b"]
    h = _gelu_exact(h)
    res2 = jnp.dot(c(h), c(p["fc2_w"].T), preferred_element_type=jnp.float32) + p["fc2_b"]
    return _layer_norm(x1 + res2, p["ln2_g"], p["ln2_b"], eps)


if __name__ == "__main__":
    # Small but lane/sublane-friendly shapes: T multiple of 8 (free (BB,T,H)->(BB*T,H) reshape),
    # H multiple of 128 (unmasked full-lane stores), B large enough for >= 4 grid steps.
    B, T, H = 64, 8, 128   # batch, token_size, config.hidden_size

    key = jax.random.PRNGKey(0)
    kx, kp = jax.random.split(key)
    x = jax.random.normal(kx, (B, T, H), jnp.float32)

    torch_params = init_torch_params(kp, T, H)
    kernel_params = prepare_params(torch_params, compute_dtype=jnp.bfloat16)  # cast once, reuse

    out = resmlp_block(x, kernel_params)   # heuristic picks BB=16 -> grid=(4,), 128-row matmuls
    out = jax.block_until_ready(out)
    assert out.shape == (B, T, H)

    # Tight check against a reference mirroring the kernel's mixed precision exactly.
    ref_mixed = resmlp_block_ref(x, torch_params, compute_dtype=jnp.bfloat16)
    err_mixed = float(jnp.max(jnp.abs(out - ref_mixed)))
    assert err_mixed < 3e-3, f"mixed-precision mismatch: {err_mixed}"

    # Loose check against the full-f32 PyTorch semantics (slack covers bf16 matmul operands).
    ref_f32 = resmlp_block_ref(x, torch_params, compute_dtype=None)
    err_f32 = float(jnp.max(jnp.abs(out - ref_f32)))
    assert err_f32 < 1e-1, f"f32 reference mismatch: {err_f32}"

    print("KERNEL_OK")
</pallas_src>

<mosaic_0001>
module attributes {stable_mosaic.version = 11 : i64} {
  func.func @kernel(%arg0: i32, %arg1: memref<16x8x128xf32, #tpu.memory_space<vmem>>, %arg2: memref<8x8x1xf32, #tpu.memory_space<vmem>>, %arg3: memref<8x1xf32, #tpu.memory_space<vmem>>, %arg4: memref<1x128xf32, #tpu.memory_space<vmem>>, %arg5: memref<1x128xf32, #tpu.memory_space<vmem>>, %arg6: memref<128x128xbf16, #tpu.memory_space<vmem>>, %arg7: memref<1x128xf32, #tpu.memory_space<vmem>>, %arg8: memref<128x128xbf16, #tpu.memory_space<vmem>>, %arg9: memref<1x128xf32, #tpu.memory_space<vmem>>, %arg10: memref<1x128xf32, #tpu.memory_space<vmem>>, %arg11: memref<1x128xf32, #tpu.memory_space<vmem>>, %arg12: memref<16x8x128xf32, #tpu.memory_space<vmem>>) attributes {dimension_semantics = [#tpu.dimension_semantics<parallel>], iteration_bounds = array<i64: 4>, scalar_prefetch = 0 : i64, scratch_operands = 0 : i64, tpu.core_type = #tpu.core_type<tc>, window_params = [{transform_indices = @transform_0, window_bounds = array<i64: 16, 8, 128>}, {pipeline_mode = #tpu.pipeline_mode<synchronous>, transform_indices = @transform_1, window_bounds = array<i64: 8, 8, 1>}, {pipeline_mode = #tpu.pipeline_mode<synchronous>, transform_indices = @transform_2, window_bounds = array<i64: 8, 1>}, {pipeline_mode = #tpu.pipeline_mode<synchronous>, transform_indices = @transform_3, window_bounds = array<i64: 1, 128>}, {pipeline_mode = #tpu.pipeline_mode<synchronous>, transform_indices = @transform_4, window_bounds = array<i64: 1, 128>}, {pipeline_mode = #tpu.pipeline_mode<synchronous>, transform_indices = @transform_5, window_bounds = array<i64: 128, 128>}, {pipeline_mode = #tpu.pipeline_mode<synchronous>, transform_indices = @transform_6, window_bounds = array<i64: 1, 128>}, {pipeline_mode = #tpu.pipeline_mode<synchronous>, transform_indices = @transform_7, window_bounds = array<i64: 128, 128>}, {pipeline_mode = #tpu.pipeline_mode<synchronous>, transform_indices = @transform_8, window_bounds = array<i64: 1, 128>}, {pipeline_mode = #tpu.pipeline_mode<synchronous>, transform_indices = @transform_9, window_bounds = array<i64: 1, 128>}, {pipeline_mode = #tpu.pipeline_mode<synchronous>, transform_indices = @transform_10, window_bounds = array<i64: 1, 128>}, {transform_indices = @transform_11, window_bounds = array<i64: 16, 8, 128>}]} {
    %c0 = arith.constant 0 : index
    %c0_0 = arith.constant 0 : index
    %c0_1 = arith.constant 0 : index
    %0 = vector.load %arg1[%c0, %c0_0, %c0_1] : memref<16x8x128xf32, #tpu.memory_space<vmem>>, vector<16x8x128xf32>
    %c0_2 = arith.constant 0 : index
    %c0_3 = arith.constant 0 : index
    %1 = vector.load %arg3[%c0_2, %c0_3] : memref<8x1xf32, #tpu.memory_space<vmem>>, vector<8x1xf32>
    %2 = vector.shape_cast %1 : vector<8x1xf32> to vector<1x8x1xf32>
    %3 = vector.broadcast %2 : vector<1x8x1xf32> to vector<16x8x128xf32>
    %4 = arith.addf %0, %3 : vector<16x8x128xf32>
    %c0_4 = arith.constant 0 : index
    %c0_5 = arith.constant 0 : index
    %c0_6 = arith.constant 0 : index
    %5 = vector.load %arg2[%c0_4, %c0_5, %c0_6] : memref<8x8x1xf32, #tpu.memory_space<vmem>>, vector<1x8x1xf32>
    %6 = vector.shape_cast %5 : vector<1x8x1xf32> to vector<8x1xf32>
    %7 = vector.shape_cast %6 : vector<8x1xf32> to vector<1x8x1xf32>
    %8 = vector.extract_strided_slice %0 {offsets = [0, 0, 0], sizes = [16, 1, 128], strides = [1, 1, 1]} : vector<16x8x128xf32> to vector<16x1x128xf32>
    %9 = vector.broadcast %7 : vector<1x8x1xf32> to vector<16x8x128xf32>
    %10 = vector.broadcast %8 : vector<16x1x128xf32> to vector<16x8x128xf32>
    %11 = arith.mulf %9, %10 : vector<16x8x128xf32>
    %12 = arith.addf %4, %11 : vector<16x8x128xf32>
    %c1 = arith.constant 1 : index
    %c0_7 = arith.constant 0 : index
    %c0_8 = arith.constant 0 : index
    %13 = vector.load %arg2[%c1, %c0_7, %c0_8] : memref<8x8x1xf32, #tpu.memory_space<vmem>>, vector<1x8x1xf32>
    %14 = vector.shape_cast %13 : vector<1x8x1xf32> to vector<8x1xf32>
    %15 = vector.shape_cast %14 : vector<8x1xf32> to vector<1x8x1xf32>
    %16 = vector.extract_strided_slice %0 {offsets = [0, 1, 0], sizes = [16, 1, 128], strides = [1, 1, 1]} : vector<16x8x128xf32> to vector<16x1x128xf32>
    %17 = vector.broadcast %15 : vector<1x8x1xf32> to vector<16x8x128xf32>
    %18 = vector.broadcast %16 : vector<16x1x128xf32> to vector<16x8x128xf32>
    %19 = arith.mulf %17, %18 : vector<16x8x128xf32>
    %20 = arith.addf %12, %19 : vector<16x8x128xf32>
    %c2 = arith.constant 2 : index
    %c0_9 = arith.constant 0 : index
    %c0_10 = arith.constant 0 : index
    %21 = vector.load %arg2[%c2, %c0_9, %c0_10] : memref<8x8x1xf32, #tpu.memory_space<vmem>>, vector<1x8x1xf32>
    %22 = vector.shape_cast %21 : vector<1x8x1xf32> to vector<8x1xf32>
    %23 = vector.shape_cast %22 : vector<8x1xf32> to vector<1x8x1xf32>
    %24 = vector.extract_strided_slice %0 {offsets = [0, 2, 0], sizes = [16, 1, 128], strides = [1, 1, 1]} : vector<16x8x128xf32> to vector<16x1x128xf32>
    %25 = vector.broadcast %23 : vector<1x8x1xf32> to vector<16x8x128xf32>
    %26 = vector.broadcast %24 : vector<16x1x128xf32> to vector<16x8x128xf32>
    %27 = arith.mulf %25, %26 : vector<16x8x128xf32>
    %28 = arith.addf %20, %27 : vector<16x8x128xf32>
    %c3 = arith.constant 3 : index
    %c0_11 = arith.constant 0 : index
    %c0_12 = arith.constant 0 : index
    %29 = vector.load %arg2[%c3, %c0_11, %c0_12] : memref<8x8x1xf32, #tpu.memory_space<vmem>>, vector<1x8x1xf32>
    %30 = vector.shape_cast %29 : vector<1x8x1xf32> to vector<8x1xf32>
    %31 = vector.shape_cast %30 : vector<8x1xf32> to vector<1x8x1xf32>
    %32 = vector.extract_strided_slice %0 {offsets = [0, 3, 0], sizes = [16, 1, 128], strides = [1, 1, 1]} : vector<16x8x128xf32> to vector<16x1x128xf32>
    %33 = vector.broadcast %31 : vector<1x8x1xf32> to vector<16x8x128xf32>
    %34 = vector.broadcast %32 : vector<16x1x128xf32> to vector<16x8x128xf32>
    %35 = arith.mulf %33, %34 : vector<16x8x128xf32>
    %36 = arith.addf %28, %35 : vector<16x8x128xf32>
    %c4 = arith.constant 4 : index
    %c0_13 = arith.constant 0 : index
    %c0_14 = arith.constant 0 : index
    %37 = vector.load %arg2[%c4, %c0_13, %c0_14] : memref<8x8x1xf32, #tpu.memory_space<vmem>>, vector<1x8x1xf32>
    %38 = vector.shape_cast %37 : vector<1x8x1xf32> to vector<8x1xf32>
    %39 = vector.shape_cast %38 : vector<8x1xf32> to vector<1x8x1xf32>
    %40 = vector.extract_strided_slice %0 {offsets = [0, 4, 0], sizes = [16, 1, 128], strides = [1, 1, 1]} : vector<16x8x128xf32> to vector<16x1x128xf32>
    %41 = vector.broadcast %39 : vector<1x8x1xf32> to vector<16x8x128xf32>
    %42 = vector.broadcast %40 : vector<16x1x128xf32> to vector<16x8x128xf32>
    %43 = arith.mulf %41, %42 : vector<16x8x128xf32>
    %44 = arith.addf %36, %43 : vector<16x8x128xf32>
    %c5 = arith.constant 5 : index
    %c0_15 = arith.constant 0 : index
    %c0_16 = arith.constant 0 : index
    %45 = vector.load %arg2[%c5, %c0_15, %c0_16] : memref<8x8x1xf32, #tpu.memory_space<vmem>>, vector<1x8x1xf32>
    %46 = vector.shape_cast %45 : vector<1x8x1xf32> to vector<8x1xf32>
    %47 = vector.shape_cast %46 : vector<8x1xf32> to vector<1x8x1xf32>
    %48 = vector.extract_strided_slice %0 {offsets = [0, 5, 0], sizes = [16, 1, 128], strides = [1, 1, 1]} : vector<16x8x128xf32> to vector<16x1x128xf32>
    %49 = vector.broadcast %47 : vector<1x8x1xf32> to vector<16x8x128xf32>
    %50 = vector.broadcast %48 : vector<16x1x128xf32> to vector<16x8x128xf32>
    %51 = arith.mulf %49, %50 : vector<16x8x128xf32>
    %52 = arith.addf %44, %51 : vector<16x8x128xf32>
    %c6 = arith.constant 6 : index
    %c0_17 = arith.constant 0 : index
    %c0_18 = arith.constant 0 : index
    %53 = vector.load %arg2[%c6, %c0_17, %c0_18] : memref<8x8x1xf32, #tpu.memory_space<vmem>>, vector<1x8x1xf32>
    %54 = vector.shape_cast %53 : vector<1x8x1xf32> to vector<8x1xf32>
    %55 = vector.shape_cast %54 : vector<8x1xf32> to vector<1x8x1xf32>
    %56 = vector.extract_strided_slice %0 {offsets = [0, 6, 0], sizes = [16, 1, 128], strides = [1, 1, 1]} : vector<16x8x128xf32> to vector<16x1x128xf32>
    %57 = vector.broadcast %55 : vector<1x8x1xf32> to vector<16x8x128xf32>
    %58 = vector.broadcast %56 : vector<16x1x128xf32> to vector<16x8x128xf32>
    %59 = arith.mulf %57, %58 : vector<16x8x128xf32>
    %60 = arith.addf %52, %59 : vector<16x8x128xf32>
    %c7 = arith.constant 7 : index
    %c0_19 = arith.constant 0 : index
    %c0_20 = arith.constant 0 : index
    %61 = vector.load %arg2[%c7, %c0_19, %c0_20] : memref<8x8x1xf32, #tpu.memory_space<vmem>>, vector<1x8x1xf32>
    %62 = vector.shape_cast %61 : vector<1x8x1xf32> to vector<8x1xf32>
    %63 = vector.shape_cast %62 : vector<8x1xf32> to vector<1x8x1xf32>
    %64 = vector.extract_strided_slice %0 {offsets = [0, 7, 0], sizes = [16, 1, 128], strides = [1, 1, 1]} : vector<16x8x128xf32> to vector<16x1x128xf32>
    %65 = vector.broadcast %63 : vector<1x8x1xf32> to vector<16x8x128xf32>
    %66 = vector.broadcast %64 : vector<16x1x128xf32> to vector<16x8x128xf32>
    %67 = arith.mulf %65, %66 : vector<16x8x128xf32>
    %68 = arith.addf %60, %67 : vector<16x8x128xf32>
    %c0_21 = arith.constant 0 : index
    %c0_22 = arith.constant 0 : index
    %69 = vector.load %arg4[%c0_21, %c0_22] : memref<1x128xf32, #tpu.memory_space<vmem>>, vector<1x128xf32>
    %c0_23 = arith.constant 0 : index
    %c0_24 = arith.constant 0 : index
    %70 = vector.load %arg5[%c0_23, %c0_24] : memref<1x128xf32, #tpu.memory_space<vmem>>, vector<1x128xf32>
    %cst = arith.constant dense<0.000000e+00> : vector<16x8xf32>
    %71 = vector.multi_reduction <add>, %68, %cst [2] : vector<16x8x128xf32> to vector<16x8xf32>
    %72 = vector.shape_cast %71 : vector<16x8xf32> to vector<16x8x1xf32>
    %cst_25 = arith.constant 1.280000e+02 : f32
    %73 = vector.broadcast %cst_25 : f32 to vector<16x8x1xf32>
    %74 = arith.divf %72, %73 : vector<16x8x1xf32>
    %75 = vector.broadcast %74 : vector<16x8x1xf32> to vector<16x8x128xf32>
    %76 = arith.subf %68, %75 : vector<16x8x128xf32>
    %77 = arith.mulf %76, %76 : vector<16x8x128xf32>
    %cst_26 = arith.constant dense<0.000000e+00> : vector<16x8xf32>
    %78 = vector.multi_reduction <add>, %77, %cst_26 [2] : vector<16x8x128xf32> to vector<16x8xf32>
    %79 = vector.shape_cast %78 : vector<16x8xf32> to vector<16x8x1xf32>
    %cst_27 = arith.constant 1.280000e+02 : f32
    %80 = vector.broadcast %cst_27 : f32 to vector<16x8x1xf32>
    %81 = arith.divf %79, %80 : vector<16x8x1xf32>
    %82 = vector.broadcast %74 : vector<16x8x1xf32> to vector<16x8x128xf32>
    %83 = arith.subf %68, %82 : vector<16x8x128xf32>
    %cst_28 = arith.constant 9.99999996E-13 : f32
    %84 = vector.broadcast %cst_28 : f32 to vector<16x8x1xf32>
    %85 = arith.addf %81, %84 : vector<16x8x1xf32>
    %86 = math.rsqrt %85 : vector<16x8x1xf32>
    %87 = vector.broadcast %86 : vector<16x8x1xf32> to vector<16x8x128xf32>
    %88 = arith.mulf %83, %87 : vector<16x8x128xf32>
    %89 = vector.shape_cast %69 : vector<1x128xf32> to vector<1x1x128xf32>
    %90 = vector.broadcast %89 : vector<1x1x128xf32> to vector<16x8x128xf32>
    %91 = arith.mulf %88, %90 : vector<16x8x128xf32>
    %92 = vector.shape_cast %70 : vector<1x128xf32> to vector<1x1x128xf32>
    %93 = vector.broadcast %92 : vector<1x1x128xf32> to vector<16x8x128xf32>
    %94 = arith.addf %91, %93 : vector<16x8x128xf32>
    %95 = vector.shape_cast %94 : vector<16x8x128xf32> to vector<128x128xf32>
    %96 = arith.truncf %95 : vector<128x128xf32> to vector<128x128xbf16>
    %c0_29 = arith.constant 0 : index
    %c0_30 = arith.constant 0 : index
    %97 = vector.load %arg6[%c0_29, %c0_30] : memref<128x128xbf16, #tpu.memory_space<vmem>>, vector<128x128xbf16>
    %cst_31 = arith.constant dense<0.000000e+00> : vector<128x128xf32>
    %98 = tpu.matmul %96, %97, %cst_31 {dimension_numbers = #tpu.dot_dimension_numbers<[1], [0], [0], [1], [0, 0, 1, 1], [], []>} : vector<128x128xbf16>, vector<128x128xbf16>, vector<128x128xf32> -> vector<128x128xf32>
    %c0_32 = arith.constant 0 : index
    %c0_33 = arith.constant 0 : index
    %99 = vector.load %arg7[%c0_32, %c0_33] : memref<1x128xf32, #tpu.memory_space<vmem>>, vector<1x128xf32>
    %100 = vector.broadcast %99 : vector<1x128xf32> to vector<128x128xf32>
    %101 = arith.addf %98, %100 : vector<128x128xf32>
    %cst_34 = arith.constant 5.000000e-01 : f32
    %102 = vector.broadcast %cst_34 : f32 to vector<128x128xf32>
    %103 = arith.mulf %102, %101 : vector<128x128xf32>
    %cst_35 = arith.constant 0.707106769 : f32
    %104 = vector.broadcast %cst_35 : f32 to vector<128x128xf32>
    %105 = arith.mulf %101, %104 : vector<128x128xf32>
    %106 = math.erf %105 : vector<128x128xf32>
    %cst_36 = arith.constant 1.000000e+00 : f32
    %107 = vector.broadcast %cst_36 : f32 to vector<128x128xf32>
    %108 = arith.addf %107, %106 : vector<128x128xf32>
    %109 = arith.mulf %103, %108 : vector<128x128xf32>
    %110 = arith.truncf %109 : vector<128x128xf32> to vector<128x128xbf16>
    %c0_37 = arith.constant 0 : index
    %c0_38 = arith.constant 0 : index
    %111 = vector.load %arg8[%c0_37, %c0_38] : memref<128x128xbf16, #tpu.memory_space<vmem>>, vector<128x128xbf16>
    %cst_39 = arith.constant dense<0.000000e+00> : vector<128x128xf32>
    %112 = tpu.matmul %110, %111, %cst_39 {dimension_numbers = #tpu.dot_dimension_numbers<[1], [0], [0], [1], [0, 0, 1, 1], [], []>} : vector<128x128xbf16>, vector<128x128xbf16>, vector<128x128xf32> -> vector<128x128xf32>
    %c0_40 = arith.constant 0 : index
    %c0_41 = arith.constant 0 : index
    %113 = vector.load %arg9[%c0_40, %c0_41] : memref<1x128xf32, #tpu.memory_space<vmem>>, vector<1x128xf32>
    %114 = vector.broadcast %113 : vector<1x128xf32> to vector<128x128xf32>
    %115 = arith.addf %112, %114 : vector<128x128xf32>
    %116 = arith.addf %95, %115 : vector<128x128xf32>
    %c0_42 = arith.constant 0 : index
    %c0_43 = arith.constant 0 : index
    %117 = vector.load %arg10[%c0_42, %c0_43] : memref<1x128xf32, #tpu.memory_space<vmem>>, vector<1x128xf32>
    %c0_44 = arith.constant 0 : index
    %c0_45 = arith.constant 0 : index
    %118 = vector.load %arg11[%c0_44, %c0_45] : memref<1x128xf32, #tpu.memory_space<vmem>>, vector<1x128xf32>
    %cst_46 = arith.constant dense<0.000000e+00> : vector<128xf32>
    %119 = vector.multi_reduction <add>, %116, %cst_46 [1] : vector<128x128xf32> to vector<128xf32>
    %120 = vector.shape_cast %119 : vector<128xf32> to vector<128x1xf32>
    %cst_47 = arith.constant 1.280000e+02 : f32
    %121 = vector.broadcast %cst_47 : f32 to vector<128x1xf32>
    %122 = arith.divf %120, %121 : vector<128x1xf32>
    %123 = vector.broadcast %122 : vector<128x1xf32> to vector<128x128xf32>
    %124 = arith.subf %116, %123 : vector<128x128xf32>
    %125 = arith.mulf %124, %124 : vector<128x128xf32>
    %cst_48 = arith.constant dense<0.000000e+00> : vector<128xf32>
    %126 = vector.multi_reduction <add>, %125, %cst_48 [1] : vector<128x128xf32> to vector<128xf32>
    %127 = vector.shape_cast %126 : vector<128xf32> to vector<128x1xf32>
    %cst_49 = arith.constant 1.280000e+02 : f32
    %128 = vector.broadcast %cst_49 : f32 to vector<128x1xf32>
    %129 = arith.divf %127, %128 : vector<128x1xf32>
    %130 = vector.broadcast %122 : vector<128x1xf32> to vector<128x128xf32>
    %131 = arith.subf %116, %130 : vector<128x128xf32>
    %cst_50 = arith.constant 9.99999996E-13 : f32
    %132 = vector.broadcast %cst_50 : f32 to vector<128x1xf32>
    %133 = arith.addf %129, %132 : vector<128x1xf32>
    %134 = math.rsqrt %133 : vector<128x1xf32>
    %135 = vector.broadcast %134 : vector<128x1xf32> to vector<128x128xf32>
    %136 = arith.mulf %131, %135 : vector<128x128xf32>
    %137 = vector.broadcast %117 : vector<1x128xf32> to vector<128x128xf32>
    %138 = arith.mulf %136, %137 : vector<128x128xf32>
    %139 = vector.broadcast %118 : vector<1x128xf32> to vector<128x128xf32>
    %140 = arith.addf %138, %139 : vector<128x128xf32>
    %141 = vector.shape_cast %140 : vector<128x128xf32> to vector<16x8x128xf32>
    %c0_51 = arith.constant 0 : index
    %c0_52 = arith.constant 0 : index
    %c0_53 = arith.constant 0 : index
    %142 = vector.load %arg12[%c0_51, %c0_52, %c0_53] : memref<16x8x128xf32, #tpu.memory_space<vmem>>, vector<16x8x128xf32>
    tpu.vector_store %arg12[%c0_51, %c0_52, %c0_53], %141 {strides = array<i32>} : memref<16x8x128xf32, #tpu.memory_space<vmem>>, vector<16x8x128xf32>,
    return
  }
  func.func @transform_0(%arg0: i32) -> (i32, i32, i32) {
    %c0_i32 = arith.constant 0 : i32
    %c0_i32_0 = arith.constant 0 : i32
    %c0_i32_1 = arith.constant 0 : i32
    return %arg0, %c0_i32, %c0_i32_0 : i32, i32, i32
  }
  func.func @transform_1(%arg0: i32) -> (i32, i32, i32) {
    %c0_i32 = arith.constant 0 : i32
    %c0_i32_0 = arith.constant 0 : i32
    %c0_i32_1 = arith.constant 0 : i32
    %c0_i32_2 = arith.constant 0 : i32
    return %c0_i32, %c0_i32_0, %c0_i32_1 : i32, i32, i32
  }
  func.func @transform_2(%arg0: i32) -> (i32, i32) {
    %c0_i32 = arith.constant 0 : i32
    %c0_i32_0 = arith.constant 0 : i32
    %c0_i32_1 = arith.constant 0 : i32
    return %c0_i32, %c0_i32_0 : i32, i32
  }
  func.func @transform_3(%arg0: i32) -> (i32, i32) {
    %c0_i32 = arith.constant 0 : i32
    %c0_i32_0 = arith.constant 0 : i32
    %c0_i32_1 = arith.constant 0 : i32
    return %c0_i32, %c0_i32_0 : i32, i32
  }
  func.func @transform_4(%arg0: i32) -> (i32, i32) {
    %c0_i32 = arith.constant 0 : i32
    %c0_i32_0 = arith.constant 0 : i32
    %c0_i32_1 = arith.constant 0 : i32
    return %c0_i32, %c0_i32_0 : i32, i32
  }
  func.func @transform_5(%arg0: i32) -> (i32, i32) {
    %c0_i32 = arith.constant 0 : i32
    %c0_i32_0 = arith.constant 0 : i32
    %c0_i32_1 = arith.constant 0 : i32
    return %c0_i32, %c0_i32_0 : i32, i32
  }
  func.func @transform_6(%arg0: i32) -> (i32, i32) {
    %c0_i32 = arith.constant 0 : i32
    %c0_i32_0 = arith.constant 0 : i32
    %c0_i32_1 = arith.constant 0 : i32
    return %c0_i32, %c0_i32_0 : i32, i32
  }
  func.func @transform_7(%arg0: i32) -> (i32, i32) {
    %c0_i32 = arith.constant 0 : i32
    %c0_i32_0 = arith.constant 0 : i32
    %c0_i32_1 = arith.constant 0 : i32
    return %c0_i32, %c0_i32_0 : i32, i32
  }
  func.func @transform_8(%arg0: i32) -> (i32, i32) {
    %c0_i32 = arith.constant 0 : i32
    %c0_i32_0 = arith.constant 0 : i32
    %c0_i32_1 = arith.constant 0 : i32
    return %c0_i32, %c0_i32_0 : i32, i32
  }
  func.func @transform_9(%arg0: i32) -> (i32, i32) {
    %c0_i32 = arith.constant 0 : i32
    %c0_i32_0 = arith.constant 0 : i32
    %c0_i32_1 = arith.constant 0 : i32
    return %c0_i32, %c0_i32_0 : i32, i32
  }
  func.func @transform_10(%arg0: i32) -> (i32, i32) {
    %c0_i32 = arith.constant 0 : i32
    %c0_i32_0 = arith.constant 0 : i32
    %c0_i32_1 = arith.constant 0 : i32
    return %c0_i32, %c0_i32_0 : i32, i32
  }
  func.func @transform_11(%arg0: i32) -> (i32, i32, i32) {
    %c0_i32 = arith.constant 0 : i32
    %c0_i32_0 = arith.constant 0 : i32
    %c0_i32_1 = arith.constant 0 : i32
    return %arg0, %c0_i32, %c0_i32_0 : i32, i32, i32
  }
}

module attributes {stable_mosaic.version = 11 : i64} {
  func.func @kernel(%arg0: i32, %arg1: memref<16x8x128xf32, #tpu.memory_space<vmem>>, %arg2: memref<8x8x1xf32, #tpu.memory_space<vmem>>, %arg3: memref<8x1xf32, #tpu.memory_space<vmem>>, %arg4: memref<1x128xf32, #tpu.memory_space<vmem>>, %arg5: memref<1x128xf32, #tpu.memory_space<vmem>>, %arg6: memref<128x128xbf16, #tpu.memory_space<vmem>>, %arg7: memref<1x128xf32, #tpu.memory_space<vmem>>, %arg8: memref<128x128xbf16, #tpu.memory_space<vmem>>, %arg9: memref<1x128xf32, #tpu.memory_space<vmem>>, %arg10: memref<1x128xf32, #tpu.memory_space<vmem>>, %arg11: memref<1x128xf32, #tpu.memory_space<vmem>>, %arg12: memref<16x8x128xf32, #tpu.memory_space<vmem>>) attributes {dimension_semantics = [#tpu.dimension_semantics<parallel>], iteration_bounds = array<i64: 4>, scalar_prefetch = 0 : i64, scratch_operands = 0 : i64, tpu.core_type = #tpu.core_type<tc>, window_params = [{transform_indices = @transform_0, window_bounds = array<i64: 16, 8, 128>}, {pipeline_mode = #tpu.pipeline_mode<synchronous>, transform_indices = @transform_1, window_bounds = array<i64: 8, 8, 1>}, {pipeline_mode = #tpu.pipeline_mode<synchronous>, transform_indices = @transform_2, window_bounds = array<i64: 8, 1>}, {pipeline_mode = #tpu.pipeline_mode<synchronous>, transform_indices = @transform_3, window_bounds = array<i64: 1, 128>}, {pipeline_mode = #tpu.pipeline_mode<synchronous>, transform_indices = @transform_4, window_bounds = array<i64: 1, 128>}, {pipeline_mode = #tpu.pipeline_mode<synchronous>, transform_indices = @transform_5, window_bounds = array<i64: 128, 128>}, {pipeline_mode = #tpu.pipeline_mode<synchronous>, transform_indices = @transform_6, window_bounds = array<i64: 1, 128>}, {pipeline_mode = #tpu.pipeline_mode<synchronous>, transform_indices = @transform_7, window_bounds = array<i64: 128, 128>}, {pipeline_mode = #tpu.pipeline_mode<synchronous>, transform_indices = @transform_8, window_bounds = array<i64: 1, 128>}, {pipeline_mode = #tpu.pipeline_mode<synchronous>, transform_indices = @transform_9, window_bounds = array<i64: 1, 128>}, {pipeline_mode = #tpu.pipeline_mode<synchronous>, transform_indices = @transform_10, window_bounds = array<i64: 1, 128>}, {transform_indices = @transform_11, window_bounds = array<i64: 16, 8, 128>}]} {
    %c0 = arith.constant 0 : index
    %c0_0 = arith.constant 0 : index
    %c0_1 = arith.constant 0 : index
    %0 = vector.load %arg1[%c0, %c0_0, %c0_1] : memref<16x8x128xf32, #tpu.memory_space<vmem>>, vector<16x8x128xf32>
    %c0_2 = arith.constant 0 : index
    %c0_3 = arith.constant 0 : index
    %1 = vector.load %arg3[%c0_2, %c0_3] : memref<8x1xf32, #tpu.memory_space<vmem>>, vector<8x1xf32>
    %2 = vector.shape_cast %1 : vector<8x1xf32> to vector<1x8x1xf32>
    %3 = vector.broadcast %2 : vector<1x8x1xf32> to vector<16x8x128xf32>
    %4 = arith.addf %0, %3 : vector<16x8x128xf32>
    %c0_4 = arith.constant 0 : index
    %c0_5 = arith.constant 0 : index
    %c0_6 = arith.constant 0 : index
    %5 = vector.load %arg2[%c0_4, %c0_5, %c0_6] : memref<8x8x1xf32, #tpu.memory_space<vmem>>, vector<1x8x1xf32>
    %6 = vector.shape_cast %5 : vector<1x8x1xf32> to vector<8x1xf32>
    %7 = vector.shape_cast %6 : vector<8x1xf32> to vector<1x8x1xf32>
    %8 = vector.extract_strided_slice %0 {offsets = [0, 0, 0], sizes = [16, 1, 128], strides = [1, 1, 1]} : vector<16x8x128xf32> to vector<16x1x128xf32>
    %9 = vector.broadcast %7 : vector<1x8x1xf32> to vector<16x8x128xf32>
    %10 = vector.broadcast %8 : vector<16x1x128xf32> to vector<16x8x128xf32>
    %11 = arith.mulf %9, %10 : vector<16x8x128xf32>
    %12 = arith.addf %4, %11 : vector<16x8x128xf32>
    %c1 = arith.constant 1 : index
    %c0_7 = arith.constant 0 : index
    %c0_8 = arith.constant 0 : index
    %13 = vector.load %arg2[%c1, %c0_7, %c0_8] : memref<8x8x1xf32, #tpu.memory_space<vmem>>, vector<1x8x1xf32>
    %14 = vector.shape_cast %13 : vector<1x8x1xf32> to vector<8x1xf32>
    %15 = vector.shape_cast %14 : vector<8x1xf32> to vector<1x8x1xf32>
    %16 = vector.extract_strided_slice %0 {offsets = [0, 1, 0], sizes = [16, 1, 128], strides = [1, 1, 1]} : vector<16x8x128xf32> to vector<16x1x128xf32>
    %17 = vector.broadcast %15 : vector<1x8x1xf32> to vector<16x8x128xf32>
    %18 = vector.broadcast %16 : vector<16x1x128xf32> to vector<16x8x128xf32>
    %19 = arith.mulf %17, %18 : vector<16x8x128xf32>
    %20 = arith.addf %12, %19 : vector<16x8x128xf32>
    %c2 = arith.constant 2 : index
    %c0_9 = arith.constant 0 : index
    %c0_10 = arith.constant 0 : index
    %21 = vector.load %arg2[%c2, %c0_9, %c0_10] : memref<8x8x1xf32, #tpu.memory_space<vmem>>, vector<1x8x1xf32>
    %22 = vector.shape_cast %21 : vector<1x8x1xf32> to vector<8x1xf32>
    %23 = vector.shape_cast %22 : vector<8x1xf32> to vector<1x8x1xf32>
    %24 = vector.extract_strided_slice %0 {offsets = [0, 2, 0], sizes = [16, 1, 128], strides = [1, 1, 1]} : vector<16x8x128xf32> to vector<16x1x128xf32>
    %25 = vector.broadcast %23 : vector<1x8x1xf32> to vector<16x8x128xf32>
    %26 = vector.broadcast %24 : vector<16x1x128xf32> to vector<16x8x128xf32>
    %27 = arith.mulf %25, %26 : vector<16x8x128xf32>
    %28 = arith.addf %20, %27 : vector<16x8x128xf32>
    %c3 = arith.constant 3 : index
    %c0_11 = arith.constant 0 : index
    %c0_12 = arith.constant 0 : index
    %29 = vector.load %arg2[%c3, %c0_11, %c0_12] : memref<8x8x1xf32, #tpu.memory_space<vmem>>, vector<1x8x1xf32>
    %30 = vector.shape_cast %29 : vector<1x8x1xf32> to vector<8x1xf32>
    %31 = vector.shape_cast %30 : vector<8x1xf32> to vector<1x8x1xf32>
    %32 = vector.extract_strided_slice %0 {offsets = [0, 3, 0], sizes = [16, 1, 128], strides = [1, 1, 1]} : vector<16x8x128xf32> to vector<16x1x128xf32>
    %33 = vector.broadcast %31 : vector<1x8x1xf32> to vector<16x8x128xf32>
    %34 = vector.broadcast %32 : vector<16x1x128xf32> to vector<16x8x128xf32>
    %35 = arith.mulf %33, %34 : vector<16x8x128xf32>
    %36 = arith.addf %28, %35 : vector<16x8x128xf32>
    %c4 = arith.constant 4 : index
    %c0_13 = arith.constant 0 : index
    %c0_14 = arith.constant 0 : index
    %37 = vector.load %arg2[%c4, %c0_13, %c0_14] : memref<8x8x1xf32, #tpu.memory_space<vmem>>, vector<1x8x1xf32>
    %38 = vector.shape_cast %37 : vector<1x8x1xf32> to vector<8x1xf32>
    %39 = vector.shape_cast %38 : vector<8x1xf32> to vector<1x8x1xf32>
    %40 = vector.extract_strided_slice %0 {offsets = [0, 4, 0], sizes = [16, 1, 128], strides = [1, 1, 1]} : vector<16x8x128xf32> to vector<16x1x128xf32>
    %41 = vector.broadcast %39 : vector<1x8x1xf32> to vector<16x8x128xf32>
    %42 = vector.broadcast %40 : vector<16x1x128xf32> to vector<16x8x128xf32>
    %43 = arith.mulf %41, %42 : vector<16x8x128xf32>
    %44 = arith.addf %36, %43 : vector<16x8x128xf32>
    %c5 = arith.constant 5 : index
    %c0_15 = arith.constant 0 : index
    %c0_16 = arith.constant 0 : index
    %45 = vector.load %arg2[%c5, %c0_15, %c0_16] : memref<8x8x1xf32, #tpu.memory_space<vmem>>, vector<1x8x1xf32>
    %46 = vector.shape_cast %45 : vector<1x8x1xf32> to vector<8x1xf32>
    %47 = vector.shape_cast %46 : vector<8x1xf32> to vector<1x8x1xf32>
    %48 = vector.extract_strided_slice %0 {offsets = [0, 5, 0], sizes = [16, 1, 128], strides = [1, 1, 1]} : vector<16x8x128xf32> to vector<16x1x128xf32>
    %49 = vector.broadcast %47 : vector<1x8x1xf32> to vector<16x8x128xf32>
    %50 = vector.broadcast %48 : vector<16x1x128xf32> to vector<16x8x128xf32>
    %51 = arith.mulf %49, %50 : vector<16x8x128xf32>
    %52 = arith.addf %44, %51 : vector<16x8x128xf32>
    %c6 = arith.constant 6 : index
    %c0_17 = arith.constant 0 : index
    %c0_18 = arith.constant 0 : index
    %53 = vector.load %arg2[%c6, %c0_17, %c0_18] : memref<8x8x1xf32, #tpu.memory_space<vmem>>, vector<1x8x1xf32>
    %54 = vector.shape_cast %53 : vector<1x8x1xf32> to vector<8x1xf32>
    %55 = vector.shape_cast %54 : vector<8x1xf32> to vector<1x8x1xf32>
    %56 = vector.extract_strided_slice %0 {offsets = [0, 6, 0], sizes = [16, 1, 128], strides = [1, 1, 1]} : vector<16x8x128xf32> to vector<16x1x128xf32>
    %57 = vector.broadcast %55 : vector<1x8x1xf32> to vector<16x8x128xf32>
    %58 = vector.broadcast %56 : vector<16x1x128xf32> to vector<16x8x128xf32>
    %59 = arith.mulf %57, %58 : vector<16x8x128xf32>
    %60 = arith.addf %52, %59 : vector<16x8x128xf32>
    %c7 = arith.constant 7 : index
    %c0_19 = arith.constant 0 : index
    %c0_20 = arith.constant 0 : index
    %61 = vector.load %arg2[%c7, %c0_19, %c0_20] : memref<8x8x1xf32, #tpu.memory_space<vmem>>, vector<1x8x1xf32>
    %62 = vector.shape_cast %61 : vector<1x8x1xf32> to vector<8x1xf32>
    %63 = vector.shape_cast %62 : vector<8x1xf32> to vector<1x8x1xf32>
    %64 = vector.extract_strided_slice %0 {offsets = [0, 7, 0], sizes = [16, 1, 128], strides = [1, 1, 1]} : vector<16x8x128xf32> to vector<16x1x128xf32>
    %65 = vector.broadcast %63 : vector<1x8x1xf32> to vector<16x8x128xf32>
    %66 = vector.broadcast %64 : vector<16x1x128xf32> to vector<16x8x128xf32>
    %67 = arith.mulf %65, %66 : vector<16x8x128xf32>
    %68 = arith.addf %60, %67 : vector<16x8x128xf32>
    %c0_21 = arith.constant 0 : index
    %c0_22 = arith.constant 0 : index
    %69 = vector.load %arg4[%c0_21, %c0_22] : memref<1x128xf32, #tpu.memory_space<vmem>>, vector<1x128xf32>
    %c0_23 = arith.constant 0 : index
    %c0_24 = arith.constant 0 : index
    %70 = vector.load %arg5[%c0_23, %c0_24] : memref<1x128xf32, #tpu.memory_space<vmem>>, vector<1x128xf32>
    %cst = arith.constant dense<0.000000e+00> : vector<16x8xf32>
    %71 = vector.multi_reduction <add>, %68, %cst [2] : vector<16x8x128xf32> to vector<16x8xf32>
    %72 = vector.shape_cast %71 : vector<16x8xf32> to vector<16x8x1xf32>
    %cst_25 = arith.constant 1.280000e+02 : f32
    %73 = vector.broadcast %cst_25 : f32 to vector<16x8x1xf32>
    %74 = arith.divf %72, %73 : vector<16x8x1xf32>
    %75 = vector.broadcast %74 : vector<16x8x1xf32> to vector<16x8x128xf32>
    %76 = arith.subf %68, %75 : vector<16x8x128xf32>
    %77 = arith.mulf %76, %76 : vector<16x8x128xf32>
    %cst_26 = arith.constant dense<0.000000e+00> : vector<16x8xf32>
    %78 = vector.multi_reduction <add>, %77, %cst_26 [2] : vector<16x8x128xf32> to vector<16x8xf32>
    %79 = vector.shape_cast %78 : vector<16x8xf32> to vector<16x8x1xf32>
    %cst_27 = arith.constant 1.280000e+02 : f32
    %80 = vector.broadcast %cst_27 : f32 to vector<16x8x1xf32>
    %81 = arith.divf %79, %80 : vector<16x8x1xf32>
    %82 = vector.broadcast %74 : vector<16x8x1xf32> to vector<16x8x128xf32>
    %83 = arith.subf %68, %82 : vector<16x8x128xf32>
    %cst_28 = arith.constant 9.99999996E-13 : f32
    %84 = vector.broadcast %cst_28 : f32 to vector<16x8x1xf32>
    %85 = arith.addf %81, %84 : vector<16x8x1xf32>
    %86 = math.rsqrt %85 : vector<16x8x1xf32>
    %87 = vector.broadcast %86 : vector<16x8x1xf32> to vector<16x8x128xf32>
    %88 = arith.mulf %83, %87 : vector<16x8x128xf32>
    %89 = vector.shape_cast %69 : vector<1x128xf32> to vector<1x1x128xf32>
    %90 = vector.broadcast %89 : vector<1x1x128xf32> to vector<16x8x128xf32>
    %91 = arith.mulf %88, %90 : vector<16x8x128xf32>
    %92 = vector.shape_cast %70 : vector<1x128xf32> to vector<1x1x128xf32>
    %93 = vector.broadcast %92 : vector<1x1x128xf32> to vector<16x8x128xf32>
    %94 = arith.addf %91, %93 : vector<16x8x128xf32>
    %95 = vector.shape_cast %94 : vector<16x8x128xf32> to vector<128x128xf32>
    %96 = arith.truncf %95 : vector<128x128xf32> to vector<128x128xbf16>
    %c0_29 = arith.constant 0 : index
    %c0_30 = arith.constant 0 : index
    %97 = vector.load %arg6[%c0_29, %c0_30] : memref<128x128xbf16, #tpu.memory_space<vmem>>, vector<128x128xbf16>
    %cst_31 = arith.constant dense<0.000000e+00> : vector<128x128xf32>
    %98 = tpu.matmul %96, %97, %cst_31 {dimension_numbers = #tpu.dot_dimension_numbers<[1], [0], [0], [1], [0, 0, 1, 1], [], []>} : vector<128x128xbf16>, vector<128x128xbf16>, vector<128x128xf32> -> vector<128x128xf32>
    %c0_32 = arith.constant 0 : index
    %c0_33 = arith.constant 0 : index
    %99 = vector.load %arg7[%c0_32, %c0_33] : memref<1x128xf32, #tpu.memory_space<vmem>>, vector<1x128xf32>
    %100 = vector.broadcast %99 : vector<1x128xf32> to vector<128x128xf32>
    %101 = arith.addf %98, %100 : vector<128x128xf32>
    %cst_34 = arith.constant 5.000000e-01 : f32
    %102 = vector.broadcast %cst_34 : f32 to vector<128x128xf32>
    %103 = arith.mulf %102, %101 : vector<128x128xf32>
    %cst_35 = arith.constant 0.707106769 : f32
    %104 = vector.broadcast %cst_35 : f32 to vector<128x128xf32>
    %105 = arith.mulf %101, %104 : vector<128x128xf32>
    %106 = math.erf %105 : vector<128x128xf32>
    %cst_36 = arith.constant 1.000000e+00 : f32
    %107 = vector.broadcast %cst_36 : f32 to vector<128x128xf32>
    %108 = arith.addf %107, %106 : vector<128x128xf32>
    %109 = arith.mulf %103, %108 : vector<128x128xf32>
    %110 = arith.truncf %109 : vector<128x128xf32> to vector<128x128xbf16>
    %c0_37 = arith.constant 0 : index
    %c0_38 = arith.constant 0 : index
    %111 = vector.load %arg8[%c0_37, %c0_38] : memref<128x128xbf16, #tpu.memory_space<vmem>>, vector<128x128xbf16>
    %cst_39 = arith.constant dense<0.000000e+00> : vector<128x128xf32>
    %112 = tpu.matmul %110, %111, %cst_39 {dimension_numbers = #tpu.dot_dimension_numbers<[1], [0], [0], [1], [0, 0, 1, 1], [], []>} : vector<128x128xbf16>, vector<128x128xbf16>, vector<128x128xf32> -> vector<128x128xf32>
    %c0_40 = arith.constant 0 : index
    %c0_41 = arith.constant 0 : index
    %113 = vector.load %arg9[%c0_40, %c0_41] : memref<1x128xf32, #tpu.memory_space<vmem>>, vector<1x128xf32>
    %114 = vector.broadcast %113 : vector<1x128xf32> to vector<128x128xf32>
    %115 = arith.addf %112, %114 : vector<128x128xf32>
    %116 = arith.addf %95, %115 : vector<128x128xf32>
    %c0_42 = arith.constant 0 : index
    %c0_43 = arith.constant 0 : index
    %117 = vector.load %arg10[%c0_42, %c0_43] : memref<1x128xf32, #tpu.memory_space<vmem>>, vector<1x128xf32>
    %c0_44 = arith.constant 0 : index
    %c0_45 = arith.constant 0 : index
    %118 = vector.load %arg11[%c0_44, %c0_45] : memref<1x128xf32, #tpu.memory_space<vmem>>, vector<1x128xf32>
    %cst_46 = arith.constant dense<0.000000e+00> : vector<128xf32>
    %119 = vector.multi_reduction <add>, %116, %cst_46 [1] : vector<128x128xf32> to vector<128xf32>
    %120 = vector.shape_cast %119 : vector<128xf32> to vector<128x1xf32>
    %cst_47 = arith.constant 1.280000e+02 : f32
    %121 = vector.broadcast %cst_47 : f32 to vector<128x1xf32>
    %122 = arith.divf %120, %121 : vector<128x1xf32>
    %123 = vector.broadcast %122 : vector<128x1xf32> to vector<128x128xf32>
    %124 = arith.subf %116, %123 : vector<128x128xf32>
    %125 = arith.mulf %124, %124 : vector<128x128xf32>
    %cst_48 = arith.constant dense<0.000000e+00> : vector<128xf32>
    %126 = vector.multi_reduction <add>, %125, %cst_48 [1] : vector<128x128xf32> to vector<128xf32>
    %127 = vector.shape_cast %126 : vector<128xf32> to vector<128x1xf32>
    %cst_49 = arith.constant 1.280000e+02 : f32
    %128 = vector.broadcast %cst_49 : f32 to vector<128x1xf32>
    %129 = arith.divf %127, %128 : vector<128x1xf32>
    %130 = vector.broadcast %122 : vector<128x1xf32> to vector<128x128xf32>
    %131 = arith.subf %116, %130 : vector<128x128xf32>
    %cst_50 = arith.constant 9.99999996E-13 : f32
    %132 = vector.broadcast %cst_50 : f32 to vector<128x1xf32>
    %133 = arith.addf %129, %132 : vector<128x1xf32>
    %134 = math.rsqrt %133 : vector<128x1xf32>
    %135 = vector.broadcast %134 : vector<128x1xf32> to vector<128x128xf32>
    %136 = arith.mulf %131, %135 : vector<128x128xf32>
    %137 = vector.broadcast %117 : vector<1x128xf32> to vector<128x128xf32>
    %138 = arith.mulf %136, %137 : vector<128x128xf32>
    %139 = vector.broadcast %118 : vector<1x128xf32> to vector<128x128xf32>
    %140 = arith.addf %138, %139 : vector<128x128xf32>
    %141 = vector.shape_cast %140 : vector<128x128xf32> to vector<16x8x128xf32>
    %c0_51 = arith.constant 0 : index
    %c0_52 = arith.constant 0 : index
    %c0_53 = arith.constant 0 : index
    %142 = vector.load %arg12[%c0_51, %c0_52, %c0_53] : memref<16x8x128xf32, #tpu.memory_space<vmem>>, vector<16x8x128xf32>
    tpu.vector_store %arg12[%c0_51, %c0_52, %c0_53], %141 {strides = array<i32>} : memref<16x8x128xf32, #tpu.memory_space<vmem>>, vector<16x8x128xf32>,
    return
  }
  func.func @transform_0(%arg0: i32) -> (i32, i32, i32) {
    %c0_i32 = arith.constant 0 : i32
    %c0_i32_0 = arith.constant 0 : i32
    %c0_i32_1 = arith.constant 0 : i32
    return %arg0, %c0_i32, %c0_i32_0 : i32, i32, i32
  }
  func.func @transform_1(%arg0: i32) -> (i32, i32, i32) {
    %c0_i32 = arith.constant 0 : i32
    %c0_i32_0 = arith.constant 0 : i32
    %c0_i32_1 = arith.constant 0 : i32
    %c0_i32_2 = arith.constant 0 : i32
    return %c0_i32, %c0_i32_0, %c0_i32_1 : i32, i32, i32
  }
  func.func @transform_2(%arg0: i32) -> (i32, i32) {
    %c0_i32 = arith.constant 0 : i32
    %c0_i32_0 = arith.constant 0 : i32
    %c0_i32_1 = arith.constant 0 : i32
    return %c0_i32, %c0_i32_0 : i32, i32
  }
  func.func @transform_3(%arg0: i32) -> (i32, i32) {
    %c0_i32 = arith.constant 0 : i32
    %c0_i32_0 = arith.constant 0 : i32
    %c0_i32_1 = arith.constant 0 : i32
    return %c0_i32, %c0_i32_0 : i32, i32
  }
  func.func @transform_4(%arg0: i32) -> (i32, i32) {
    %c0_i32 = arith.constant 0 : i32
    %c0_i32_0 = arith.constant 0 : i32
    %c0_i32_1 = arith.constant 0 : i32
    return %c0_i32, %c0_i32_0 : i32, i32
  }
  func.func @transform_5(%arg0: i32) -> (i32, i32) {
    %c0_i32 = arith.constant 0 : i32
    %c0_i32_0 = arith.constant 0 : i32
    %c0_i32_1 = arith.constant 0 : i32
    return %c0_i32, %c0_i32_0 : i32, i32
  }
  func.func @transform_6(%arg0: i32) -> (i32, i32) {
    %c0_i32 = arith.constant 0 : i32
    %c0_i32_0 = arith.constant 0 : i32
    %c0_i32_1 = arith.constant 0 : i32
    return %c0_i32, %c0_i32_0 : i32, i32
  }
  func.func @transform_7(%arg0: i32) -> (i32, i32) {
    %c0_i32 = arith.constant 0 : i32
    %c0_i32_0 = arith.constant 0 : i32
    %c0_i32_1 = arith.constant 0 : i32
    return %c0_i32, %c0_i32_0 : i32, i32
  }
  func.func @transform_8(%arg0: i32) -> (i32, i32) {
    %c0_i32 = arith.constant 0 : i32
    %c0_i32_0 = arith.constant 0 : i32
    %c0_i32_1 = arith.constant 0 : i32
    return %c0_i32, %c0_i32_0 : i32, i32
  }
  func.func @transform_9(%arg0: i32) -> (i32, i32) {
    %c0_i32 = arith.constant 0 : i32
    %c0_i32_0 = arith.constant 0 : i32
    %c0_i32_1 = arith.constant 0 : i32
    return %c0_i32, %c0_i32_0 : i32, i32
  }
  func.func @transform_10(%arg0: i32) -> (i32, i32) {
    %c0_i32 = arith.constant 0 : i32
    %c0_i32_0 = arith.constant 0 : i32
    %c0_i32_1 = arith.constant 0 : i32
    return %c0_i32, %c0_i32_0 : i32, i32
  }
  func.func @transform_11(%arg0: i32) -> (i32, i32, i32) {
    %c0_i32 = arith.constant 0 : i32
    %c0_i32_0 = arith.constant 0 : i32
    %c0_i32_1 = arith.constant 0 : i32
    return %arg0, %c0_i32, %c0_i32_0 : i32, i32, i32
  }
}

</mosaic_0001>

<llo_original>
// kernel: tpu_custom_call.1
$region0: #{tpu_custom_call.1}
  #allocation0 [shape = 'u32[]', space=smem, size = 0x4, offset = 0x4, fixed_abs, tag = 'smem constant byte address 0x4 - core index']
  #allocation1 [shape = 'u32[144,128]{1,0:T(1,128)}', space=vmem, size = 0x12000, scoped, tag = 'internal scratch']
  %s0 = inlined_call_operand.hbm [shape: f32[64,8,128], index: 0, kind: input, shape index: {}]
  %s1 = inlined_call_operand.vmem [shape: f32[8,8,1], index: 1, kind: input, shape index: {}]
  %s2 = inlined_call_operand.vmem [shape: f32[8,1], index: 2, kind: input, shape index: {}]
  %s3 = inlined_call_operand.vmem [shape: f32[1,128], index: 3, kind: input, shape index: {}]
  %s4 = inlined_call_operand.vmem [shape: f32[1,128], index: 4, kind: input, shape index: {}]
  %s5 = inlined_call_operand.vmem [shape: bf16[128,128], index: 5, kind: input, shape index: {}]
  %s6 = inlined_call_operand.vmem [shape: f32[1,128], index: 6, kind: input, shape index: {}]
  %s7 = inlined_call_operand.hbm [shape: bf16[128,128], index: 7, kind: input, shape index: {}]
  %s8 = inlined_call_operand.vmem [shape: f32[1,128], index: 8, kind: input, shape index: {}]
  %s9 = inlined_call_operand.vmem [shape: f32[1,128], index: 9, kind: input, shape index: {}]
  %s10 = inlined_call_operand.vmem [shape: f32[1,128], index: 10, kind: input, shape index: {}]
  %s11 = inlined_call_operand.hbm [shape: f32[64,8,128], index: 11, kind: output, shape index: {}]
  %s12 = sld [smem:[#allocation0]]
  $region85: #{tpu_custom_call.1} parent=0
    _
  %s14 = ssub.s32 1, %s12
  %s15 = scalar_select 0, %s14, %s12
  $region1: #{tpu_custom_call.1} parent=0
    #allocation2 [shape = 'u8[131072]{0}', space=vmem, size = 0x20000, scoped, tag = 'input window, operand 0']
    #allocation3 [shape = 's32[2]{0}', space=sflag, size = 0x8, scoped, tag = 'scoped memory for tpu_custom_call.1']
    #allocation4 [shape = 's32[2]{0}', space=sflag, size = 0x8, scoped, tag = 'scoped memory for tpu_custom_call.1']
    #allocation5 [shape = 'u8[32768]{0}', space=vmem, size = 0x8000, scoped, tag = 'input window, operand 7, single buffered']
    #allocation6 [shape = 's32[1]{0}', space=sflag, size = 0x4, scoped, tag = 'scoped memory for tpu_custom_call.1']
    #allocation7 [shape = 'u8[131072]{0}', space=vmem, size = 0x20000, scoped, tag = 'output window, operand 0']
    %16 = vsyncpa [#allocation3], 0
    %s17 = scalar_lea.sflag [#allocation3], 1
    %18 = vsyncpa %s17, 0
    %19 = vsyncpa [#allocation6], 0
    %20 = vsyncpa [#allocation4], 0
    %s21 = scalar_lea.sflag [#allocation4], 1
    %22 = vsyncpa %s21, 0
    loop: start=0, step=1, limit=6
    $region2: #{tpu_custom_call.1} parent=1 // loop_pre_header
      _
    $region3: #{tpu_custom_call.1} parent=1 // loop_header
      %s24 = sphi 0, %s28
      %p25 = scmp.ge.s32.totalorder %s24, 6
      %s34 = sphi 0, %s36
      %s37 = sphi 0, %s34
      %s38 = sphi 0, %s37
      %s54 = sphi 0, %s38
      %s58 = sphi 0, %s58
      %s60 = sphi 0, %s58
      %s61 = sphi 0, %s60
      %s75 = sphi 0, %s61
      %s79 = sphi 0, %s79
      %s81 = sphi 0, %s79
      %s82 = sphi 0, %s81
      %s96 = sphi 0, %s82
      %s100 = sphi 0, %s100
      %s102 = sphi 0, %s100
      %s103 = sphi 0, %s102
      %s117 = sphi 0, %s103
      %s121 = sphi 0, %s121
      %s123 = sphi 0, %s121
      %s124 = sphi 0, %s123
      %s138 = sphi 0, %s124
      %s142 = sphi 0, %s142
      %s144 = sphi 0, %s142
      %s145 = sphi 0, %s144
      %s159 = sphi 0, %s145
      %s163 = sphi 0, %s163
      %s165 = sphi 0, %s163
      %s166 = sphi 0, %s165
      %s180 = sphi 0, %s166
      %s184 = sphi 0, %s184
      %s186 = sphi 0, %s184
      %s187 = sphi 0, %s186
      %s201 = sphi 0, %s187
      %s205 = sphi 0, %s205
      %s207 = sphi 0, %s205
      %s208 = sphi 0, %s207
      %s222 = sphi 0, %s208
      %s226 = sphi 0, %s226
      %s228 = sphi 0, %s226
      %s229 = sphi 0, %s228
      %s243 = sphi 0, %s229
      %s247 = sphi 0, %s247
      %s249 = sphi 0, %s247
      %s250 = sphi 0, %s249
      %s264 = sphi 0, %s250
      %s270 = sphi 0, %s272
      %s273 = sphi 0, %s270
      %s274 = sphi 0, %s273
      %s290 = sphi 0, %s274
    $region4: #{tpu_custom_call.1} parent=1 // loop_header_branch
      %27 = sbr.rel (%p25) target = $region8
    $region5: #{tpu_custom_call.1} parent=1 // loop_body
      %s29 = ssub.s32 %s24, 1
      %s30 = ssub.s32 %s24, 2
      %s31 = sadd.s32 %s24, 1
      %s32 = ssub.s32 %s24, %s31
      %p33 = scmp.eq.s32.totalorder %s32, 0
      %s35 = sadd.s32 %s34, 1
      %s36 = scalar_select %p33, %s34, %s35
      %p39 = pneg %p33
      %p40 = scmp.eq.s32.totalorder %s24, 3
      %p41 = por %p39, %p40
      %p42 = scmp.ne.s32.totalorder %s34, %s37
      %p43 = scmp.eq.s32.totalorder %s24, 0
      %p44 = por %p42, %p43
      %p45 = scmp.ne.s32.totalorder %s34, %s37
      %p46 = scmp.eq.s32.totalorder %s29, 3
      %p47 = por %p45, %p46
      %p48 = scmp.ne.s32.totalorder %s37, %s38
      %p49 = scmp.eq.s32.totalorder %s29, 0
      %p50 = por %p48, %p49
      %p51 = scmp.ne.s32.totalorder %s37, %s38
      %p52 = scmp.eq.s32.totalorder %s30, 3
      %p53 = por %p51, %p52
      %p55 = scmp.ne.s32.totalorder %s38, %s54
      %p56 = scmp.eq.s32.totalorder %s30, 0
      %p57 = por %p55, %p56
      %s59 = sadd.s32 %s58, 1
      %p62 = scmp.eq.s32.totalorder %s24, 3
      %p63 = scmp.ne.s32.totalorder %s58, %s60
      %p64 = scmp.eq.s32.totalorder %s24, 0
      %p65 = por %p63, %p64
      %p66 = scmp.ne.s32.totalorder %s58, %s60
      %p67 = scmp.eq.s32.totalorder %s29, 3
      %p68 = por %p66, %p67
      %p69 = scmp.ne.s32.totalorder %s60, %s61
      %p70 = scmp.eq.s32.totalorder %s29, 0
      %p71 = por %p69, %p70
      %p72 = scmp.ne.s32.totalorder %s60, %s61
      %p73 = scmp.eq.s32.totalorder %s30, 3
      %p74 = por %p72, %p73
      %p76 = scmp.ne.s32.totalorder %s61, %s75
      %p77 = scmp.eq.s32.totalorder %s30, 0
      %p78 = por %p76, %p77
      %s80 = sadd.s32 %s79, 1
      %p83 = scmp.eq.s32.totalorder %s24, 3
      %p84 = scmp.ne.s32.totalorder %s79, %s81
      %p85 = scmp.eq.s32.totalorder %s24, 0
      %p86 = por %p84, %p85
      %p87 = scmp.ne.s32.totalorder %s79, %s81
      %p88 = scmp.eq.s32.totalorder %s29, 3
      %p89 = por %p87, %p88
      %p90 = scmp.ne.s32.totalorder %s81, %s82
      %p91 = scmp.eq.s32.totalorder %s29, 0
      %p92 = por %p90, %p91
      %p93 = scmp.ne.s32.totalorder %s81, %s82
      %p94 = scmp.eq.s32.totalorder %s30, 3
      %p95 = por %p93, %p94
      %p97 = scmp.ne.s32.totalorder %s82, %s96
      %p98 = scmp.eq.s32.totalorder %s30, 0
      %p99 = por %p97, %p98
      %s101 = sadd.s32 %s100, 1
      %p104 = scmp.eq.s32.totalorder %s24, 3
      %p105 = scmp.ne.s32.totalorder %s100, %s102
      %p106 = scmp.eq.s32.totalorder %s24, 0
      %p107 = por %p105, %p106
      %p108 = scmp.ne.s32.totalorder %s100, %s102
      %p109 = scmp.eq.s32.totalorder %s29, 3
      %p110 = por %p108, %p109
      %p111 = scmp.ne.s32.totalorder %s102, %s103
      %p112 = scmp.eq.s32.totalorder %s29, 0
      %p113 = por %p111, %p112
      %p114 = scmp.ne.s32.totalorder %s102, %s103
      %p115 = scmp.eq.s32.totalorder %s30, 3
      %p116 = por %p114, %p115
      %p118 = scmp.ne.s32.totalorder %s103, %s117
      %p119 = scmp.eq.s32.totalorder %s30, 0
      %p120 = por %p118, %p119
      %s122 = sadd.s32 %s121, 1
      %p125 = scmp.eq.s32.totalorder %s24, 3
      %p126 = scmp.ne.s32.totalorder %s121, %s123
      %p127 = scmp.eq.s32.totalorder %s24, 0
      %p128 = por %p126, %p127
      %p129 = scmp.ne.s32.totalorder %s121, %s123
      %p130 = scmp.eq.s32.totalorder %s29, 3
      %p131 = por %p129, %p130
      %p132 = scmp.ne.s32.totalorder %s123, %s124
      %p133 = scmp.eq.s32.totalorder %s29, 0
      %p134 = por %p132, %p133
      %p135 = scmp.ne.s32.totalorder %s123, %s124
      %p136 = scmp.eq.s32.totalorder %s30, 3
      %p137 = por %p135, %p136
      %p139 = scmp.ne.s32.totalorder %s124, %s138
      %p140 = scmp.eq.s32.totalorder %s30, 0
      %p141 = por %p139, %p140
      %s143 = sadd.s32 %s142, 1
      %p146 = scmp.eq.s32.totalorder %s24, 3
      %p147 = scmp.ne.s32.totalorder %s142, %s144
      %p148 = scmp.eq.s32.totalorder %s24, 0
      %p149 = por %p147, %p148
      %p150 = scmp.ne.s32.totalorder %s142, %s144
      %p151 = scmp.eq.s32.totalorder %s29, 3
      %p152 = por %p150, %p151
      %p153 = scmp.ne.s32.totalorder %s144, %s145
      %p154 = scmp.eq.s32.totalorder %s29, 0
      %p155 = por %p153, %p154
      %p156 = scmp.ne.s32.totalorder %s144, %s145
      %p157 = scmp.eq.s32.totalorder %s30, 3
      %p158 = por %p156, %p157
      %p160 = scmp.ne.s32.totalorder %s145, %s159
      %p161 = scmp.eq.s32.totalorder %s30, 0
      %p162 = por %p160, %p161
      %s164 = sadd.s32 %s163, 1
      %p167 = scmp.eq.s32.totalorder %s24, 3
      %p168 = scmp.ne.s32.totalorder %s163, %s165
      %p169 = scmp.eq.s32.totalorder %s24, 0
      %p170 = por %p168, %p169
      %p171 = scmp.ne.s32.totalorder %s163, %s165
      %p172 = scmp.eq.s32.totalorder %s29, 3
      %p173 = por %p171, %p172
      %p174 = scmp.ne.s32.totalorder %s165, %s166
      %p175 = scmp.eq.s32.totalorder %s29, 0
      %p176 = por %p174, %p175
      %p177 = scmp.ne.s32.totalorder %s165, %s166
      %p178 = scmp.eq.s32.totalorder %s30, 3
      %p179 = por %p177, %p178
      %p181 = scmp.ne.s32.totalorder %s166, %s180
      %p182 = scmp.eq.s32.totalorder %s30, 0
      %p183 = por %p181, %p182
      %s185 = sadd.s32 %s184, 1
      %p188 = scmp.eq.s32.totalorder %s24, 3
      %p189 = scmp.ne.s32.totalorder %s184, %s186
      %p190 = scmp.eq.s32.totalorder %s24, 0
      %p191 = por %p189, %p190
      %p192 = scmp.ne.s32.totalorder %s184, %s186
      %p193 = scmp.eq.s32.totalorder %s29, 3
      %p194 = por %p192, %p193
      %p195 = scmp.ne.s32.totalorder %s186, %s187
      %p196 = scmp.eq.s32.totalorder %s29, 0
      %p197 = por %p195, %p196
      %p198 = scmp.ne.s32.totalorder %s186, %s187
      %p199 = scmp.eq.s32.totalorder %s30, 3
      %p200 = por %p198, %p199
      %p202 = scmp.ne.s32.totalorder %s187, %s201
      %p203 = scmp.eq.s32.totalorder %s30, 0
      %p204 = por %p202, %p203
      %s206 = sadd.s32 %s205, 1
      %p209 = scmp.eq.s32.totalorder %s24, 3
      %p210 = scmp.ne.s32.totalorder %s205, %s207
      %p211 = scmp.eq.s32.totalorder %s24, 0
      %p212 = por %p210, %p211
      %p213 = scmp.ne.s32.totalorder %s205, %s207
      %p214 = scmp.eq.s32.totalorder %s29, 3
      %p215 = por %p213, %p214
      %p216 = scmp.ne.s32.totalorder %s207, %s208
      %p217 = scmp.eq.s32.totalorder %s29, 0
      %p218 = por %p216, %p217
      %p219 = scmp.ne.s32.totalorder %s207, %s208
      %p220 = scmp.eq.s32.totalorder %s30, 3
      %p221 = por %p219, %p220
      %p223 = scmp.ne.s32.totalorder %s208, %s222
      %p224 = scmp.eq.s32.totalorder %s30, 0
      %p225 = por %p223, %p224
      %s227 = sadd.s32 %s226, 1
      %p230 = scmp.eq.s32.totalorder %s24, 3
      %p231 = scmp.ne.s32.totalorder %s226, %s228
      %p232 = scmp.eq.s32.totalorder %s24, 0
      %p233 = por %p231, %p232
      %p234 = scmp.ne.s32.totalorder %s226, %s228
      %p235 = scmp.eq.s32.totalorder %s29, 3
      %p236 = por %p234, %p235
      %p237 = scmp.ne.s32.totalorder %s228, %s229
      %p238 = scmp.eq.s32.totalorder %s29, 0
      %p239 = por %p237, %p238
      %p240 = scmp.ne.s32.totalorder %s228, %s229
      %p241 = scmp.eq.s32.totalorder %s30, 3
      %p242 = por %p240, %p241
      %p244 = scmp.ne.s32.totalorder %s229, %s243
      %p245 = scmp.eq.s32.totalorder %s30, 0
      %p246 = por %p244, %p245
      %s248 = sadd.s32 %s247, 1
      %p251 = scmp.eq.s32.totalorder %s24, 3
      %p252 = scmp.ne.s32.totalorder %s247, %s249
      %p253 = scmp.eq.s32.totalorder %s24, 0
      %p254 = por %p252, %p253
      %p255 = scmp.ne.s32.totalorder %s247, %s249
      %p256 = scmp.eq.s32.totalorder %s29, 3
      %p257 = por %p255, %p256
      %p258 = scmp.ne.s32.totalorder %s249, %s250
      %p259 = scmp.eq.s32.totalorder %s29, 0
      %p260 = por %p258, %p259
      %p261 = scmp.ne.s32.totalorder %s249, %s250
      %p262 = scmp.eq.s32.totalorder %s30, 3
      %p263 = por %p261, %p262
      %p265 = scmp.ne.s32.totalorder %s250, %s264
      %p266 = scmp.eq.s32.totalorder %s30, 0
      %p267 = por %p265, %p266
      %s268 = ssub.s32 %s24, %s31
      %p269 = scmp.eq.s32.totalorder %s268, 0
      %s271 = sadd.s32 %s270, 1
      %s272 = scalar_select %p269, %s270, %s271
      %p275 = pneg %p269
      %p276 = scmp.eq.s32.totalorder %s24, 3
      %p277 = por %p275, %p276
      %p278 = scmp.ne.s32.totalorder %s270, %s273
      %p279 = scmp.eq.s32.totalorder %s24, 0
      %p280 = por %p278, %p279
      %p281 = scmp.ne.s32.totalorder %s270, %s273
      %p282 = scmp.eq.s32.totalorder %s29, 3
      %p283 = por %p281, %p282
      %p284 = scmp.ne.s32.totalorder %s273, %s274
      %p285 = scmp.eq.s32.totalorder %s29, 0
      %p286 = por %p284, %p285
      %p287 = scmp.ne.s32.totalorder %s273, %s274
      %p288 = scmp.eq.s32.totalorder %s30, 3
      %p289 = por %p287, %p288
      %p291 = scmp.ne.s32.totalorder %s274, %s290
      %p292 = scmp.eq.s32.totalorder %s30, 0
      %p293 = por %p291, %p292
      %p294 = scmp.le.s32.totalorder 1, %s24
      %p295 = scmp.lt.s32.totalorder %s24, 5
      %p296 = pnand %p294, %p295
      %p297 = pneg %p296
      // Predicated region
      $region9: #{tpu_custom_call.1} parent=5 // pred_check
        _
      $region10: #{tpu_custom_call.1} parent=5 // pred_check_branch
        %299 = sbr.rel (%p296) target = $region12
      $region11: #{tpu_custom_call.1} parent=5 // pred_region
        %s300 = ssub.s32 %s24, 1
        // Predicated region
        $region13: #{tpu_custom_call.1} parent=11 // pred_check
          %p301 = pneg %p71
        $region14: #{tpu_custom_call.1} parent=11 // pred_check_branch
          %303 = sbr.rel (%p301) target = $region16
        $region15: #{tpu_custom_call.1} parent=11 // pred_region
          _
        $region16: #{tpu_custom_call.1} parent=11 // pred_fallthru
          _
        // Predicated region
        $region17: #{tpu_custom_call.1} parent=11 // pred_check
          %p304 = pneg %p92
        $region18: #{tpu_custom_call.1} parent=11 // pred_check_branch
          %306 = sbr.rel (%p304) target = $region20
        $region19: #{tpu_custom_call.1} parent=11 // pred_region
          _
        $region20: #{tpu_custom_call.1} parent=11 // pred_fallthru
          _
        // Predicated region
        $region21: #{tpu_custom_call.1} parent=11 // pred_check
          %p307 = pneg %p113
        $region22: #{tpu_custom_call.1} parent=11 // pred_check_branch
          %309 = sbr.rel (%p307) target = $region24
        $region23: #{tpu_custom_call.1} parent=11 // pred_region
          _
        $region24: #{tpu_custom_call.1} parent=11 // pred_fallthru
          _
        // Predicated region
        $region25: #{tpu_custom_call.1} parent=11 // pred_check
          %p310 = pneg %p134
        $region26: #{tpu_custom_call.1} parent=11 // pred_check_branch
          %312 = sbr.rel (%p310) target = $region28
        $region27: #{tpu_custom_call.1} parent=11 // pred_region
          _
        $region28: #{tpu_custom_call.1} parent=11 // pred_fallthru
          _
        // Predicated region
        $region29: #{tpu_custom_call.1} parent=11 // pred_check
          %p313 = pneg %p155
        $region30: #{tpu_custom_call.1} parent=11 // pred_check_branch
          %315 = sbr.rel (%p313) target = $region32
        $region31: #{tpu_custom_call.1} parent=11 // pred_region
          _
        $region32: #{tpu_custom_call.1} parent=11 // pred_fallthru
          _
        // Predicated region
        $region33: #{tpu_custom_call.1} parent=11 // pred_check
          %p316 = pneg %p176
        $region34: #{tpu_custom_call.1} parent=11 // pred_check_branch
          %318 = sbr.rel (%p316) target = $region36
        $region35: #{tpu_custom_call.1} parent=11 // pred_region
          _
        $region36: #{tpu_custom_call.1} parent=11 // pred_fallthru
          _
        // Predicated region
        $region37: #{tpu_custom_call.1} parent=11 // pred_check
          %p319 = pneg %p197
        $region38: #{tpu_custom_call.1} parent=11 // pred_check_branch
          %321 = sbr.rel (%p319) target = $region40
        $region39: #{tpu_custom_call.1} parent=11 // pred_region
          %s323 = ssub.s32 1024, 1024
          %324 = vsyncadd [#allocation6], %s323
          %s325 = sshll.u32 [#allocation5], 4
          %s326 = int_to_ptr.vmem [resolvable:$true] %s325
          %331 = dma.hbm_to_vmem [thread:$0]  %s7, 1024, %s326, [#allocation6], 64, 64, 4
        $region40: #{tpu_custom_call.1} parent=11 // pred_fallthru
          _
        // Predicated region
        $region41: #{tpu_custom_call.1} parent=11 // pred_check
          %p332 = pneg %p218
        $region42: #{tpu_custom_call.1} parent=11 // pred_check_branch
          %334 = sbr.rel (%p332) target = $region44
        $region43: #{tpu_custom_call.1} parent=11 // pred_region
          _
        $region44: #{tpu_custom_call.1} parent=11 // pred_fallthru
          _
        // Predicated region
        $region45: #{tpu_custom_call.1} parent=11 // pred_check
          %p335 = pneg %p239
        $region46: #{tpu_custom_call.1} parent=11 // pred_check_branch
          %337 = sbr.rel (%p335) target = $region48
        $region47: #{tpu_custom_call.1} parent=11 // pred_region
          _
        $region48: #{tpu_custom_call.1} parent=11 // pred_fallthru
          _
        // Predicated region
        $region49: #{tpu_custom_call.1} parent=11 // pred_check
          %p338 = pneg %p260
        $region50: #{tpu_custom_call.1} parent=11 // pred_check_branch
          %340 = sbr.rel (%p338) target = $region52
        $region51: #{tpu_custom_call.1} parent=11 // pred_region
          _
        $region52: #{tpu_custom_call.1} parent=11 // pred_fallthru
          _
      $region12: #{tpu_custom_call.1} parent=5 // pred_fallthru
        _
      %p341 = scmp.lt.s32.totalorder %s24, 4
      // Predicated region
      $region53: #{tpu_custom_call.1} parent=5 // pred_check
        %p342 = pneg %p341
      $region54: #{tpu_custom_call.1} parent=5 // pred_check_branch
        %344 = sbr.rel (%p342) target = $region56
      $region55: #{tpu_custom_call.1} parent=5 // pred_region
        // Predicated region
        $region57: #{tpu_custom_call.1} parent=55 // pred_check
          %p345 = pneg %p44
        $region58: #{tpu_custom_call.1} parent=55 // pred_check_branch
          %347 = sbr.rel (%p345) target = $region60
        $region59: #{tpu_custom_call.1} parent=55 // pred_region
          %s348 = sand.u32 %s34, 1
          %s349 = scalar_lea.sflag [#allocation3], %s348
          %s350 = sand.u32 %s34, 1
          %s351 = smul.addr %s350, 128
          %s352 = scalar_lea.vmem [#allocation2], %s351
          %s353 = smul.u32 16, %s24
          %s355 = ssub.s32 2048, 2048
          %356 = vsyncadd %s349, %s355
          %s357 = smul.addr %s353, 128
          %s358 = scalar_lea.hbm %s0, %s357
          %s359 = sshll.u32 %s352, 4
          %s360 = int_to_ptr.vmem [resolvable:$true] %s359
          %365 = dma.hbm_to_vmem [thread:$0]  %s358, 2048, %s360, %s349, 128, 128, 8
        $region60: #{tpu_custom_call.1} parent=55 // pred_fallthru
          _
      $region56: #{tpu_custom_call.1} parent=5 // pred_fallthru
        _
      %p366 = scmp.le.s32.totalorder 1, %s24
      %p367 = scmp.lt.s32.totalorder %s24, 5
      %p368 = pnand %p366, %p367
      %p369 = pneg %p368
      // Predicated region
      $region61: #{tpu_custom_call.1} parent=5 // pred_check
        _
      $region62: #{tpu_custom_call.1} parent=5 // pred_check_branch
        %371 = sbr.rel (%p368) target = $region64
      $region63: #{tpu_custom_call.1} parent=5 // pred_region
        %s372 = ssub.s32 %s24, 1
        %s373 = sand.u32 %s37, 1
        %s374 = scalar_lea.sflag [#allocation3], %s373
        %s375 = sand.u32 %s37, 1
        %s376 = smul.addr %s375, 128
        %s377 = scalar_lea.vmem [#allocation2], %s376
        // Predicated region
        $region65: #{tpu_custom_call.1} parent=63 // pred_check
          %p378 = pneg %p50
        $region66: #{tpu_custom_call.1} parent=63 // pred_check_branch
          %380 = sbr.rel (%p378) target = $region68
        $region67: #{tpu_custom_call.1} parent=63 // pred_region
          %381 = dma.done %s374, 2048
        $region68: #{tpu_custom_call.1} parent=63 // pred_fallthru
          _
        // Predicated region
        $region69: #{tpu_custom_call.1} parent=63 // pred_check
          %p382 = pneg %p197
        $region70: #{tpu_custom_call.1} parent=63 // pred_check_branch
          %384 = sbr.rel (%p382) target = $region72
        $region71: #{tpu_custom_call.1} parent=63 // pred_region
          %385 = dma.done [#allocation6], 1024
        $region72: #{tpu_custom_call.1} parent=63 // pred_fallthru
          _
        %s386 = sand.u32 %s37, 1
        %s387 = scalar_lea.sflag [#allocation3], %s386
        %s388 = sand.u32 %s37, 1
        %s389 = smul.addr %s388, 128
        %s390 = scalar_lea.vmem [#allocation2], %s389
        %p391 = pneg %p50
        %p392 = pneg %p47
        %p393 = pneg %p71
        %p394 = pneg %p68
        %p395 = pneg %p92
        %p396 = pneg %p89
        %p397 = pneg %p113
        %p398 = pneg %p110
        %p399 = pneg %p134
        %p400 = pneg %p131
        %p401 = pneg %p155
        %p402 = pneg %p152
        %p403 = pneg %p176
        %p404 = pneg %p173
        %p405 = pneg %p197
        %p406 = pneg %p194
        %p407 = pneg %p218
        %p408 = pneg %p215
        %p409 = pneg %p239
        %p410 = pneg %p236
        %p411 = pneg %p260
        %p412 = pneg %p257
        %p413 = pneg %p286
        %p414 = pneg %p283
        %s415 = sand.u32 %s273, 1
        %s416 = scalar_lea.sflag [#allocation4], %s415
        %s417 = sand.u32 %s273, 1
        %s418 = smul.addr %s417, 128
        %s419 = scalar_lea.vmem [#allocation7], %s418
        %s420 = smul.u32 16, %s29
        %s421 = smul.u32 16, %s29
        %v423 = vld [vmem:[%s377] sm:$0xff]
        %v424 = vld [vmem:[%s377 + $0x8] sm:$0xff]
        %v425 = vld [vmem:[%s377 + $0x10] sm:$0xff]
        %v426 = vld [vmem:[%s377 + $0x18] sm:$0xff]
        %v427 = vld [vmem:[%s377 + $0x20] sm:$0xff]
        %v428 = vld [vmem:[%s377 + $0x28] sm:$0xff]
        %v429 = vld [vmem:[%s377 + $0x30] sm:$0xff]
        %v430 = vld [vmem:[%s377 + $0x38] sm:$0xff]
        %v431 = vld [vmem:[%s377 + $0x40] sm:$0xff]
        %v432 = vld [vmem:[%s377 + $0x48] sm:$0xff]
        %v433 = vld [vmem:[%s377 + $0x50] sm:$0xff]
        %v434 = vld [vmem:[%s377 + $0x58] sm:$0xff]
        %v435 = vld [vmem:[%s377 + $0x60] sm:$0xff]
        %v436 = vld [vmem:[%s377 + $0x68] sm:$0xff]
        %v437 = vld [vmem:[%s377 + $0x70] sm:$0xff]
        %v438 = vld [vmem:[%s377 + $0x78] sm:$0xff]
        %v439 = vld [vmem:[%s2] sm:$0xff]
        %441 = vset.pattern.permute.xlu0 0
        %442 = vperm.xlu0 %441, %v439
        %v443 = vpop.permute.xlu0 %442
        %v445 = vadd.f32 %v423, %v443
        %v446 = vadd.f32 %v424, %v443
        %v447 = vadd.f32 %v425, %v443
        %v448 = vadd.f32 %v426, %v443
        %v449 = vadd.f32 %v427, %v443
        %v450 = vadd.f32 %v428, %v443
        %v451 = vadd.f32 %v429, %v443
        %v452 = vadd.f32 %v430, %v443
        %v453 = vadd.f32 %v431, %v443
        %v454 = vadd.f32 %v432, %v443
        %v455 = vadd.f32 %v433, %v443
        %v456 = vadd.f32 %v434, %v443
        %v457 = vadd.f32 %v435, %v443
        %v458 = vadd.f32 %v436, %v443
        %v459 = vadd.f32 %v437, %v443
        %v460 = vadd.f32 %v438, %v443
        %v461 = vld [vmem:[%s1] sm:$0xff]
        %463 = vset.pattern.permute.xlu0 0
        %464 = vperm.xlu0 %463, %v461
        %v465 = vpop.permute.xlu0 %464
        %v467 = vlaneseq
        %v468 = vshrl.u32 %v467, 7
        %v469 = vsub.s32 0, %v468
        %v470 = vrot.slane %v423, %v469
        %v471 = vlaneseq
        %v472 = vshrl.u32 %v471, 7
        %v473 = vsub.s32 0, %v472
        %v474 = vrot.slane %v424, %v473
        %v475 = vlaneseq
        %v476 = vshrl.u32 %v475, 7
        %v477 = vsub.s32 0, %v476
        %v478 = vrot.slane %v425, %v477
        %v479 = vlaneseq
        %v480 = vshrl.u32 %v479, 7
        %v481 = vsub.s32 0, %v480
        %v482 = vrot.slane %v426, %v481
        %v483 = vlaneseq
        %v484 = vshrl.u32 %v483, 7
        %v485 = vsub.s32 0, %v484
        %v486 = vrot.slane %v427, %v485
        %v487 = vlaneseq
        %v488 = vshrl.u32 %v487, 7
        %v489 = vsub.s32 0, %v488
        %v490 = vrot.slane %v428, %v489
        %v491 = vlaneseq
        %v492 = vshrl.u32 %v491, 7
        %v493 = vsub.s32 0, %v492
        %v494 = vrot.slane %v429, %v493
        %v495 = vlaneseq
        %v496 = vshrl.u32 %v495, 7
        %v497 = vsub.s32 0, %v496
        %v498 = vrot.slane %v430, %v497
        %v499 = vlaneseq
        %v500 = vshrl.u32 %v499, 7
        %v501 = vsub.s32 0, %v500
        %v502 = vrot.slane %v431, %v501
        %v503 = vlaneseq
        %v504 = vshrl.u32 %v503, 7
        %v505 = vsub.s32 0, %v504
        %v506 = vrot.slane %v432, %v505
        %v507 = vlaneseq
        %v508 = vshrl.u32 %v507, 7
        %v509 = vsub.s32 0, %v508
        %v510 = vrot.slane %v433, %v509
        %v511 = vlaneseq
        %v512 = vshrl.u32 %v511, 7
        %v513 = vsub.s32 0, %v512
        %v514 = vrot.slane %v434, %v513
        %v515 = vlaneseq
        %v516 = vshrl.u32 %v515, 7
        %v517 = vsub.s32 0, %v516
        %v518 = vrot.slane %v435, %v517
        %v519 = vlaneseq
        %v520 = vshrl.u32 %v519, 7
        %v521 = vsub.s32 0, %v520
        %v522 = vrot.slane %v436, %v521
        %v523 = vlaneseq
        %v524 = vshrl.u32 %v523, 7
        %v525 = vsub.s32 0, %v524
        %v526 = vrot.slane %v437, %v525
        %v527 = vlaneseq
        %v528 = vshrl.u32 %v527, 7
        %v529 = vsub.s32 0, %v528
        %v530 = vrot.slane %v438, %v529
        %v531 = vmul.f32 %v465, %v470
        %v532 = vmul.f32 %v465, %v474
        %v533 = vmul.f32 %v465, %v478
        %v534 = vmul.f32 %v465, %v482
        %v535 = vmul.f32 %v465, %v486
        %v536 = vmul.f32 %v465, %v490
        %v537 = vmul.f32 %v465, %v494
        %v538 = vmul.f32 %v465, %v498
        %v539 = vmul.f32 %v465, %v502
        %v540 = vmul.f32 %v465, %v506
        %v541 = vmul.f32 %v465, %v510
        %v542 = vmul.f32 %v465, %v514
        %v543 = vmul.f32 %v465, %v518
        %v544 = vmul.f32 %v465, %v522
        %v545 = vmul.f32 %v465, %v526
        %v546 = vmul.f32 %v465, %v530
        %v547 = vadd.f32 %v445, %v531
        %v548 = vadd.f32 %v446, %v532
        %v549 = vadd.f32 %v447, %v533
        %v550 = vadd.f32 %v448, %v534
        %v551 = vadd.f32 %v449, %v535
        %v552 = vadd.f32 %v450, %v536
        %v553 = vadd.f32 %v451, %v537
        %v554 = vadd.f32 %v452, %v538
        %v555 = vadd.f32 %v453, %v539
        %v556 = vadd.f32 %v454, %v540
        %v557 = vadd.f32 %v455, %v541
        %v558 = vadd.f32 %v456, %v542
        %v559 = vadd.f32 %v457, %v543
        %v560 = vadd.f32 %v458, %v544
        %v561 = vadd.f32 %v459, %v545
        %v562 = vadd.f32 %v460, %v546
        %s563 = scalar_lea.vmem %s1, 8
        %v564 = vld [vmem:[%s563] sm:$0xff]
        %566 = vset.pattern.permute.xlu0 0
        %567 = vperm.xlu0 %566, %v564
        %v568 = vpop.permute.xlu0 %567
        %v570 = vlaneseq
        %v571 = vshrl.u32 %v570, 7
        %v572 = vsub.s32 1, %v571
        %v573 = vrot.slane %v423, %v572
        %v574 = vlaneseq
        %v575 = vshrl.u32 %v574, 7
        %v576 = vsub.s32 1, %v575
        %v577 = vrot.slane %v424, %v576
        %v578 = vlaneseq
        %v579 = vshrl.u32 %v578, 7
        %v580 = vsub.s32 1, %v579
        %v581 = vrot.slane %v425, %v580
        %v582 = vlaneseq
        %v583 = vshrl.u32 %v582, 7
        %v584 = vsub.s32 1, %v583
        %v585 = vrot.slane %v426, %v584
        %v586 = vlaneseq
        %v587 = vshrl.u32 %v586, 7
        %v588 = vsub.s32 1, %v587
        %v589 = vrot.slane %v427, %v588
        %v590 = vlaneseq
        %v591 = vshrl.u32 %v590, 7
        %v592 = vsub.s32 1, %v591
        %v593 = vrot.slane %v428, %v592
        %v594 = vlaneseq
        %v595 = vshrl.u32 %v594, 7
        %v596 = vsub.s32 1, %v595
        %v597 = vrot.slane %v429, %v596
        %v598 = vlaneseq
        %v599 = vshrl.u32 %v598, 7
        %v600 = vsub.s32 1, %v599
        %v601 = vrot.slane %v430, %v600
        %v602 = vlaneseq
        %v603 = vshrl.u32 %v602, 7
        %v604 = vsub.s32 1, %v603
        %v605 = vrot.slane %v431, %v604
        %v606 = vlaneseq
        %v607 = vshrl.u32 %v606, 7
        %v608 = vsub.s32 1, %v607
        %v609 = vrot.slane %v432, %v608
        %v610 = vlaneseq
        %v611 = vshrl.u32 %v610, 7
        %v612 = vsub.s32 1, %v611
        %v613 = vrot.slane %v433, %v612
        %v614 = vlaneseq
        %v615 = vshrl.u32 %v614, 7
        %v616 = vsub.s32 1, %v615
        %v617 = vrot.slane %v434, %v616
        %v618 = vlaneseq
        %v619 = vshrl.u32 %v618, 7
        %v620 = vsub.s32 1, %v619
        %v621 = vrot.slane %v435, %v620
        %v622 = vlaneseq
        %v623 = vshrl.u32 %v622, 7
        %v624 = vsub.s32 1, %v623
        %v625 = vrot.slane %v436, %v624
        %v626 = vlaneseq
        %v627 = vshrl.u32 %v626, 7
        %v628 = vsub.s32 1, %v627
        %v629 = vrot.slane %v437, %v628
        %v630 = vlaneseq
        %v631 = vshrl.u32 %v630, 7
        %v632 = vsub.s32 1, %v631
        %v633 = vrot.slane %v438, %v632
        %v634 = vmul.f32 %v568, %v573
        %v635 = vmul.f32 %v568, %v577
        %v636 = vmul.f32 %v568, %v581
        %v637 = vmul.f32 %v568, %v585
        %v638 = vmul.f32 %v568, %v589
        %v639 = vmul.f32 %v568, %v593
        %v640 = vmul.f32 %v568, %v597
        %v641 = vmul.f32 %v568, %v601
        %v642 = vmul.f32 %v568, %v605
        %v643 = vmul.f32 %v568, %v609
        %v644 = vmul.f32 %v568, %v613
        %v645 = vmul.f32 %v568, %v617
        %v646 = vmul.f32 %v568, %v621
        %v647 = vmul.f32 %v568, %v625
        %v648 = vmul.f32 %v568, %v629
        %v649 = vmul.f32 %v568, %v633
        %v650 = vadd.f32 %v547, %v634
        %v651 = vadd.f32 %v548, %v635
        %v652 = vadd.f32 %v549, %v636
        %v653 = vadd.f32 %v550, %v637
        %v654 = vadd.f32 %v551, %v638
        %v655 = vadd.f32 %v552, %v639
        %v656 = vadd.f32 %v553, %v640
        %v657 = vadd.f32 %v554, %v641
        %v658 = vadd.f32 %v555, %v642
        %v659 = vadd.f32 %v556, %v643
        %v660 = vadd.f32 %v557, %v644
        %v661 = vadd.f32 %v558, %v645
        %v662 = vadd.f32 %v559, %v646
        %v663 = vadd.f32 %v560, %v647
        %v664 = vadd.f32 %v561, %v648
        %v665 = vadd.f32 %v562, %v649
        %s666 = scalar_lea.vmem %s1, 16
        %v667 = vld [vmem:[%s666] sm:$0xff]
        %669 = vset.pattern.permute.xlu0 0
        %670 = vperm.xlu0 %669, %v667
        %v671 = vpop.permute.xlu0 %670
        %v673 = vlaneseq
        %v674 = vshrl.u32 %v673, 7
        %v675 = vsub.s32 2, %v674
        %v676 = vrot.slane %v423, %v675
        %v677 = vlaneseq
        %v678 = vshrl.u32 %v677, 7
        %v679 = vsub.s32 2, %v678
        %v680 = vrot.slane %v424, %v679
        %v681 = vlaneseq
        %v682 = vshrl.u32 %v681, 7
        %v683 = vsub.s32 2, %v682
        %v684 = vrot.slane %v425, %v683
        %v685 = vlaneseq
        %v686 = vshrl.u32 %v685, 7
        %v687 = vsub.s32 2, %v686
        %v688 = vrot.slane %v426, %v687
        %v689 = vlaneseq
        %v690 = vshrl.u32 %v689, 7
        %v691 = vsub.s32 2, %v690
        %v692 = vrot.slane %v427, %v691
        %v693 = vlaneseq
        %v694 = vshrl.u32 %v693, 7
        %v695 = vsub.s32 2, %v694
        %v696 = vrot.slane %v428, %v695
        %v697 = vlaneseq
        %v698 = vshrl.u32 %v697, 7
        %v699 = vsub.s32 2, %v698
        %v700 = vrot.slane %v429, %v699
        %v701 = vlaneseq
        %v702 = vshrl.u32 %v701, 7
        %v703 = vsub.s32 2, %v702
        %v704 = vrot.slane %v430, %v703
        %v705 = vlaneseq
        %v706 = vshrl.u32 %v705, 7
        %v707 = vsub.s32 2, %v706
        %v708 = vrot.slane %v431, %v707
        %v709 = vlaneseq
        %v710 = vshrl.u32 %v709, 7
        %v711 = vsub.s32 2, %v710
        %v712 = vrot.slane %v432, %v711
        %v713 = vlaneseq
        %v714 = vshrl.u32 %v713, 7
        %v715 = vsub.s32 2, %v714
        %v716 = vrot.slane %v433, %v715
        %v717 = vlaneseq
        %v718 = vshrl.u32 %v717, 7
        %v719 = vsub.s32 2, %v718
        %v720 = vrot.slane %v434, %v719
        %v721 = vlaneseq
        %v722 = vshrl.u32 %v721, 7
        %v723 = vsub.s32 2, %v722
        %v724 = vrot.slane %v435, %v723
        %v725 = vlaneseq
        %v726 = vshrl.u32 %v725, 7
        %v727 = vsub.s32 2, %v726
        %v728 = vrot.slane %v436, %v727
        %v729 = vlaneseq
        %v730 = vshrl.u32 %v729, 7
        %v731 = vsub.s32 2, %v730
        %v732 = vrot.slane %v437, %v731
        %v733 = vlaneseq
        %v734 = vshrl.u32 %v733, 7
        %v735 = vsub.s32 2, %v734
        %v736 = vrot.slane %v438, %v735
        %v737 = vmul.f32 %v671, %v676
        %v738 = vmul.f32 %v671, %v680
        %v739 = vmul.f32 %v671, %v684
        %v740 = vmul.f32 %v671, %v688
        %v741 = vmul.f32 %v671, %v692
        %v742 = vmul.f32 %v671, %v696
        %v743 = vmul.f32 %v671, %v700
        %v744 = vmul.f32 %v671, %v704
        %v745 = vmul.f32 %v671, %v708
        %v746 = vmul.f32 %v671, %v712
        %v747 = vmul.f32 %v671, %v716
        %v748 = vmul.f32 %v671, %v720
        %v749 = vmul.f32 %v671, %v724
        %v750 = vmul.f32 %v671, %v728
        %v751 = vmul.f32 %v671, %v732
        %v752 = vmul.f32 %v671, %v736
        %v753 = vadd.f32 %v650, %v737
        %v754 = vadd.f32 %v651, %v738
        %v755 = vadd.f32 %v652, %v739
        %v756 = vadd.f32 %v653, %v740
        %v757 = vadd.f32 %v654, %v741
        %v758 = vadd.f32 %v655, %v742
        %v759 = vadd.f32 %v656, %v743
        %v760 = vadd.f32 %v657, %v744
        %v761 = vadd.f32 %v658, %v745
        %v762 = vadd.f32 %v659, %v746
        %v763 = vadd.f32 %v660, %v747
        %v764 = vadd.f32 %v661, %v748
        %v765 = vadd.f32 %v662, %v749
        %v766 = vadd.f32 %v663, %v750
        %v767 = vadd.f32 %v664, %v751
        %v768 = vadd.f32 %v665, %v752
        %s769 = scalar_lea.vmem %s1, 24
        %v770 = vld [vmem:[%s769] sm:$0xff]
        %772 = vset.pattern.permute.xlu0 0
        %773 = vperm.xlu0 %772, %v770
        %v774 = vpop.permute.xlu0 %773
        %v776 = vlaneseq
        %v777 = vshrl.u32 %v776, 7
        %v778 = vsub.s32 3, %v777
        %v779 = vrot.slane %v423, %v778
        %v780 = vlaneseq
        %v781 = vshrl.u32 %v780, 7
        %v782 = vsub.s32 3, %v781
        %v783 = vrot.slane %v424, %v782
        %v784 = vlaneseq
        %v785 = vshrl.u32 %v784, 7
        %v786 = vsub.s32 3, %v785
        %v787 = vrot.slane %v425, %v786
        %v788 = vlaneseq
        %v789 = vshrl.u32 %v788, 7
        %v790 = vsub.s32 3, %v789
        %v791 = vrot.slane %v426, %v790
        %v792 = vlaneseq
        %v793 = vshrl.u32 %v792, 7
        %v794 = vsub.s32 3, %v793
        %v795 = vrot.slane %v427, %v794
        %v796 = vlaneseq
        %v797 = vshrl.u32 %v796, 7
        %v798 = vsub.s32 3, %v797
        %v799 = vrot.slane %v428, %v798
        %v800 = vlaneseq
        %v801 = vshrl.u32 %v800, 7
        %v802 = vsub.s32 3, %v801
        %v803 = vrot.slane %v429, %v802
        %v804 = vlaneseq
        %v805 = vshrl.u32 %v804, 7
        %v806 = vsub.s32 3, %v805
        %v807 = vrot.slane %v430, %v806
        %v808 = vlaneseq
        %v809 = vshrl.u32 %v808, 7
        %v810 = vsub.s32 3, %v809
        %v811 = vrot.slane %v431, %v810
        %v812 = vlaneseq
        %v813 = vshrl.u32 %v812, 7
        %v814 = vsub.s32 3, %v813
        %v815 = vrot.slane %v432, %v814
        %v816 = vlaneseq
        %v817 = vshrl.u32 %v816, 7
        %v818 = vsub.s32 3, %v817
        %v819 = vrot.slane %v433, %v818
        %v820 = vlaneseq
        %v821 = vshrl.u32 %v820, 7
        %v822 = vsub.s32 3, %v821
        %v823 = vrot.slane %v434, %v822
        %v824 = vlaneseq
        %v825 = vshrl.u32 %v824, 7
        %v826 = vsub.s32 3, %v825
        %v827 = vrot.slane %v435, %v826
        %v828 = vlaneseq
        %v829 = vshrl.u32 %v828, 7
        %v830 = vsub.s32 3, %v829
        %v831 = vrot.slane %v436, %v830
        %v832 = vlaneseq
        %v833 = vshrl.u32 %v832, 7
        %v834 = vsub.s32 3, %v833
        %v835 = vrot.slane %v437, %v834
        %v836 = vlaneseq
        %v837 = vshrl.u32 %v836, 7
        %v838 = vsub.s32 3, %v837
        %v839 = vrot.slane %v438, %v838
        %v840 = vmul.f32 %v774, %v779
        %v841 = vmul.f32 %v774, %v783
        %v842 = vmul.f32 %v774, %v787
        %v843 = vmul.f32 %v774, %v791
        %v844 = vmul.f32 %v774, %v795
        %v845 = vmul.f32 %v774, %v799
        %v846 = vmul.f32 %v774, %v803
        %v847 = vmul.f32 %v774, %v807
        %v848 = vmul.f32 %v774, %v811
        %v849 = vmul.f32 %v774, %v815
        %v850 = vmul.f32 %v774, %v819
        %v851 = vmul.f32 %v774, %v823
        %v852 = vmul.f32 %v774, %v827
        %v853 = vmul.f32 %v774, %v831
        %v854 = vmul.f32 %v774, %v835
        %v855 = vmul.f32 %v774, %v839
        %v856 = vadd.f32 %v753, %v840
        %v857 = vadd.f32 %v754, %v841
        %v858 = vadd.f32 %v755, %v842
        %v859 = vadd.f32 %v756, %v843
        %v860 = vadd.f32 %v757, %v844
        %v861 = vadd.f32 %v758, %v845
        %v862 = vadd.f32 %v759, %v846
        %v863 = vadd.f32 %v760, %v847
        %v864 = vadd.f32 %v761, %v848
        %v865 = vadd.f32 %v762, %v849
        %v866 = vadd.f32 %v763, %v850
        %v867 = vadd.f32 %v764, %v851
        %v868 = vadd.f32 %v765, %v852
        %v869 = vadd.f32 %v766, %v853
        %v870 = vadd.f32 %v767, %v854
        %v871 = vadd.f32 %v768, %v855
        %s872 = scalar_lea.vmem %s1, 32
        %v873 = vld [vmem:[%s872] sm:$0xff]
        %875 = vset.pattern.permute.xlu0 0
        %876 = vperm.xlu0 %875, %v873
        %v877 = vpop.permute.xlu0 %876
        %v879 = vlaneseq
        %v880 = vshrl.u32 %v879, 7
        %v881 = vsub.s32 4, %v880
        %v882 = vrot.slane %v423, %v881
        %v883 = vlaneseq
        %v884 = vshrl.u32 %v883, 7
        %v885 = vsub.s32 4, %v884
        %v886 = vrot.slane %v424, %v885
        %v887 = vlaneseq
        %v888 = vshrl.u32 %v887, 7
        %v889 = vsub.s32 4, %v888
        %v890 = vrot.slane %v425, %v889
        %v891 = vlaneseq
        %v892 = vshrl.u32 %v891, 7
        %v893 = vsub.s32 4, %v892
        %v894 = vrot.slane %v426, %v893
        %v895 = vlaneseq
        %v896 = vshrl.u32 %v895, 7
        %v897 = vsub.s32 4, %v896
        %v898 = vrot.slane %v427, %v897
        %v899 = vlaneseq
        %v900 = vshrl.u32 %v899, 7
        %v901 = vsub.s32 4, %v900
        %v902 = vrot.slane %v428, %v901
        %v903 = vlaneseq
        %v904 = vshrl.u32 %v903, 7
        %v905 = vsub.s32 4, %v904
        %v906 = vrot.slane %v429, %v905
        %v907 = vlaneseq
        %v908 = vshrl.u32 %v907, 7
        %v909 = vsub.s32 4, %v908
        %v910 = vrot.slane %v430, %v909
        %v911 = vlaneseq
        %v912 = vshrl.u32 %v911, 7
        %v913 = vsub.s32 4, %v912
        %v914 = vrot.slane %v431, %v913
        %v915 = vlaneseq
        %v916 = vshrl.u32 %v915, 7
        %v917 = vsub.s32 4, %v916
        %v918 = vrot.slane %v432, %v917
        %v919 = vlaneseq
        %v920 = vshrl.u32 %v919, 7
        %v921 = vsub.s32 4, %v920
        %v922 = vrot.slane %v433, %v921
        %v923 = vlaneseq
        %v924 = vshrl.u32 %v923, 7
        %v925 = vsub.s32 4, %v924
        %v926 = vrot.slane %v434, %v925
        %v927 = vlaneseq
        %v928 = vshrl.u32 %v927, 7
        %v929 = vsub.s32 4, %v928
        %v930 = vrot.slane %v435, %v929
        %v931 = vlaneseq
        %v932 = vshrl.u32 %v931, 7
        %v933 = vsub.s32 4, %v932
        %v934 = vrot.slane %v436, %v933
        %v935 = vlaneseq
        %v936 = vshrl.u32 %v935, 7
        %v937 = vsub.s32 4, %v936
        %v938 = vrot.slane %v437, %v937
        %v939 = vlaneseq
        %v940 = vshrl.u32 %v939, 7
        %v941 = vsub.s32 4, %v940
        %v942 = vrot.slane %v438, %v941
        %v943 = vmul.f32 %v877, %v882
        %v944 = vmul.f32 %v877, %v886
        %v945 = vmul.f32 %v877, %v890
        %v946 = vmul.f32 %v877, %v894
        %v947 = vmul.f32 %v877, %v898
        %v948 = vmul.f32 %v877, %v902
        %v949 = vmul.f32 %v877, %v906
        %v950 = vmul.f32 %v877, %v910
        %v951 = vmul.f32 %v877, %v914
        %v952 = vmul.f32 %v877, %v918
        %v953 = vmul.f32 %v877, %v922
        %v954 = vmul.f32 %v877, %v926
        %v955 = vmul.f32 %v877, %v930
        %v956 = vmul.f32 %v877, %v934
        %v957 = vmul.f32 %v877, %v938
        %v958 = vmul.f32 %v877, %v942
        %v959 = vadd.f32 %v856, %v943
        %v960 = vadd.f32 %v857, %v944
        %v961 = vadd.f32 %v858, %v945
        %v962 = vadd.f32 %v859, %v946
        %v963 = vadd.f32 %v860, %v947
        %v964 = vadd.f32 %v861, %v948
        %v965 = vadd.f32 %v862, %v949
        %v966 = vadd.f32 %v863, %v950
        %v967 = vadd.f32 %v864, %v951
        %v968 = vadd.f32 %v865, %v952
        %v969 = vadd.f32 %v866, %v953
        %v970 = vadd.f32 %v867, %v954
        %v971 = vadd.f32 %v868, %v955
        %v972 = vadd.f32 %v869, %v956
        %v973 = vadd.f32 %v870, %v957
        %v974 = vadd.f32 %v871, %v958
        %s975 = scalar_lea.vmem %s1, 40
        %v976 = vld [vmem:[%s975] sm:$0xff]
        %978 = vset.pattern.permute.xlu0 0
        %979 = vperm.xlu0 %978, %v976
        %v980 = vpop.permute.xlu0 %979
        %v982 = vlaneseq
        %v983 = vshrl.u32 %v982, 7
        %v984 = vsub.s32 5, %v983
        %v985 = vrot.slane %v423, %v984
        %v986 = vlaneseq
        %v987 = vshrl.u32 %v986, 7
        %v988 = vsub.s32 5, %v987
        %v989 = vrot.slane %v424, %v988
        %v990 = vlaneseq
        %v991 = vshrl.u32 %v990, 7
        %v992 = vsub.s32 5, %v991
        %v993 = vrot.slane %v425, %v992
        %v994 = vlaneseq
        %v995 = vshrl.u32 %v994, 7
        %v996 = vsub.s32 5, %v995
        %v997 = vrot.slane %v426, %v996
        %v998 = vlaneseq
        %v999 = vshrl.u32 %v998, 7
        %v1000 = vsub.s32 5, %v999
        %v1001 = vrot.slane %v427, %v1000
        %v1002 = vlaneseq
        %v1003 = vshrl.u32 %v1002, 7
        %v1004 = vsub.s32 5, %v1003
        %v1005 = vrot.slane %v428, %v1004
        %v1006 = vlaneseq
        %v1007 = vshrl.u32 %v1006, 7
        %v1008 = vsub.s32 5, %v1007
        %v1009 = vrot.slane %v429, %v1008
        %v1010 = vlaneseq
        %v1011 = vshrl.u32 %v1010, 7
        %v1012 = vsub.s32 5, %v1011
        %v1013 = vrot.slane %v430, %v1012
        %v1014 = vlaneseq
        %v1015 = vshrl.u32 %v1014, 7
        %v1016 = vsub.s32 5, %v1015
        %v1017 = vrot.slane %v431, %v1016
        %v1018 = vlaneseq
        %v1019 = vshrl.u32 %v1018, 7
        %v1020 = vsub.s32 5, %v1019
        %v1021 = vrot.slane %v432, %v1020
        %v1022 = vlaneseq
        %v1023 = vshrl.u32 %v1022, 7
        %v1024 = vsub.s32 5, %v1023
        %v1025 = vrot.slane %v433, %v1024
        %v1026 = vlaneseq
        %v1027 = vshrl.u32 %v1026, 7
        %v1028 = vsub.s32 5, %v1027
        %v1029 = vrot.slane %v434, %v1028
        %v1030 = vlaneseq
        %v1031 = vshrl.u32 %v1030, 7
        %v1032 = vsub.s32 5, %v1031
        %v1033 = vrot.slane %v435, %v1032
        %v1034 = vlaneseq
        %v1035 = vshrl.u32 %v1034, 7
        %v1036 = vsub.s32 5, %v1035
        %v1037 = vrot.slane %v436, %v1036
        %v1038 = vlaneseq
        %v1039 = vshrl.u32 %v1038, 7
        %v1040 = vsub.s32 5, %v1039
        %v1041 = vrot.slane %v437, %v1040
        %v1042 = vlaneseq
        %v1043 = vshrl.u32 %v1042, 7
        %v1044 = vsub.s32 5, %v1043
        %v1045 = vrot.slane %v438, %v1044
        %v1046 = vmul.f32 %v980, %v985
        %v1047 = vmul.f32 %v980, %v989
        %v1048 = vmul.f32 %v980, %v993
        %v1049 = vmul.f32 %v980, %v997
        %v1050 = vmul.f32 %v980, %v1001
        %v1051 = vmul.f32 %v980, %v1005
        %v1052 = vmul.f32 %v980, %v1009
        %v1053 = vmul.f32 %v980, %v1013
        %v1054 = vmul.f32 %v980, %v1017
        %v1055 = vmul.f32 %v980, %v1021
        %v1056 = vmul.f32 %v980, %v1025
        %v1057 = vmul.f32 %v980, %v1029
        %v1058 = vmul.f32 %v980, %v1033
        %v1059 = vmul.f32 %v980, %v1037
        %v1060 = vmul.f32 %v980, %v1041
        %v1061 = vmul.f32 %v980, %v1045
        %v1062 = vadd.f32 %v959, %v1046
        %v1063 = vadd.f32 %v960, %v1047
        %v1064 = vadd.f32 %v961, %v1048
        %v1065 = vadd.f32 %v962, %v1049
        %v1066 = vadd.f32 %v963, %v1050
        %v1067 = vadd.f32 %v964, %v1051
        %v1068 = vadd.f32 %v965, %v1052
        %v1069 = vadd.f32 %v966, %v1053
        %v1070 = vadd.f32 %v967, %v1054
        %v1071 = vadd.f32 %v968, %v1055
        %v1072 = vadd.f32 %v969, %v1056
        %v1073 = vadd.f32 %v970, %v1057
        %v1074 = vadd.f32 %v971, %v1058
        %v1075 = vadd.f32 %v972, %v1059
        %v1076 = vadd.f32 %v973, %v1060
        %v1077 = vadd.f32 %v974, %v1061
        %s1078 = scalar_lea.vmem %s1, 48
        %v1079 = vld [vmem:[%s1078] sm:$0xff]
        %1081 = vset.pattern.permute.xlu0 0
        %1082 = vperm.xlu0 %1081, %v1079
        %v1083 = vpop.permute.xlu0 %1082
        %v1085 = vlaneseq
        %v1086 = vshrl.u32 %v1085, 7
        %v1087 = vsub.s32 6, %v1086
        %v1088 = vrot.slane %v423, %v1087
        %v1089 = vlaneseq
        %v1090 = vshrl.u32 %v1089, 7
        %v1091 = vsub.s32 6, %v1090
        %v1092 = vrot.slane %v424, %v1091
        %v1093 = vlaneseq
        %v1094 = vshrl.u32 %v1093, 7
        %v1095 = vsub.s32 6, %v1094
        %v1096 = vrot.slane %v425, %v1095
        %v1097 = vlaneseq
        %v1098 = vshrl.u32 %v1097, 7
        %v1099 = vsub.s32 6, %v1098
        %v1100 = vrot.slane %v426, %v1099
        %v1101 = vlaneseq
        %v1102 = vshrl.u32 %v1101, 7
        %v1103 = vsub.s32 6, %v1102
        %v1104 = vrot.slane %v427, %v1103
        %v1105 = vlaneseq
        %v1106 = vshrl.u32 %v1105, 7
        %v1107 = vsub.s32 6, %v1106
        %v1108 = vrot.slane %v428, %v1107
        %v1109 = vlaneseq
        %v1110 = vshrl.u32 %v1109, 7
        %v1111 = vsub.s32 6, %v1110
        %v1112 = vrot.slane %v429, %v1111
        %v1113 = vlaneseq
        %v1114 = vshrl.u32 %v1113, 7
        %v1115 = vsub.s32 6, %v1114
        %v1116 = vrot.slane %v430, %v1115
        %v1117 = vlaneseq
        %v1118 = vshrl.u32 %v1117, 7
        %v1119 = vsub.s32 6, %v1118
        %v1120 = vrot.slane %v431, %v1119
        %v1121 = vlaneseq
        %v1122 = vshrl.u32 %v1121, 7
        %v1123 = vsub.s32 6, %v1122
        %v1124 = vrot.slane %v432, %v1123
        %v1125 = vlaneseq
        %v1126 = vshrl.u32 %v1125, 7
        %v1127 = vsub.s32 6, %v1126
        %v1128 = vrot.slane %v433, %v1127
        %v1129 = vlaneseq
        %v1130 = vshrl.u32 %v1129, 7
        %v1131 = vsub.s32 6, %v1130
        %v1132 = vrot.slane %v434, %v1131
        %v1133 = vlaneseq
        %v1134 = vshrl.u32 %v1133, 7
        %v1135 = vsub.s32 6, %v1134
        %v1136 = vrot.slane %v435, %v1135
        %v1137 = vlaneseq
        %v1138 = vshrl.u32 %v1137, 7
        %v1139 = vsub.s32 6, %v1138
        %v1140 = vrot.slane %v436, %v1139
        %v1141 = vlaneseq
        %v1142 = vshrl.u32 %v1141, 7
        %v1143 = vsub.s32 6, %v1142
        %v1144 = vrot.slane %v437, %v1143
        %v1145 = vlaneseq
        %v1146 = vshrl.u32 %v1145, 7
        %v1147 = vsub.s32 6, %v1146
        %v1148 = vrot.slane %v438, %v1147
        %v1149 = vmul.f32 %v1083, %v1088
        %v1150 = vmul.f32 %v1083, %v1092
        %v1151 = vmul.f32 %v1083, %v1096
        %v1152 = vmul.f32 %v1083, %v1100
        %v1153 = vmul.f32 %v1083, %v1104
        %v1154 = vmul.f32 %v1083, %v1108
        %v1155 = vmul.f32 %v1083, %v1112
        %v1156 = vmul.f32 %v1083, %v1116
        %v1157 = vmul.f32 %v1083, %v1120
        %v1158 = vmul.f32 %v1083, %v1124
        %v1159 = vmul.f32 %v1083, %v1128
        %v1160 = vmul.f32 %v1083, %v1132
        %v1161 = vmul.f32 %v1083, %v1136
        %v1162 = vmul.f32 %v1083, %v1140
        %v1163 = vmul.f32 %v1083, %v1144
        %v1164 = vmul.f32 %v1083, %v1148
        %v1165 = vadd.f32 %v1062, %v1149
        %v1166 = vadd.f32 %v1063, %v1150
        %v1167 = vadd.f32 %v1064, %v1151
        %v1168 = vadd.f32 %v1065, %v1152
        %v1169 = vadd.f32 %v1066, %v1153
        %v1170 = vadd.f32 %v1067, %v1154
        %v1171 = vadd.f32 %v1068, %v1155
        %v1172 = vadd.f32 %v1069, %v1156
        %v1173 = vadd.f32 %v1070, %v1157
        %v1174 = vadd.f32 %v1071, %v1158
        %v1175 = vadd.f32 %v1072, %v1159
        %v1176 = vadd.f32 %v1073, %v1160
        %v1177 = vadd.f32 %v1074, %v1161
        %v1178 = vadd.f32 %v1075, %v1162
        %v1179 = vadd.f32 %v1076, %v1163
        %v1180 = vadd.f32 %v1077, %v1164
        %s1181 = scalar_lea.vmem %s1, 56
        %v1182 = vld [vmem:[%s1181] sm:$0xff]
        %1184 = vset.pattern.permute.xlu0 0
        %1185 = vperm.xlu0 %1184, %v1182
        %v1186 = vpop.permute.xlu0 %1185
        %v1188 = vlaneseq
        %v1189 = vshrl.u32 %v1188, 7
        %v1190 = vsub.s32 7, %v1189
        %v1191 = vrot.slane %v423, %v1190
        %v1192 = vlaneseq
        %v1193 = vshrl.u32 %v1192, 7
        %v1194 = vsub.s32 7, %v1193
        %v1195 = vrot.slane %v424, %v1194
        %v1196 = vlaneseq
        %v1197 = vshrl.u32 %v1196, 7
        %v1198 = vsub.s32 7, %v1197
        %v1199 = vrot.slane %v425, %v1198
        %v1200 = vlaneseq
        %v1201 = vshrl.u32 %v1200, 7
        %v1202 = vsub.s32 7, %v1201
        %v1203 = vrot.slane %v426, %v1202
        %v1204 = vlaneseq
        %v1205 = vshrl.u32 %v1204, 7
        %v1206 = vsub.s32 7, %v1205
        %v1207 = vrot.slane %v427, %v1206
        %v1208 = vlaneseq
        %v1209 = vshrl.u32 %v1208, 7
        %v1210 = vsub.s32 7, %v1209
        %v1211 = vrot.slane %v428, %v1210
        %v1212 = vlaneseq
        %v1213 = vshrl.u32 %v1212, 7
        %v1214 = vsub.s32 7, %v1213
        %v1215 = vrot.slane %v429, %v1214
        %v1216 = vlaneseq
        %v1217 = vshrl.u32 %v1216, 7
        %v1218 = vsub.s32 7, %v1217
        %v1219 = vrot.slane %v430, %v1218
        %v1220 = vlaneseq
        %v1221 = vshrl.u32 %v1220, 7
        %v1222 = vsub.s32 7, %v1221
        %v1223 = vrot.slane %v431, %v1222
        %v1224 = vlaneseq
        %v1225 = vshrl.u32 %v1224, 7
        %v1226 = vsub.s32 7, %v1225
        %v1227 = vrot.slane %v432, %v1226
        %v1228 = vlaneseq
        %v1229 = vshrl.u32 %v1228, 7
        %v1230 = vsub.s32 7, %v1229
        %v1231 = vrot.slane %v433, %v1230
        %v1232 = vlaneseq
        %v1233 = vshrl.u32 %v1232, 7
        %v1234 = vsub.s32 7, %v1233
        %v1235 = vrot.slane %v434, %v1234
        %v1236 = vlaneseq
        %v1237 = vshrl.u32 %v1236, 7
        %v1238 = vsub.s32 7, %v1237
        %v1239 = vrot.slane %v435, %v1238
        %v1240 = vlaneseq
        %v1241 = vshrl.u32 %v1240, 7
        %v1242 = vsub.s32 7, %v1241
        %v1243 = vrot.slane %v436, %v1242
        %v1244 = vlaneseq
        %v1245 = vshrl.u32 %v1244, 7
        %v1246 = vsub.s32 7, %v1245
        %v1247 = vrot.slane %v437, %v1246
        %v1248 = vlaneseq
        %v1249 = vshrl.u32 %v1248, 7
        %v1250 = vsub.s32 7, %v1249
        %v1251 = vrot.slane %v438, %v1250
        %v1252 = vmul.f32 %v1186, %v1191
        %v1253 = vmul.f32 %v1186, %v1195
        %v1254 = vmul.f32 %v1186, %v1199
        %v1255 = vmul.f32 %v1186, %v1203
        %v1256 = vmul.f32 %v1186, %v1207
        %v1257 = vmul.f32 %v1186, %v1211
        %v1258 = vmul.f32 %v1186, %v1215
        %v1259 = vmul.f32 %v1186, %v1219
        %v1260 = vmul.f32 %v1186, %v1223
        %v1261 = vmul.f32 %v1186, %v1227
        %v1262 = vmul.f32 %v1186, %v1231
        %v1263 = vmul.f32 %v1186, %v1235
        %v1264 = vmul.f32 %v1186, %v1239
        %v1265 = vmul.f32 %v1186, %v1243
        %v1266 = vmul.f32 %v1186, %v1247
        %v1267 = vmul.f32 %v1186, %v1251
        %v1268 = vadd.f32 %v1165, %v1252
        %v1269 = vadd.f32 %v1166, %v1253
        %v1270 = vadd.f32 %v1167, %v1254
        %v1271 = vadd.f32 %v1168, %v1255
        %v1272 = vadd.f32 %v1169, %v1256
        %v1273 = vadd.f32 %v1170, %v1257
        %v1274 = vadd.f32 %v1171, %v1258
        %v1275 = vadd.f32 %v1172, %v1259
        %v1276 = vadd.f32 %v1173, %v1260
        %v1277 = vadd.f32 %v1174, %v1261
        %v1278 = vadd.f32 %v1175, %v1262
        %v1279 = vadd.f32 %v1176, %v1263
        %v1280 = vadd.f32 %v1177, %v1264
        %v1281 = vadd.f32 %v1178, %v1265
        %v1282 = vadd.f32 %v1179, %v1266
        %v1283 = vadd.f32 %v1180, %v1267
        %v1284 = vld [vmem:[%s3] sm:$0x1]
        %v1285 = vld [vmem:[%s4] sm:$0x1]
        %1286 = vadd.xlane.f32.xlu0 %v1268
        %v1287 = vpop.xlane.xlu0 %1286
        %1288 = vadd.xlane.f32.xlu0 %v1269
        %v1289 = vpop.xlane.xlu0 %1288
        %1290 = vadd.xlane.f32.xlu0 %v1270
        %v1291 = vpop.xlane.xlu0 %1290
        %1292 = vadd.xlane.f32.xlu0 %v1271
        %v1293 = vpop.xlane.xlu0 %1292
        %1294 = vadd.xlane.f32.xlu0 %v1272
        %v1295 = vpop.xlane.xlu0 %1294
        %1296 = vadd.xlane.f32.xlu0 %v1273
        %v1297 = vpop.xlane.xlu0 %1296
        %1298 = vadd.xlane.f32.xlu0 %v1274
        %v1299 = vpop.xlane.xlu0 %1298
        %1300 = vadd.xlane.f32.xlu0 %v1275
        %v1301 = vpop.xlane.xlu0 %1300
        %1302 = vadd.xlane.f32.xlu0 %v1276
        %v1303 = vpop.xlane.xlu0 %1302
        %1304 = vadd.xlane.f32.xlu0 %v1277
        %v1305 = vpop.xlane.xlu0 %1304
        %1306 = vadd.xlane.f32.xlu0 %v1278
        %v1307 = vpop.xlane.xlu0 %1306
        %1308 = vadd.xlane.f32.xlu0 %v1279
        %v1309 = vpop.xlane.xlu0 %1308
        %1310 = vadd.xlane.f32.xlu0 %v1280
        %v1311 = vpop.xlane.xlu0 %1310
        %1312 = vadd.xlane.f32.xlu0 %v1281
        %v1313 = vpop.xlane.xlu0 %1312
        %1314 = vadd.xlane.f32.xlu0 %v1282
        %v1315 = vpop.xlane.xlu0 %1314
        %1316 = vadd.xlane.f32.xlu0 %v1283
        %v1317 = vpop.xlane.xlu0 %1316
        %v1318 = vrcp.pop 128.0
        %v1319 = vmul.f32 %v1287, %v1318
        %v1320 = vmul.f32 %v1289, %v1318
        %v1321 = vmul.f32 %v1291, %v1318
        %v1322 = vmul.f32 %v1293, %v1318
        %v1323 = vmul.f32 %v1295, %v1318
        %v1324 = vmul.f32 %v1297, %v1318
        %v1325 = vmul.f32 %v1299, %v1318
        %v1326 = vmul.f32 %v1301, %v1318
        %v1327 = vmul.f32 %v1303, %v1318
        %v1328 = vmul.f32 %v1305, %v1318
        %v1329 = vmul.f32 %v1307, %v1318
        %v1330 = vmul.f32 %v1309, %v1318
        %v1331 = vmul.f32 %v1311, %v1318
        %v1332 = vmul.f32 %v1313, %v1318
        %v1333 = vmul.f32 %v1315, %v1318
        %v1334 = vmul.f32 %v1317, %v1318
        %v1335 = vsub.f32 %v1268, %v1319
        %v1336 = vsub.f32 %v1269, %v1320
        %v1337 = vsub.f32 %v1270, %v1321
        %v1338 = vsub.f32 %v1271, %v1322
        %v1339 = vsub.f32 %v1272, %v1323
        %v1340 = vsub.f32 %v1273, %v1324
        %v1341 = vsub.f32 %v1274, %v1325
        %v1342 = vsub.f32 %v1275, %v1326
        %v1343 = vsub.f32 %v1276, %v1327
        %v1344 = vsub.f32 %v1277, %v1328
        %v1345 = vsub.f32 %v1278, %v1329
        %v1346 = vsub.f32 %v1279, %v1330
        %v1347 = vsub.f32 %v1280, %v1331
        %v1348 = vsub.f32 %v1281, %v1332
        %v1349 = vsub.f32 %v1282, %v1333
        %v1350 = vsub.f32 %v1283, %v1334
        %v1351 = vmul.f32 %v1335, %v1335
        %v1352 = vmul.f32 %v1336, %v1336
        %v1353 = vmul.f32 %v1337, %v1337
        %v1354 = vmul.f32 %v1338, %v1338
        %v1355 = vmul.f32 %v1339, %v1339
        %v1356 = vmul.f32 %v1340, %v1340
        %v1357 = vmul.f32 %v1341, %v1341
        %v1358 = vmul.f32 %v1342, %v1342
        %v1359 = vmul.f32 %v1343, %v1343
        %v1360 = vmul.f32 %v1344, %v1344
        %v1361 = vmul.f32 %v1345, %v1345
        %v1362 = vmul.f32 %v1346, %v1346
        %v1363 = vmul.f32 %v1347, %v1347
        %v1364 = vmul.f32 %v1348, %v1348
        %v1365 = vmul.f32 %v1349, %v1349
        %v1366 = vmul.f32 %v1350, %v1350
        %1367 = vadd.xlane.f32.xlu0 %v1351
        %v1368 = vpop.xlane.xlu0 %1367
        %1369 = vadd.xlane.f32.xlu0 %v1352
        %v1370 = vpop.xlane.xlu0 %1369
        %1371 = vadd.xlane.f32.xlu0 %v1353
        %v1372 = vpop.xlane.xlu0 %1371
        %1373 = vadd.xlane.f32.xlu0 %v1354
        %v1374 = vpop.xlane.xlu0 %1373
        %1375 = vadd.xlane.f32.xlu0 %v1355
        %v1376 = vpop.xlane.xlu0 %1375
        %1377 = vadd.xlane.f32.xlu0 %v1356
        %v1378 = vpop.xlane.xlu0 %1377
        %1379 = vadd.xlane.f32.xlu0 %v1357
        %v1380 = vpop.xlane.xlu0 %1379
        %1381 = vadd.xlane.f32.xlu0 %v1358
        %v1382 = vpop.xlane.xlu0 %1381
        %1383 = vadd.xlane.f32.xlu0 %v1359
        %v1384 = vpop.xlane.xlu0 %1383
        %1385 = vadd.xlane.f32.xlu0 %v1360
        %v1386 = vpop.xlane.xlu0 %1385
        %1387 = vadd.xlane.f32.xlu0 %v1361
        %v1388 = vpop.xlane.xlu0 %1387
        %1389 = vadd.xlane.f32.xlu0 %v1362
        %v1390 = vpop.xlane.xlu0 %1389
        %1391 = vadd.xlane.f32.xlu0 %v1363
        %v1392 = vpop.xlane.xlu0 %1391
        %1393 = vadd.xlane.f32.xlu0 %v1364
        %v1394 = vpop.xlane.xlu0 %1393
        %1395 = vadd.xlane.f32.xlu0 %v1365
        %v1396 = vpop.xlane.xlu0 %1395
        %1397 = vadd.xlane.f32.xlu0 %v1366
        %v1398 = vpop.xlane.xlu0 %1397
        %v1399 = vmul.f32 %v1368, %v1318
        %v1400 = vmul.f32 %v1370, %v1318
        %v1401 = vmul.f32 %v1372, %v1318
        %v1402 = vmul.f32 %v1374, %v1318
        %v1403 = vmul.f32 %v1376, %v1318
        %v1404 = vmul.f32 %v1378, %v1318
        %v1405 = vmul.f32 %v1380, %v1318
        %v1406 = vmul.f32 %v1382, %v1318
        %v1407 = vmul.f32 %v1384, %v1318
        %v1408 = vmul.f32 %v1386, %v1318
        %v1409 = vmul.f32 %v1388, %v1318
        %v1410 = vmul.f32 %v1390, %v1318
        %v1411 = vmul.f32 %v1392, %v1318
        %v1412 = vmul.f32 %v1394, %v1318
        %v1413 = vmul.f32 %v1396, %v1318
        %v1414 = vmul.f32 %v1398, %v1318
        %v1415 = vadd.f32 %v1399, 1e-12
        %v1416 = vadd.f32 %v1400, 1e-12
        %v1417 = vadd.f32 %v1401, 1e-12
        %v1418 = vadd.f32 %v1402, 1e-12
        %v1419 = vadd.f32 %v1403, 1e-12
        %v1420 = vadd.f32 %v1404, 1e-12
        %v1421 = vadd.f32 %v1405, 1e-12
        %v1422 = vadd.f32 %v1406, 1e-12
        %v1423 = vadd.f32 %v1407, 1e-12
        %v1424 = vadd.f32 %v1408, 1e-12
        %v1425 = vadd.f32 %v1409, 1e-12
        %v1426 = vadd.f32 %v1410, 1e-12
        %v1427 = vadd.f32 %v1411, 1e-12
        %v1428 = vadd.f32 %v1412, 1e-12
        %v1429 = vadd.f32 %v1413, 1e-12
        %v1430 = vadd.f32 %v1414, 1e-12
        %v1431 = vrsqrt.pop %v1415
        %v1432 = vrsqrt.pop %v1416
        %v1433 = vrsqrt.pop %v1417
        %v1434 = vrsqrt.pop %v1418
        %v1435 = vrsqrt.pop %v1419
        %v1436 = vrsqrt.pop %v1420
        %v1437 = vrsqrt.pop %v1421
        %v1438 = vrsqrt.pop %v1422
        %v1439 = vrsqrt.pop %v1423
        %v1440 = vrsqrt.pop %v1424
        %v1441 = vrsqrt.pop %v1425
        %v1442 = vrsqrt.pop %v1426
        %v1443 = vrsqrt.pop %v1427
        %v1444 = vrsqrt.pop %v1428
        %v1445 = vrsqrt.pop %v1429
        %v1446 = vrsqrt.pop %v1430
        %v1447 = vmul.f32 %v1335, %v1431
        %v1448 = vmul.f32 %v1336, %v1432
        %v1449 = vmul.f32 %v1337, %v1433
        %v1450 = vmul.f32 %v1338, %v1434
        %v1451 = vmul.f32 %v1339, %v1435
        %v1452 = vmul.f32 %v1340, %v1436
        %v1453 = vmul.f32 %v1341, %v1437
        %v1454 = vmul.f32 %v1342, %v1438
        %v1455 = vmul.f32 %v1343, %v1439
        %v1456 = vmul.f32 %v1344, %v1440
        %v1457 = vmul.f32 %v1345, %v1441
        %v1458 = vmul.f32 %v1346, %v1442
        %v1459 = vmul.f32 %v1347, %v1443
        %v1460 = vmul.f32 %v1348, %v1444
        %v1461 = vmul.f32 %v1349, %v1445
        %v1462 = vmul.f32 %v1350, %v1446
        %v1464 = vlaneseq
        %v1465 = vshrl.u32 %v1464, 7
        %v1466 = vsub.s32 0, %v1465
        %v1467 = vrot.slane %v1284, %v1466
        %v1469 = vmul.f32 %v1447, %v1467
        %v1470 = vmul.f32 %v1448, %v1467
        %v1471 = vmul.f32 %v1449, %v1467
        %v1472 = vmul.f32 %v1450, %v1467
        %v1473 = vmul.f32 %v1451, %v1467
        %v1474 = vmul.f32 %v1452, %v1467
        %v1475 = vmul.f32 %v1453, %v1467
        %v1476 = vmul.f32 %v1454, %v1467
        %v1477 = vmul.f32 %v1455, %v1467
        %v1478 = vmul.f32 %v1456, %v1467
        %v1479 = vmul.f32 %v1457, %v1467
        %v1480 = vmul.f32 %v1458, %v1467
        %v1481 = vmul.f32 %v1459, %v1467
        %v1482 = vmul.f32 %v1460, %v1467
        %v1483 = vmul.f32 %v1461, %v1467
        %v1484 = vmul.f32 %v1462, %v1467
        %v1486 = vlaneseq
        %v1487 = vshrl.u32 %v1486, 7
        %v1488 = vsub.s32 0, %v1487
        %v1489 = vrot.slane %v1285, %v1488
        %v1491 = vadd.f32 %v1469, %v1489
        %v1492 = vadd.f32 %v1470, %v1489
        %v1493 = vadd.f32 %v1471, %v1489
        %v1494 = vadd.f32 %v1472, %v1489
        %v1495 = vadd.f32 %v1473, %v1489
        %v1496 = vadd.f32 %v1474, %v1489
        %v1497 = vadd.f32 %v1475, %v1489
        %v1498 = vadd.f32 %v1476, %v1489
        %v1499 = vadd.f32 %v1477, %v1489
        %v1500 = vadd.f32 %v1478, %v1489
        %v1501 = vadd.f32 %v1479, %v1489
        %v1502 = vadd.f32 %v1480, %v1489
        %v1503 = vadd.f32 %v1481, %v1489
        %v1504 = vadd.f32 %v1482, %v1489
        %v1505 = vadd.f32 %v1483, %v1489
        %v1506 = vadd.f32 %v1484, %v1489
        %v1507 = vpack.c.bf16 %v1492, %v1491
        %v1508 = vpack.c.bf16 %v1494, %v1493
        %v1509 = vpack.c.bf16 %v1496, %v1495
        %v1510 = vpack.c.bf16 %v1498, %v1497
        %v1511 = vpack.c.bf16 %v1500, %v1499
        %v1512 = vpack.c.bf16 %v1502, %v1501
        %v1513 = vpack.c.bf16 %v1504, %v1503
        %v1514 = vpack.c.bf16 %v1506, %v1505
        %v1515 = vld [vmem:[%s5] sm:$0xf]
        %v1516 = vld [vmem:[%s5 + $0x4] sm:$0xf]
        %v1517 = vld [vmem:[%s5 + $0x8] sm:$0xf]
        %v1518 = vld [vmem:[%s5 + $0xc] sm:$0xf]
        %v1519 = vld [vmem:[%s5 + $0x10] sm:$0xf]
        %v1520 = vld [vmem:[%s5 + $0x14] sm:$0xf]
        %v1521 = vld [vmem:[%s5 + $0x18] sm:$0xf]
        %v1522 = vld [vmem:[%s5 + $0x1c] sm:$0xf]
        %v1523 = vld [vmem:[%s5 + $0x20] sm:$0xf]
        %v1524 = vld [vmem:[%s5 + $0x24] sm:$0xf]
        %v1525 = vld [vmem:[%s5 + $0x28] sm:$0xf]
        %v1526 = vld [vmem:[%s5 + $0x2c] sm:$0xf]
        %v1527 = vld [vmem:[%s5 + $0x30] sm:$0xf]
        %v1528 = vld [vmem:[%s5 + $0x34] sm:$0xf]
        %v1529 = vld [vmem:[%s5 + $0x38] sm:$0xf]
        %v1530 = vld [vmem:[%s5 + $0x3c] sm:$0xf]
        %v1531 = vld [vmem:[%s6] sm:$0x1]
        %v1533 = vlaneseq
        %v1534 = vshrl.u32 %v1533, 7
        %v1535 = vsub.s32 0, %v1534
        %v1536 = vrot.slane %v1531, %v1535
        %v1554 = vunpack.c.l.b16 %v1515
        %v1555 = vunpack.c.l.b16 %v1516
        %v1556 = vunpack.c.l.b16 %v1517
        %v1557 = vunpack.c.l.b16 %v1518
        %v1558 = vunpack.c.l.b16 %v1519
        %v1559 = vunpack.c.l.b16 %v1520
        %v1560 = vunpack.c.l.b16 %v1521
        %v1561 = vunpack.c.l.b16 %v1522
        %v1562 = vunpack.c.l.b16 %v1523
        %v1563 = vunpack.c.l.b16 %v1524
        %v1564 = vunpack.c.l.b16 %v1525
        %v1565 = vunpack.c.l.b16 %v1526
        %v1566 = vunpack.c.l.b16 %v1527
        %v1567 = vunpack.c.l.b16 %v1528
        %v1568 = vunpack.c.l.b16 %v1529
        %v1569 = vunpack.c.l.b16 %v1530
        %v1570 = vpack.c.b16 %v1555, %v1554
        %v1571 = vpack.c.b16 %v1557, %v1556
        %v1572 = vpack.c.b16 %v1559, %v1558
        %v1573 = vpack.c.b16 %v1561, %v1560
        %v1574 = vpack.c.b16 %v1563, %v1562
        %v1575 = vpack.c.b16 %v1565, %v1564
        %v1576 = vpack.c.b16 %v1567, %v1566
        %v1577 = vpack.c.b16 %v1569, %v1568
        %1586 = vmatprep.subr.bf16.mxu0 0
        %1587 = vmatpush1.bf16.msra.mxu0 %v1577
        %1588 = vmatprep.subr.bf16.mxu0 0
        %1589 = vmatpush1.bf16.msra.mxu0 %v1576
        %1590 = vmatprep.subr.bf16.mxu0 0
        %1591 = vmatpush1.bf16.msra.mxu0 %v1575
        %1592 = vmatprep.subr.bf16.mxu0 0
        %1593 = vmatpush1.bf16.msra.mxu0 %v1574
        %1594 = vmatprep.subr.bf16.mxu0 0
        %1595 = vmatpush1.bf16.msra.mxu0 %v1573
        %1596 = vmatprep.subr.bf16.mxu0 0
        %1597 = vmatpush1.bf16.msra.mxu0 %v1572
        %1598 = vmatprep.subr.bf16.mxu0 0
        %1599 = vmatpush1.bf16.msra.mxu0 %v1571
        %1600 = vmatprep.subr.bf16.mxu0 0
        %1601 = vmatpush1.bf16.msra.mxu0 %v1570
        %1602 = vmatprep.subr.bf16.mxu0 0
        %1603 = vmatpush2.bf16.msra.mxu0 0
        %1604 = vmatprep.subr.bf16.mxu0 0
        %1605 = vmatpush2.bf16.msra.mxu0 0
        %1606 = vmatprep.subr.bf16.mxu0 0
        %1607 = vmatpush2.bf16.msra.mxu0 0
        %1608 = vmatprep.subr.bf16.mxu0 0
        %1609 = vmatpush2.bf16.msra.mxu0 0
        %1610 = vmatprep.subr.bf16.mxu0 0
        %1611 = vmatpush2.bf16.msra.mxu0 0
        %1612 = vmatprep.subr.bf16.mxu0 0
        %1613 = vmatpush2.bf16.msra.mxu0 0
        %1614 = vmatprep.subr.bf16.mxu0 0
        %1615 = vmatpush2.bf16.msra.mxu0 0
        %1616 = vmatprep.subr.bf16.mxu0 0
        %1617 = vmatpush2.bf16.msra.mxu0 0
        %1618 = vmatprep.mubr.bf16.mxu0 0
        %1619 = vmatmul.mubr.bf16.gmra.mxu0 %v1507
        %v1620 = vpop.f32.mrf.mxu0
        %v1621 = vadd.f32 %v1536, %v1620
        %v1622 = vpop.f32.mrf.mxu0
        %v1623 = vpop.f32.mrf.mxu0
        %v1624 = vadd.f32 %v1536, %v1623
        %v1625 = vpop.f32.mrf.mxu0
        %1626 = vmatprep.mubr.bf16.mxu0 0
        %1627 = vmatmul.mubr.bf16.gmra.mxu0 %v1508
        %v1628 = vpop.f32.mrf.mxu0
        %v1629 = vadd.f32 %v1536, %v1628
        %v1630 = vpop.f32.mrf.mxu0
        %v1631 = vpop.f32.mrf.mxu0
        %v1632 = vadd.f32 %v1536, %v1631
        %v1633 = vpop.f32.mrf.mxu0
        %1634 = vmatprep.mubr.bf16.mxu0 0
        %1635 = vmatmul.mubr.bf16.gmra.mxu0 %v1509
        %v1636 = vpop.f32.mrf.mxu0
        %v1637 = vadd.f32 %v1536, %v1636
        %v1638 = vpop.f32.mrf.mxu0
        %v1639 = vpop.f32.mrf.mxu0
        %v1640 = vadd.f32 %v1536, %v1639
        %v1641 = vpop.f32.mrf.mxu0
        %1642 = vmatprep.mubr.bf16.mxu0 0
        %1643 = vmatmul.mubr.bf16.gmra.mxu0 %v1510
        %v1644 = vpop.f32.mrf.mxu0
        %v1645 = vadd.f32 %v1536, %v1644
        %v1646 = vpop.f32.mrf.mxu0
        %v1647 = vpop.f32.mrf.mxu0
        %v1648 = vadd.f32 %v1536, %v1647
        %v1649 = vpop.f32.mrf.mxu0
        %1650 = vmatprep.mubr.bf16.mxu0 0
        %1651 = vmatmul.mubr.bf16.gmra.mxu0 %v1511
        %v1652 = vpop.f32.mrf.mxu0
        %v1653 = vadd.f32 %v1536, %v1652
        %v1654 = vpop.f32.mrf.mxu0
        %v1655 = vpop.f32.mrf.mxu0
        %v1656 = vadd.f32 %v1536, %v1655
        %v1657 = vpop.f32.mrf.mxu0
        %1658 = vmatprep.mubr.bf16.mxu0 0
        %1659 = vmatmul.mubr.bf16.gmra.mxu0 %v1512
        %v1660 = vpop.f32.mrf.mxu0
        %v1661 = vadd.f32 %v1536, %v1660
        %v1662 = vpop.f32.mrf.mxu0
        %v1663 = vpop.f32.mrf.mxu0
        %v1664 = vadd.f32 %v1536, %v1663
        %v1665 = vpop.f32.mrf.mxu0
        %1666 = vmatprep.mubr.bf16.mxu0 0
        %1667 = vmatmul.mubr.bf16.gmra.mxu0 %v1513
        %v1668 = vpop.f32.mrf.mxu0
        %v1669 = vadd.f32 %v1536, %v1668
        %v1670 = vpop.f32.mrf.mxu0
        %v1671 = vpop.f32.mrf.mxu0
        %v1672 = vadd.f32 %v1536, %v1671
        %v1673 = vpop.f32.mrf.mxu0
        %1674 = vmatprep.mubr.bf16.mxu0 0
        %1675 = vmatmul.mubr.bf16.gmra.mxu0 %v1514
        %v1676 = vpop.f32.mrf.mxu0
        %v1677 = vadd.f32 %v1536, %v1676
        %v1678 = vpop.f32.mrf.mxu0
        %v1679 = vpop.f32.mrf.mxu0
        %v1680 = vadd.f32 %v1536, %v1679
        %v1681 = vpop.f32.mrf.mxu0
        %1682 = vdwg.mxu0
        %v1683 = vmul.f32 %v1621, 0.5
        %v1684 = vmul.f32 %v1624, 0.5
        %v1685 = vmul.f32 %v1629, 0.5
        %v1686 = vmul.f32 %v1632, 0.5
        %v1687 = vmul.f32 %v1637, 0.5
        %v1688 = vmul.f32 %v1640, 0.5
        %v1689 = vmul.f32 %v1645, 0.5
        %v1690 = vmul.f32 %v1648, 0.5
        %v1691 = vmul.f32 %v1653, 0.5
        %v1692 = vmul.f32 %v1656, 0.5
        %v1693 = vmul.f32 %v1661, 0.5
        %v1694 = vmul.f32 %v1664, 0.5
        %v1695 = vmul.f32 %v1669, 0.5
        %v1696 = vmul.f32 %v1672, 0.5
        %v1697 = vmul.f32 %v1677, 0.5
        %v1698 = vmul.f32 %v1680, 0.5
        %v1699 = vmul.f32 %v1621, 0.70710677
        %v1700 = vmul.f32 %v1624, 0.70710677
        %v1701 = vmul.f32 %v1629, 0.70710677
        %v1702 = vmul.f32 %v1632, 0.70710677
        %v1703 = vmul.f32 %v1637, 0.70710677
        %v1704 = vmul.f32 %v1640, 0.70710677
        %v1705 = vmul.f32 %v1645, 0.70710677
        %v1706 = vmul.f32 %v1648, 0.70710677
        %v1707 = vmul.f32 %v1653, 0.70710677
        %v1708 = vmul.f32 %v1656, 0.70710677
        %v1709 = vmul.f32 %v1661, 0.70710677
        %v1710 = vmul.f32 %v1664, 0.70710677
        %v1711 = vmul.f32 %v1669, 0.70710677
        %v1712 = vmul.f32 %v1672, 0.70710677
        %v1713 = vmul.f32 %v1677, 0.70710677
        %v1714 = vmul.f32 %v1680, 0.70710677
        %v1715 = verf.f32.pop %v1699
        %v1716 = verf.f32.pop %v1700
        %v1717 = verf.f32.pop %v1701
        %v1718 = verf.f32.pop %v1702
        %v1719 = verf.f32.pop %v1703
        %v1720 = verf.f32.pop %v1704
        %v1721 = verf.f32.pop %v1705
        %v1722 = verf.f32.pop %v1706
        %v1723 = verf.f32.pop %v1707
        %v1724 = verf.f32.pop %v1708
        %v1725 = verf.f32.pop %v1709
        %v1726 = verf.f32.pop %v1710
        %v1727 = verf.f32.pop %v1711
        %v1728 = verf.f32.pop %v1712
        %v1729 = verf.f32.pop %v1713
        %v1730 = verf.f32.pop %v1714
        %v1731 = vadd.f32 %v1715, 1.0
        %v1732 = vadd.f32 %v1716, 1.0
        %v1733 = vadd.f32 %v1717, 1.0
        %v1734 = vadd.f32 %v1718, 1.0
        %v1735 = vadd.f32 %v1719, 1.0
        %v1736 = vadd.f32 %v1720, 1.0
        %v1737 = vadd.f32 %v1721, 1.0
        %v1738 = vadd.f32 %v1722, 1.0
        %v1739 = vadd.f32 %v1723, 1.0
        %v1740 = vadd.f32 %v1724, 1.0
        %v1741 = vadd.f32 %v1725, 1.0
        %v1742 = vadd.f32 %v1726, 1.0
        %v1743 = vadd.f32 %v1727, 1.0
        %v1744 = vadd.f32 %v1728, 1.0
        %v1745 = vadd.f32 %v1729, 1.0
        %v1746 = vadd.f32 %v1730, 1.0
        %v1747 = vmul.f32 %v1683, %v1731
        %v1748 = vmul.f32 %v1684, %v1732
        %v1749 = vmul.f32 %v1685, %v1733
        %v1750 = vmul.f32 %v1686, %v1734
        %v1751 = vmul.f32 %v1687, %v1735
        %v1752 = vmul.f32 %v1688, %v1736
        %v1753 = vmul.f32 %v1689, %v1737
        %v1754 = vmul.f32 %v1690, %v1738
        %v1755 = vmul.f32 %v1691, %v1739
        %v1756 = vmul.f32 %v1692, %v1740
        %v1757 = vmul.f32 %v1693, %v1741
        %v1758 = vmul.f32 %v1694, %v1742
        %v1759 = vmul.f32 %v1695, %v1743
        %v1760 = vmul.f32 %v1696, %v1744
        %v1761 = vmul.f32 %v1697, %v1745
        %v1762 = vmul.f32 %v1698, %v1746
        %v1763 = vpack.c.bf16 %v1748, %v1747
        %v1764 = vpack.c.bf16 %v1750, %v1749
        %v1765 = vpack.c.bf16 %v1752, %v1751
        %v1766 = vpack.c.bf16 %v1754, %v1753
        %v1767 = vpack.c.bf16 %v1756, %v1755
        %v1768 = vpack.c.bf16 %v1758, %v1757
        %v1769 = vpack.c.bf16 %v1760, %v1759
        %v1770 = vpack.c.bf16 %v1762, %v1761
        %v1771 = vld [vmem:[#allocation5] sm:$0xf]
        %v1772 = vld [vmem:[#allocation5 + $0x4] sm:$0xf]
        %v1773 = vld [vmem:[#allocation5 + $0x8] sm:$0xf]
        %v1774 = vld [vmem:[#allocation5 + $0xc] sm:$0xf]
        %v1775 = vld [vmem:[#allocation5 + $0x10] sm:$0xf]
        %v1776 = vld [vmem:[#allocation5 + $0x14] sm:$0xf]
        %v1777 = vld [vmem:[#allocation5 + $0x18] sm:$0xf]
        %v1778 = vld [vmem:[#allocation5 + $0x1c] sm:$0xf]
        %v1779 = vld [vmem:[#allocation5 + $0x20] sm:$0xf]
        %v1780 = vld [vmem:[#allocation5 + $0x24] sm:$0xf]
        %v1781 = vld [vmem:[#allocation5 + $0x28] sm:$0xf]
        %v1782 = vld [vmem:[#allocation5 + $0x2c] sm:$0xf]
        %v1783 = vld [vmem:[#allocation5 + $0x30] sm:$0xf]
        %v1784 = vld [vmem:[#allocation5 + $0x34] sm:$0xf]
        %v1785 = vld [vmem:[#allocation5 + $0x38] sm:$0xf]
        %v1786 = vld [vmem:[#allocation5 + $0x3c] sm:$0xf]
        %v1787 = vld [vmem:[%s8] sm:$0x1]
        %v1789 = vlaneseq
        %v1790 = vshrl.u32 %v1789, 7
        %v1791 = vsub.s32 0, %v1790
        %v1792 = vrot.slane %v1787, %v1791
        %v1810 = vunpack.c.l.b16 %v1771
        %v1811 = vunpack.c.l.b16 %v1772
        %v1812 = vunpack.c.l.b16 %v1773
        %v1813 = vunpack.c.l.b16 %v1774
        %v1814 = vunpack.c.l.b16 %v1775
        %v1815 = vunpack.c.l.b16 %v1776
        %v1816 = vunpack.c.l.b16 %v1777
        %v1817 = vunpack.c.l.b16 %v1778
        %v1818 = vunpack.c.l.b16 %v1779
        %v1819 = vunpack.c.l.b16 %v1780
        %v1820 = vunpack.c.l.b16 %v1781
        %v1821 = vunpack.c.l.b16 %v1782
        %v1822 = vunpack.c.l.b16 %v1783
        %v1823 = vunpack.c.l.b16 %v1784
        %v1824 = vunpack.c.l.b16 %v1785
        %v1825 = vunpack.c.l.b16 %v1786
        %v1826 = vpack.c.b16 %v1811, %v1810
        %v1827 = vpack.c.b16 %v1813, %v1812
        %v1828 = vpack.c.b16 %v1815, %v1814
        %v1829 = vpack.c.b16 %v1817, %v1816
        %v1830 = vpack.c.b16 %v1819, %v1818
        %v1831 = vpack.c.b16 %v1821, %v1820
        %v1832 = vpack.c.b16 %v1823, %v1822
        %v1833 = vpack.c.b16 %v1825, %v1824
        %1842 = vmatprep.subr.bf16.mxu0 0
        %1843 = vmatpush1.bf16.msra.mxu0 %v1833
        %1844 = vmatprep.subr.bf16.mxu0 0
        %1845 = vmatpush1.bf16.msra.mxu0 %v1832
        %1846 = vmatprep.subr.bf16.mxu0 0
        %1847 = vmatpush1.bf16.msra.mxu0 %v1831
        %1848 = vmatprep.subr.bf16.mxu0 0
        %1849 = vmatpush1.bf16.msra.mxu0 %v1830
        %1850 = vmatprep.subr.bf16.mxu0 0
        %1851 = vmatpush1.bf16.msra.mxu0 %v1829
        %1852 = vmatprep.subr.bf16.mxu0 0
        %1853 = vmatpush1.bf16.msra.mxu0 %v1828
        %1854 = vmatprep.subr.bf16.mxu0 0
        %1855 = vmatpush1.bf16.msra.mxu0 %v1827
        %1856 = vmatprep.subr.bf16.mxu0 0
        %1857 = vmatpush1.bf16.msra.mxu0 %v1826
        %1858 = vmatprep.subr.bf16.mxu0 0
        %1859 = vmatpush2.bf16.msra.mxu0 0
        %1860 = vmatprep.subr.bf16.mxu0 0
        %1861 = vmatpush2.bf16.msra.mxu0 0
        %1862 = vmatprep.subr.bf16.mxu0 0
        %1863 = vmatpush2.bf16.msra.mxu0 0
        %1864 = vmatprep.subr.bf16.mxu0 0
        %1865 = vmatpush2.bf16.msra.mxu0 0
        %1866 = vmatprep.subr.bf16.mxu0 0
        %1867 = vmatpush2.bf16.msra.mxu0 0
        %1868 = vmatprep.subr.bf16.mxu0 0
        %1869 = vmatpush2.bf16.msra.mxu0 0
        %1870 = vmatprep.subr.bf16.mxu0 0
        %1871 = vmatpush2.bf16.msra.mxu0 0
        %1872 = vmatprep.subr.bf16.mxu0 0
        %1873 = vmatpush2.bf16.msra.mxu0 0
        %1874 = vmatprep.mubr.bf16.mxu0 0
        %1875 = vmatmul.mubr.bf16.gmra.mxu0 %v1763
        %v1876 = vpop.f32.mrf.mxu0
        %v1877 = vadd.f32 %v1792, %v1876
        %v1878 = vpop.f32.mrf.mxu0
        %v1879 = vpop.f32.mrf.mxu0
        %v1880 = vadd.f32 %v1792, %v1879
        %v1881 = vpop.f32.mrf.mxu0
        %1882 = vmatprep.mubr.bf16.mxu0 0
        %1883 = vmatmul.mubr.bf16.gmra.mxu0 %v1764
        %v1884 = vpop.f32.mrf.mxu0
        %v1885 = vadd.f32 %v1792, %v1884
        %v1886 = vpop.f32.mrf.mxu0
        %v1887 = vpop.f32.mrf.mxu0
        %v1888 = vadd.f32 %v1792, %v1887
        %v1889 = vpop.f32.mrf.mxu0
        %1890 = vmatprep.mubr.bf16.mxu0 0
        %1891 = vmatmul.mubr.bf16.gmra.mxu0 %v1765
        %v1892 = vpop.f32.mrf.mxu0
        %v1893 = vadd.f32 %v1792, %v1892
        %v1894 = vpop.f32.mrf.mxu0
        %v1895 = vpop.f32.mrf.mxu0
        %v1896 = vadd.f32 %v1792, %v1895
        %v1897 = vpop.f32.mrf.mxu0
        %1898 = vmatprep.mubr.bf16.mxu0 0
        %1899 = vmatmul.mubr.bf16.gmra.mxu0 %v1766
        %v1900 = vpop.f32.mrf.mxu0
        %v1901 = vadd.f32 %v1792, %v1900
        %v1902 = vpop.f32.mrf.mxu0
        %v1903 = vpop.f32.mrf.mxu0
        %v1904 = vadd.f32 %v1792, %v1903
        %v1905 = vpop.f32.mrf.mxu0
        %1906 = vmatprep.mubr.bf16.mxu0 0
        %1907 = vmatmul.mubr.bf16.gmra.mxu0 %v1767
        %v1908 = vpop.f32.mrf.mxu0
        %v1909 = vadd.f32 %v1792, %v1908
        %v1910 = vpop.f32.mrf.mxu0
        %v1911 = vpop.f32.mrf.mxu0
        %v1912 = vadd.f32 %v1792, %v1911
        %v1913 = vpop.f32.mrf.mxu0
        %1914 = vmatprep.mubr.bf16.mxu0 0
        %1915 = vmatmul.mubr.bf16.gmra.mxu0 %v1768
        %v1916 = vpop.f32.mrf.mxu0
        %v1917 = vadd.f32 %v1792, %v1916
        %v1918 = vpop.f32.mrf.mxu0
        %v1919 = vpop.f32.mrf.mxu0
        %v1920 = vadd.f32 %v1792, %v1919
        %v1921 = vpop.f32.mrf.mxu0
        %1922 = vmatprep.mubr.bf16.mxu0 0
        %1923 = vmatmul.mubr.bf16.gmra.mxu0 %v1769
        %v1924 = vpop.f32.mrf.mxu0
        %v1925 = vadd.f32 %v1792, %v1924
        %v1926 = vpop.f32.mrf.mxu0
        %v1927 = vpop.f32.mrf.mxu0
        %v1928 = vadd.f32 %v1792, %v1927
        %v1929 = vpop.f32.mrf.mxu0
        %1930 = vmatprep.mubr.bf16.mxu0 0
        %1931 = vmatmul.mubr.bf16.gmra.mxu0 %v1770
        %v1932 = vpop.f32.mrf.mxu0
        %v1933 = vadd.f32 %v1792, %v1932
        %v1934 = vpop.f32.mrf.mxu0
        %v1935 = vpop.f32.mrf.mxu0
        %v1936 = vadd.f32 %v1792, %v1935
        %v1937 = vpop.f32.mrf.mxu0
        %1938 = vdwg.mxu0
        %v1939 = vadd.f32 %v1491, %v1877
        %v1940 = vadd.f32 %v1492, %v1880
        %v1941 = vadd.f32 %v1493, %v1885
        %v1942 = vadd.f32 %v1494, %v1888
        %v1943 = vadd.f32 %v1495, %v1893
        %v1944 = vadd.f32 %v1496, %v1896
        %v1945 = vadd.f32 %v1497, %v1901
        %v1946 = vadd.f32 %v1498, %v1904
        %v1947 = vadd.f32 %v1499, %v1909
        %v1948 = vadd.f32 %v1500, %v1912
        %v1949 = vadd.f32 %v1501, %v1917
        %v1950 = vadd.f32 %v1502, %v1920
        %v1951 = vadd.f32 %v1503, %v1925
        %v1952 = vadd.f32 %v1504, %v1928
        %v1953 = vadd.f32 %v1505, %v1933
        %v1954 = vadd.f32 %v1506, %v1936
        %v1955 = vld [vmem:[%s9] sm:$0x1]
        %v1956 = vld [vmem:[%s10] sm:$0x1]
        %1957 = vadd.xlane.f32.xlu0 %v1939
        %v1958 = vpop.xlane.xlu0 %1957
        %1959 = vadd.xlane.f32.xlu0 %v1940
        %v1960 = vpop.xlane.xlu0 %1959
        %1961 = vadd.xlane.f32.xlu0 %v1941
        %v1962 = vpop.xlane.xlu0 %1961
        %1963 = vadd.xlane.f32.xlu0 %v1942
        %v1964 = vpop.xlane.xlu0 %1963
        %1965 = vadd.xlane.f32.xlu0 %v1943
        %v1966 = vpop.xlane.xlu0 %1965
        %1967 = vadd.xlane.f32.xlu0 %v1944
        %v1968 = vpop.xlane.xlu0 %1967
        %1969 = vadd.xlane.f32.xlu0 %v1945
        %v1970 = vpop.xlane.xlu0 %1969
        %1971 = vadd.xlane.f32.xlu0 %v1946
        %v1972 = vpop.xlane.xlu0 %1971
        %1973 = vadd.xlane.f32.xlu0 %v1947
        %v1974 = vpop.xlane.xlu0 %1973
        %1975 = vadd.xlane.f32.xlu0 %v1948
        %v1976 = vpop.xlane.xlu0 %1975
        %1977 = vadd.xlane.f32.xlu0 %v1949
        %v1978 = vpop.xlane.xlu0 %1977
        %1979 = vadd.xlane.f32.xlu0 %v1950
        %v1980 = vpop.xlane.xlu0 %1979
        %1981 = vadd.xlane.f32.xlu0 %v1951
        %v1982 = vpop.xlane.xlu0 %1981
        %1983 = vadd.xlane.f32.xlu0 %v1952
        %v1984 = vpop.xlane.xlu0 %1983
        %1985 = vadd.xlane.f32.xlu0 %v1953
        %v1986 = vpop.xlane.xlu0 %1985
        %1987 = vadd.xlane.f32.xlu0 %v1954
        %v1988 = vpop.xlane.xlu0 %1987
        %v1989 = vmul.f32 %v1958, %v1318
        %v1990 = vmul.f32 %v1960, %v1318
        %v1991 = vmul.f32 %v1962, %v1318
        %v1992 = vmul.f32 %v1964, %v1318
        %v1993 = vmul.f32 %v1966, %v1318
        %v1994 = vmul.f32 %v1968, %v1318
        %v1995 = vmul.f32 %v1970, %v1318
        %v1996 = vmul.f32 %v1972, %v1318
        %v1997 = vmul.f32 %v1974, %v1318
        %v1998 = vmul.f32 %v1976, %v1318
        %v1999 = vmul.f32 %v1978, %v1318
        %v2000 = vmul.f32 %v1980, %v1318
        %v2001 = vmul.f32 %v1982, %v1318
        %v2002 = vmul.f32 %v1984, %v1318
        %v2003 = vmul.f32 %v1986, %v1318
        %v2004 = vmul.f32 %v1988, %v1318
        %v2005 = vsub.f32 %v1939, %v1989
        %v2006 = vsub.f32 %v1940, %v1990
        %v2007 = vsub.f32 %v1941, %v1991
        %v2008 = vsub.f32 %v1942, %v1992
        %v2009 = vsub.f32 %v1943, %v1993
        %v2010 = vsub.f32 %v1944, %v1994
        %v2011 = vsub.f32 %v1945, %v1995
        %v2012 = vsub.f32 %v1946, %v1996
        %v2013 = vsub.f32 %v1947, %v1997
        %v2014 = vsub.f32 %v1948, %v1998
        %v2015 = vsub.f32 %v1949, %v1999
        %v2016 = vsub.f32 %v1950, %v2000
        %v2017 = vsub.f32 %v1951, %v2001
        %v2018 = vsub.f32 %v1952, %v2002
        %v2019 = vsub.f32 %v1953, %v2003
        %v2020 = vsub.f32 %v1954, %v2004
        %v2021 = vmul.f32 %v2005, %v2005
        %v2022 = vmul.f32 %v2006, %v2006
        %v2023 = vmul.f32 %v2007, %v2007
        %v2024 = vmul.f32 %v2008, %v2008
        %v2025 = vmul.f32 %v2009, %v2009
        %v2026 = vmul.f32 %v2010, %v2010
        %v2027 = vmul.f32 %v2011, %v2011
        %v2028 = vmul.f32 %v2012, %v2012
        %v2029 = vmul.f32 %v2013, %v2013
        %v2030 = vmul.f32 %v2014, %v2014
        %v2031 = vmul.f32 %v2015, %v2015
        %v2032 = vmul.f32 %v2016, %v2016
        %v2033 = vmul.f32 %v2017, %v2017
        %v2034 = vmul.f32 %v2018, %v2018
        %v2035 = vmul.f32 %v2019, %v2019
        %v2036 = vmul.f32 %v2020, %v2020
        %2037 = vadd.xlane.f32.xlu0 %v2021
        %v2038 = vpop.xlane.xlu0 %2037
        %2039 = vadd.xlane.f32.xlu0 %v2022
        %v2040 = vpop.xlane.xlu0 %2039
        %2041 = vadd.xlane.f32.xlu0 %v2023
        %v2042 = vpop.xlane.xlu0 %2041
        %2043 = vadd.xlane.f32.xlu0 %v2024
        %v2044 = vpop.xlane.xlu0 %2043
        %2045 = vadd.xlane.f32.xlu0 %v2025
        %v2046 = vpop.xlane.xlu0 %2045
        %2047 = vadd.xlane.f32.xlu0 %v2026
        %v2048 = vpop.xlane.xlu0 %2047
        %2049 = vadd.xlane.f32.xlu0 %v2027
        %v2050 = vpop.xlane.xlu0 %2049
        %2051 = vadd.xlane.f32.xlu0 %v2028
        %v2052 = vpop.xlane.xlu0 %2051
        %2053 = vadd.xlane.f32.xlu0 %v2029
        %v2054 = vpop.xlane.xlu0 %2053
        %2055 = vadd.xlane.f32.xlu0 %v2030
        %v2056 = vpop.xlane.xlu0 %2055
        %2057 = vadd.xlane.f32.xlu0 %v2031
        %v2058 = vpop.xlane.xlu0 %2057
        %2059 = vadd.xlane.f32.xlu0 %v2032
        %v2060 = vpop.xlane.xlu0 %2059
        %2061 = vadd.xlane.f32.xlu0 %v2033
        %v2062 = vpop.xlane.xlu0 %2061
        %2063 = vadd.xlane.f32.xlu0 %v2034
        %v2064 = vpop.xlane.xlu0 %2063
        %2065 = vadd.xlane.f32.xlu0 %v2035
        %v2066 = vpop.xlane.xlu0 %2065
        %2067 = vadd.xlane.f32.xlu0 %v2036
        %v2068 = vpop.xlane.xlu0 %2067
        %v2069 = vmul.f32 %v2038, %v1318
        %v2070 = vmul.f32 %v2040, %v1318
        %v2071 = vmul.f32 %v2042, %v1318
        %v2072 = vmul.f32 %v2044, %v1318
        %v2073 = vmul.f32 %v2046, %v1318
        %v2074 = vmul.f32 %v2048, %v1318
        %v2075 = vmul.f32 %v2050, %v1318
        %v2076 = vmul.f32 %v2052, %v1318
        %v2077 = vmul.f32 %v2054, %v1318
        %v2078 = vmul.f32 %v2056, %v1318
        %v2079 = vmul.f32 %v2058, %v1318
        %v2080 = vmul.f32 %v2060, %v1318
        %v2081 = vmul.f32 %v2062, %v1318
        %v2082 = vmul.f32 %v2064, %v1318
        %v2083 = vmul.f32 %v2066, %v1318
        %v2084 = vmul.f32 %v2068, %v1318
        %v2085 = vadd.f32 %v2069, 1e-12
        %v2086 = vadd.f32 %v2070, 1e-12
        %v2087 = vadd.f32 %v2071, 1e-12
        %v2088 = vadd.f32 %v2072, 1e-12
        %v2089 = vadd.f32 %v2073, 1e-12
        %v2090 = vadd.f32 %v2074, 1e-12
        %v2091 = vadd.f32 %v2075, 1e-12
        %v2092 = vadd.f32 %v2076, 1e-12
        %v2093 = vadd.f32 %v2077, 1e-12
        %v2094 = vadd.f32 %v2078, 1e-12
        %v2095 = vadd.f32 %v2079, 1e-12
        %v2096 = vadd.f32 %v2080, 1e-12
        %v2097 = vadd.f32 %v2081, 1e-12
        %v2098 = vadd.f32 %v2082, 1e-12
        %v2099 = vadd.f32 %v2083, 1e-12
        %v2100 = vadd.f32 %v2084, 1e-12
        %v2101 = vrsqrt.pop %v2085
        %v2102 = vrsqrt.pop %v2086
        %v2103 = vrsqrt.pop %v2087
        %v2104 = vrsqrt.pop %v2088
        %v2105 = vrsqrt.pop %v2089
        %v2106 = vrsqrt.pop %v2090
        %v2107 = vrsqrt.pop %v2091
        %v2108 = vrsqrt.pop %v2092
        %v2109 = vrsqrt.pop %v2093
        %v2110 = vrsqrt.pop %v2094
        %v2111 = vrsqrt.pop %v2095
        %v2112 = vrsqrt.pop %v2096
        %v2113 = vrsqrt.pop %v2097
        %v2114 = vrsqrt.pop %v2098
        %v2115 = vrsqrt.pop %v2099
        %v2116 = vrsqrt.pop %v2100
        %v2117 = vmul.f32 %v2005, %v2101
        %v2118 = vmul.f32 %v2006, %v2102
        %v2119 = vmul.f32 %v2007, %v2103
        %v2120 = vmul.f32 %v2008, %v2104
        %v2121 = vmul.f32 %v2009, %v2105
        %v2122 = vmul.f32 %v2010, %v2106
        %v2123 = vmul.f32 %v2011, %v2107
        %v2124 = vmul.f32 %v2012, %v2108
        %v2125 = vmul.f32 %v2013, %v2109
        %v2126 = vmul.f32 %v2014, %v2110
        %v2127 = vmul.f32 %v2015, %v2111
        %v2128 = vmul.f32 %v2016, %v2112
        %v2129 = vmul.f32 %v2017, %v2113
        %v2130 = vmul.f32 %v2018, %v2114
        %v2131 = vmul.f32 %v2019, %v2115
        %v2132 = vmul.f32 %v2020, %v2116
        %v2134 = vlaneseq
        %v2135 = vshrl.u32 %v2134, 7
        %v2136 = vsub.s32 0, %v2135
        %v2137 = vrot.slane %v1955, %v2136
        %v2139 = vmul.f32 %v2117, %v2137
        %v2140 = vmul.f32 %v2118, %v2137
        %v2141 = vmul.f32 %v2119, %v2137
        %v2142 = vmul.f32 %v2120, %v2137
        %v2143 = vmul.f32 %v2121, %v2137
        %v2144 = vmul.f32 %v2122, %v2137
        %v2145 = vmul.f32 %v2123, %v2137
        %v2146 = vmul.f32 %v2124, %v2137
        %v2147 = vmul.f32 %v2125, %v2137
        %v2148 = vmul.f32 %v2126, %v2137
        %v2149 = vmul.f32 %v2127, %v2137
        %v2150 = vmul.f32 %v2128, %v2137
        %v2151 = vmul.f32 %v2129, %v2137
        %v2152 = vmul.f32 %v2130, %v2137
        %v2153 = vmul.f32 %v2131, %v2137
        %v2154 = vmul.f32 %v2132, %v2137
        %v2156 = vlaneseq
        %v2157 = vshrl.u32 %v2156, 7
        %v2158 = vsub.s32 0, %v2157
        %v2159 = vrot.slane %v1956, %v2158
        %v2161 = vadd.f32 %v2139, %v2159
        %v2162 = vadd.f32 %v2140, %v2159
        %v2163 = vadd.f32 %v2141, %v2159
        %v2164 = vadd.f32 %v2142, %v2159
        %v2165 = vadd.f32 %v2143, %v2159
        %v2166 = vadd.f32 %v2144, %v2159
        %v2167 = vadd.f32 %v2145, %v2159
        %v2168 = vadd.f32 %v2146, %v2159
        %v2169 = vadd.f32 %v2147, %v2159
        %v2170 = vadd.f32 %v2148, %v2159
        %v2171 = vadd.f32 %v2149, %v2159
        %v2172 = vadd.f32 %v2150, %v2159
        %v2173 = vadd.f32 %v2151, %v2159
        %v2174 = vadd.f32 %v2152, %v2159
        %v2175 = vadd.f32 %v2153, %v2159
        %v2176 = vadd.f32 %v2154, %v2159
        %2177 = vst [vmem:[%s419] sm:$0xff] %v2161
        %2178 = vst [vmem:[%s419 + $0x8] sm:$0xff] %v2162
        %2179 = vst [vmem:[%s419 + $0x10] sm:$0xff] %v2163
        %2180 = vst [vmem:[%s419 + $0x18] sm:$0xff] %v2164
        %2181 = vst [vmem:[%s419 + $0x20] sm:$0xff] %v2165
        %2182 = vst [vmem:[%s419 + $0x28] sm:$0xff] %v2166
        %2183 = vst [vmem:[%s419 + $0x30] sm:$0xff] %v2167
        %2184 = vst [vmem:[%s419 + $0x38] sm:$0xff] %v2168
        %2185 = vst [vmem:[%s419 + $0x40] sm:$0xff] %v2169
        %2186 = vst [vmem:[%s419 + $0x48] sm:$0xff] %v2170
        %2187 = vst [vmem:[%s419 + $0x50] sm:$0xff] %v2171
        %2188 = vst [vmem:[%s419 + $0x58] sm:$0xff] %v2172
        %2189 = vst [vmem:[%s419 + $0x60] sm:$0xff] %v2173
        %2190 = vst [vmem:[%s419 + $0x68] sm:$0xff] %v2174
        %2191 = vst [vmem:[%s419 + $0x70] sm:$0xff] %v2175
        %2192 = vst [vmem:[%s419 + $0x78] sm:$0xff] %v2176
        %s2193 = sand.u32 %s273, 1
        %s2194 = scalar_lea.sflag [#allocation4], %s2193
        %s2195 = sand.u32 %s273, 1
        %s2196 = smul.addr %s2195, 128
        %s2197 = scalar_lea.vmem [#allocation7], %s2196
        // Predicated region
        $region73: #{tpu_custom_call.1} parent=63 // pred_check
          %p2198 = pneg %p283
        $region74: #{tpu_custom_call.1} parent=63 // pred_check_branch
          %2200 = sbr.rel (%p2198) target = $region76
        $region75: #{tpu_custom_call.1} parent=63 // pred_region
          %s2201 = smul.u32 16, %s29
          %s2203 = ssub.s32 2048, 2048
          %2204 = vsyncadd %s2194, %s2203
          %s2205 = smul.addr %s2201, 128
          %s2206 = scalar_lea.hbm %s11, %s2205
          %s2207 = sshll.u32 %s2197, 4
          %s2208 = int_to_ptr.vmem [resolvable:$true] %s2207
          %2213 = dma.vmem_to_hbm [thread:$0]  %s2208, 2048, %s2206, %s2194, 128, 128, 8
        $region76: #{tpu_custom_call.1} parent=63 // pred_fallthru
          _
      $region64: #{tpu_custom_call.1} parent=5 // pred_fallthru
        _
      %p2214 = scmp.le.s32.totalorder 2, %s24
      // Predicated region
      $region77: #{tpu_custom_call.1} parent=5 // pred_check
        %p2215 = pneg %p2214
      $region78: #{tpu_custom_call.1} parent=5 // pred_check_branch
        %2217 = sbr.rel (%p2215) target = $region80
      $region79: #{tpu_custom_call.1} parent=5 // pred_region
        %s2218 = ssub.s32 %s24, 2
        // Predicated region
        $region81: #{tpu_custom_call.1} parent=79 // pred_check
          %p2219 = pneg %p289
        $region82: #{tpu_custom_call.1} parent=79 // pred_check_branch
          %2221 = sbr.rel (%p2219) target = $region84
        $region83: #{tpu_custom_call.1} parent=79 // pred_region
          %s2222 = sand.u32 %s274, 1
          %s2223 = scalar_lea.sflag [#allocation4], %s2222
          %s2224 = sand.u32 %s274, 1
          %s2225 = smul.addr %s2224, 128
          %s2226 = scalar_lea.vmem [#allocation7], %s2225
          %2227 = dma.done %s2223, 2048
        $region84: #{tpu_custom_call.1} parent=79 // pred_fallthru
          _
      $region80: #{tpu_custom_call.1} parent=5 // pred_fallthru
        _
    $region6: #{tpu_custom_call.1} parent=1 // loop_footer
      %s28 = sadd.s32 1, %s24
    $region7: #{tpu_custom_call.1} parent=1 // loop_footer_branch
      %23 = sbr.rel target = $region3
    $region8: #{tpu_custom_call.1} parent=1 // loop_exit
      _
    %2228 = vsyncpa [#allocation3], 1
    %s2229 = scalar_lea.sflag [#allocation3], 1
    %2230 = vsyncpa %s2229, 1
    %2231 = vsyncpa [#allocation6], 1
    %2232 = vsyncpa [#allocation4], 1
    %s2233 = scalar_lea.sflag [#allocation4], 1
    %2234 = vsyncpa %s2233, 1

// kernel: tpu_custom_call.1
$region0: #{tpu_custom_call.1}
  #allocation0 [shape = 'u32[]', space=smem, size = 0x4, offset = 0x4, fixed_abs, tag = 'smem constant byte address 0x4 - core index']
  #allocation1 [shape = 'u32[144,128]{1,0:T(1,128)}', space=vmem, size = 0x12000, scoped, tag = 'internal scratch']
  %s0 = inlined_call_operand.hbm [shape: f32[64,8,128], index: 0, kind: input, shape index: {}]
  %s1 = inlined_call_operand.vmem [shape: f32[8,8,1], index: 1, kind: input, shape index: {}]
  %s2 = inlined_call_operand.vmem [shape: f32[8,1], index: 2, kind: input, shape index: {}]
  %s3 = inlined_call_operand.vmem [shape: f32[1,128], index: 3, kind: input, shape index: {}]
  %s4 = inlined_call_operand.vmem [shape: f32[1,128], index: 4, kind: input, shape index: {}]
  %s5 = inlined_call_operand.vmem [shape: bf16[128,128], index: 5, kind: input, shape index: {}]
  %s6 = inlined_call_operand.vmem [shape: f32[1,128], index: 6, kind: input, shape index: {}]
  %s7 = inlined_call_operand.hbm [shape: bf16[128,128], index: 7, kind: input, shape index: {}]
  %s8 = inlined_call_operand.vmem [shape: f32[1,128], index: 8, kind: input, shape index: {}]
  %s9 = inlined_call_operand.vmem [shape: f32[1,128], index: 9, kind: input, shape index: {}]
  %s10 = inlined_call_operand.vmem [shape: f32[1,128], index: 10, kind: input, shape index: {}]
  %s11 = inlined_call_operand.hbm [shape: f32[64,8,128], index: 11, kind: output, shape index: {}]
  %s12 = sld [smem:[#allocation0]]
  $region85: #{tpu_custom_call.1} parent=0
    _
  %s14 = ssub.s32 1, %s12
  %s15 = scalar_select 0, %s14, %s12
  $region1: #{tpu_custom_call.1} parent=0
    #allocation2 [shape = 'u8[131072]{0}', space=vmem, size = 0x20000, scoped, tag = 'input window, operand 0']
    #allocation3 [shape = 's32[2]{0}', space=sflag, size = 0x8, scoped, tag = 'scoped memory for tpu_custom_call.1']
    #allocation4 [shape = 's32[2]{0}', space=sflag, size = 0x8, scoped, tag = 'scoped memory for tpu_custom_call.1']
    #allocation5 [shape = 'u8[32768]{0}', space=vmem, size = 0x8000, scoped, tag = 'input window, operand 7, single buffered']
    #allocation6 [shape = 's32[1]{0}', space=sflag, size = 0x4, scoped, tag = 'scoped memory for tpu_custom_call.1']
    #allocation7 [shape = 'u8[131072]{0}', space=vmem, size = 0x20000, scoped, tag = 'output window, operand 0']
    %16 = vsyncpa [#allocation3], 0
    %s17 = scalar_lea.sflag [#allocation3], 1
    %18 = vsyncpa %s17, 0
    %19 = vsyncpa [#allocation6], 0
    %20 = vsyncpa [#allocation4], 0
    %s21 = scalar_lea.sflag [#allocation4], 1
    %22 = vsyncpa %s21, 0
    loop: start=0, step=1, limit=6
    $region2: #{tpu_custom_call.1} parent=1 // loop_pre_header
      _
    $region3: #{tpu_custom_call.1} parent=1 // loop_header
      %s24 = sphi 0, %s28
      %p25 = scmp.ge.s32.totalorder %s24, 6
      %s34 = sphi 0, %s36
      %s37 = sphi 0, %s34
      %s38 = sphi 0, %s37
      %s54 = sphi 0, %s38
      %s58 = sphi 0, %s58
      %s60 = sphi 0, %s58
      %s61 = sphi 0, %s60
      %s75 = sphi 0, %s61
      %s79 = sphi 0, %s79
      %s81 = sphi 0, %s79
      %s82 = sphi 0, %s81
      %s96 = sphi 0, %s82
      %s100 = sphi 0, %s100
      %s102 = sphi 0, %s100
      %s103 = sphi 0, %s102
      %s117 = sphi 0, %s103
      %s121 = sphi 0, %s121
      %s123 = sphi 0, %s121
      %s124 = sphi 0, %s123
      %s138 = sphi 0, %s124
      %s142 = sphi 0, %s142
      %s144 = sphi 0, %s142
      %s145 = sphi 0, %s144
      %s159 = sphi 0, %s145
      %s163 = sphi 0, %s163
      %s165 = sphi 0, %s163
      %s166 = sphi 0, %s165
      %s180 = sphi 0, %s166
      %s184 = sphi 0, %s184
      %s186 = sphi 0, %s184
      %s187 = sphi 0, %s186
      %s201 = sphi 0, %s187
      %s205 = sphi 0, %s205
      %s207 = sphi 0, %s205
      %s208 = sphi 0, %s207
      %s222 = sphi 0, %s208
      %s226 = sphi 0, %s226
      %s228 = sphi 0, %s226
      %s229 = sphi 0, %s228
      %s243 = sphi 0, %s229
      %s247 = sphi 0, %s247
      %s249 = sphi 0, %s247
      %s250 = sphi 0, %s249
      %s264 = sphi 0, %s250
      %s270 = sphi 0, %s272
      %s273 = sphi 0, %s270
      %s274 = sphi 0, %s273
      %s290 = sphi 0, %s274
    $region4: #{tpu_custom_call.1} parent=1 // loop_header_branch
      %27 = sbr.rel (%p25) target = $region8
    $region5: #{tpu_custom_call.1} parent=1 // loop_body
      %s29 = ssub.s32 %s24, 1
      %s30 = ssub.s32 %s24, 2
      %s31 = sadd.s32 %s24, 1
      %s32 = ssub.s32 %s24, %s31
      %p33 = scmp.eq.s32.totalorder %s32, 0
      %s35 = sadd.s32 %s34, 1
      %s36 = scalar_select %p33, %s34, %s35
      %p39 = pneg %p33
      %p40 = scmp.eq.s32.totalorder %s24, 3
      %p41 = por %p39, %p40
      %p42 = scmp.ne.s32.totalorder %s34, %s37
      %p43 = scmp.eq.s32.totalorder %s24, 0
      %p44 = por %p42, %p43
      %p45 = scmp.ne.s32.totalorder %s34, %s37
      %p46 = scmp.eq.s32.totalorder %s29, 3
      %p47 = por %p45, %p46
      %p48 = scmp.ne.s32.totalorder %s37, %s38
      %p49 = scmp.eq.s32.totalorder %s29, 0
      %p50 = por %p48, %p49
      %p51 = scmp.ne.s32.totalorder %s37, %s38
      %p52 = scmp.eq.s32.totalorder %s30, 3
      %p53 = por %p51, %p52
      %p55 = scmp.ne.s32.totalorder %s38, %s54
      %p56 = scmp.eq.s32.totalorder %s30, 0
      %p57 = por %p55, %p56
      %s59 = sadd.s32 %s58, 1
      %p62 = scmp.eq.s32.totalorder %s24, 3
      %p63 = scmp.ne.s32.totalorder %s58, %s60
      %p64 = scmp.eq.s32.totalorder %s24, 0
      %p65 = por %p63, %p64
      %p66 = scmp.ne.s32.totalorder %s58, %s60
      %p67 = scmp.eq.s32.totalorder %s29, 3
      %p68 = por %p66, %p67
      %p69 = scmp.ne.s32.totalorder %s60, %s61
      %p70 = scmp.eq.s32.totalorder %s29, 0
      %p71 = por %p69, %p70
      %p72 = scmp.ne.s32.totalorder %s60, %s61
      %p73 = scmp.eq.s32.totalorder %s30, 3
      %p74 = por %p72, %p73
      %p76 = scmp.ne.s32.totalorder %s61, %s75
      %p77 = scmp.eq.s32.totalorder %s30, 0
      %p78 = por %p76, %p77
      %s80 = sadd.s32 %s79, 1
      %p83 = scmp.eq.s32.totalorder %s24, 3
      %p84 = scmp.ne.s32.totalorder %s79, %s81
      %p85 = scmp.eq.s32.totalorder %s24, 0
      %p86 = por %p84, %p85
      %p87 = scmp.ne.s32.totalorder %s79, %s81
      %p88 = scmp.eq.s32.totalorder %s29, 3
      %p89 = por %p87, %p88
      %p90 = scmp.ne.s32.totalorder %s81, %s82
      %p91 = scmp.eq.s32.totalorder %s29, 0
      %p92 = por %p90, %p91
      %p93 = scmp.ne.s32.totalorder %s81, %s82
      %p94 = scmp.eq.s32.totalorder %s30, 3
      %p95 = por %p93, %p94
      %p97 = scmp.ne.s32.totalorder %s82, %s96
      %p98 = scmp.eq.s32.totalorder %s30, 0
      %p99 = por %p97, %p98
      %s101 = sadd.s32 %s100, 1
      %p104 = scmp.eq.s32.totalorder %s24, 3
      %p105 = scmp.ne.s32.totalorder %s100, %s102
      %p106 = scmp.eq.s32.totalorder %s24, 0
      %p107 = por %p105, %p106
      %p108 = scmp.ne.s32.totalorder %s100, %s102
      %p109 = scmp.eq.s32.totalorder %s29, 3
      %p110 = por %p108, %p109
      %p111 = scmp.ne.s32.totalorder %s102, %s103
      %p112 = scmp.eq.s32.totalorder %s29, 0
      %p113 = por %p111, %p112
      %p114 = scmp.ne.s32.totalorder %s102, %s103
      %p115 = scmp.eq.s32.totalorder %s30, 3
      %p116 = por %p114, %p115
      %p118 = scmp.ne.s32.totalorder %s103, %s117
      %p119 = scmp.eq.s32.totalorder %s30, 0
      %p120 = por %p118, %p119
      %s122 = sadd.s32 %s121, 1
      %p125 = scmp.eq.s32.totalorder %s24, 3
      %p126 = scmp.ne.s32.totalorder %s121, %s123
      %p127 = scmp.eq.s32.totalorder %s24, 0
      %p128 = por %p126, %p127
      %p129 = scmp.ne.s32.totalorder %s121, %s123
      %p130 = scmp.eq.s32.totalorder %s29, 3
      %p131 = por %p129, %p130
      %p132 = scmp.ne.s32.totalorder %s123, %s124
      %p133 = scmp.eq.s32.totalorder %s29, 0
      %p134 = por %p132, %p133
      %p135 = scmp.ne.s32.totalorder %s123, %s124
      %p136 = scmp.eq.s32.totalorder %s30, 3
      %p137 = por %p135, %p136
      %p139 = scmp.ne.s32.totalorder %s124, %s138
      %p140 = scmp.eq.s32.totalorder %s30, 0
      %p141 = por %p139, %p140
      %s143 = sadd.s32 %s142, 1
      %p146 = scmp.eq.s32.totalorder %s24, 3
      %p147 = scmp.ne.s32.totalorder %s142, %s144
      %p148 = scmp.eq.s32.totalorder %s24, 0
      %p149 = por %p147, %p148
      %p150 = scmp.ne.s32.totalorder %s142, %s144
      %p151 = scmp.eq.s32.totalorder %s29, 3
      %p152 = por %p150, %p151
      %p153 = scmp.ne.s32.totalorder %s144, %s145
      %p154 = scmp.eq.s32.totalorder %s29, 0
      %p155 = por %p153, %p154
      %p156 = scmp.ne.s32.totalorder %s144, %s145
      %p157 = scmp.eq.s32.totalorder %s30, 3
      %p158 = por %p156, %p157
      %p160 = scmp.ne.s32.totalorder %s145, %s159
      %p161 = scmp.eq.s32.totalorder %s30, 0
      %p162 = por %p160, %p161
      %s164 = sadd.s32 %s163, 1
      %p167 = scmp.eq.s32.totalorder %s24, 3
      %p168 = scmp.ne.s32.totalorder %s163, %s165
      %p169 = scmp.eq.s32.totalorder %s24, 0
      %p170 = por %p168, %p169
      %p171 = scmp.ne.s32.totalorder %s163, %s165
      %p172 = scmp.eq.s32.totalorder %s29, 3
      %p173 = por %p171, %p172
      %p174 = scmp.ne.s32.totalorder %s165, %s166
      %p175 = scmp.eq.s32.totalorder %s29, 0
      %p176 = por %p174, %p175
      %p177 = scmp.ne.s32.totalorder %s165, %s166
      %p178 = scmp.eq.s32.totalorder %s30, 3
      %p179 = por %p177, %p178
      %p181 = scmp.ne.s32.totalorder %s166, %s180
      %p182 = scmp.eq.s32.totalorder %s30, 0
      %p183 = por %p181, %p182
      %s185 = sadd.s32 %s184, 1
      %p188 = scmp.eq.s32.totalorder %s24, 3
      %p189 = scmp.ne.s32.totalorder %s184, %s186
      %p190 = scmp.eq.s32.totalorder %s24, 0
      %p191 = por %p189, %p190
      %p192 = scmp.ne.s32.totalorder %s184, %s186
      %p193 = scmp.eq.s32.totalorder %s29, 3
      %p194 = por %p192, %p193
      %p195 = scmp.ne.s32.totalorder %s186, %s187
      %p196 = scmp.eq.s32.totalorder %s29, 0
      %p197 = por %p195, %p196
      %p198 = scmp.ne.s32.totalorder %s186, %s187
      %p199 = scmp.eq.s32.totalorder %s30, 3
      %p200 = por %p198, %p199
      %p202 = scmp.ne.s32.totalorder %s187, %s201
      %p203 = scmp.eq.s32.totalorder %s30, 0
      %p204 = por %p202, %p203
      %s206 = sadd.s32 %s205, 1
      %p209 = scmp.eq.s32.totalorder %s24, 3
      %p210 = scmp.ne.s32.totalorder %s205, %s207
      %p211 = scmp.eq.s32.totalorder %s24, 0
      %p212 = por %p210, %p211
      %p213 = scmp.ne.s32.totalorder %s205, %s207
      %p214 = scmp.eq.s32.totalorder %s29, 3
      %p215 = por %p213, %p214
      %p216 = scmp.ne.s32.totalorder %s207, %s208
      %p217 = scmp.eq.s32.totalorder %s29, 0
      %p218 = por %p216, %p217
      %p219 = scmp.ne.s32.totalorder %s207, %s208
      %p220 = scmp.eq.s32.totalorder %s30, 3
      %p221 = por %p219, %p220
      %p223 = scmp.ne.s32.totalorder %s208, %s222
      %p224 = scmp.eq.s32.totalorder %s30, 0
      %p225 = por %p223, %p224
      %s227 = sadd.s32 %s226, 1
      %p230 = scmp.eq.s32.totalorder %s24, 3
      %p231 = scmp.ne.s32.totalorder %s226, %s228
      %p232 = scmp.eq.s32.totalorder %s24, 0
      %p233 = por %p231, %p232
      %p234 = scmp.ne.s32.totalorder %s226, %s228
      %p235 = scmp.eq.s32.totalorder %s29, 3
      %p236 = por %p234, %p235
      %p237 = scmp.ne.s32.totalorder %s228, %s229
      %p238 = scmp.eq.s32.totalorder %s29, 0
      %p239 = por %p237, %p238
      %p240 = scmp.ne.s32.totalorder %s228, %s229
      %p241 = scmp.eq.s32.totalorder %s30, 3
      %p242 = por %p240, %p241
      %p244 = scmp.ne.s32.totalorder %s229, %s243
      %p245 = scmp.eq.s32.totalorder %s30, 0
      %p246 = por %p244, %p245
      %s248 = sadd.s32 %s247, 1
      %p251 = scmp.eq.s32.totalorder %s24, 3
      %p252 = scmp.ne.s32.totalorder %s247, %s249
      %p253 = scmp.eq.s32.totalorder %s24, 0
      %p254 = por %p252, %p253
      %p255 = scmp.ne.s32.totalorder %s247, %s249
      %p256 = scmp.eq.s32.totalorder %s29, 3
      %p257 = por %p255, %p256
      %p258 = scmp.ne.s32.totalorder %s249, %s250
      %p259 = scmp.eq.s32.totalorder %s29, 0
      %p260 = por %p258, %p259
      %p261 = scmp.ne.s32.totalorder %s249, %s250
      %p262 = scmp.eq.s32.totalorder %s30, 3
      %p263 = por %p261, %p262
      %p265 = scmp.ne.s32.totalorder %s250, %s264
      %p266 = scmp.eq.s32.totalorder %s30, 0
      %p267 = por %p265, %p266
      %s268 = ssub.s32 %s24, %s31
      %p269 = scmp.eq.s32.totalorder %s268, 0
      %s271 = sadd.s32 %s270, 1
      %s272 = scalar_select %p269, %s270, %s271
      %p275 = pneg %p269
      %p276 = scmp.eq.s32.totalorder %s24, 3
      %p277 = por %p275, %p276
      %p278 = scmp.ne.s32.totalorder %s270, %s273
      %p279 = scmp.eq.s32.totalorder %s24, 0
      %p280 = por %p278, %p279
      %p281 = scmp.ne.s32.totalorder %s270, %s273
      %p282 = scmp.eq.s32.totalorder %s29, 3
      %p283 = por %p281, %p282
      %p284 = scmp.ne.s32.totalorder %s273, %s274
      %p285 = scmp.eq.s32.totalorder %s29, 0
      %p286 = por %p284, %p285
      %p287 = scmp.ne.s32.totalorder %s273, %s274
      %p288 = scmp.eq.s32.totalorder %s30, 3
      %p289 = por %p287, %p288
      %p291 = scmp.ne.s32.totalorder %s274, %s290
      %p292 = scmp.eq.s32.totalorder %s30, 0
      %p293 = por %p291, %p292
      %p294 = scmp.le.s32.totalorder 1, %s24
      %p295 = scmp.lt.s32.totalorder %s24, 5
      %p296 = pnand %p294, %p295
      %p297 = pneg %p296
      // Predicated region
      $region9: #{tpu_custom_call.1} parent=5 // pred_check
        _
      $region10: #{tpu_custom_call.1} parent=5 // pred_check_branch
        %299 = sbr.rel (%p296) target = $region12
      $region11: #{tpu_custom_call.1} parent=5 // pred_region
        %s300 = ssub.s32 %s24, 1
        // Predicated region
        $region13: #{tpu_custom_call.1} parent=11 // pred_check
          %p301 = pneg %p71
        $region14: #{tpu_custom_call.1} parent=11 // pred_check_branch
          %303 = sbr.rel (%p301) target = $region16
        $region15: #{tpu_custom_call.1} parent=11 // pred_region
          _
        $region16: #{tpu_custom_call.1} parent=11 // pred_fallthru
          _
        // Predicated region
        $region17: #{tpu_custom_call.1} parent=11 // pred_check
          %p304 = pneg %p92
        $region18: #{tpu_custom_call.1} parent=11 // pred_check_branch
          %306 = sbr.rel (%p304) target = $region20
        $region19: #{tpu_custom_call.1} parent=11 // pred_region
          _
        $region20: #{tpu_custom_call.1} parent=11 // pred_fallthru
          _
        // Predicated region
        $region21: #{tpu_custom_call.1} parent=11 // pred_check
          %p307 = pneg %p113
        $region22: #{tpu_custom_call.1} parent=11 // pred_check_branch
          %309 = sbr.rel (%p307) target = $region24
        $region23: #{tpu_custom_call.1} parent=11 // pred_region
          _
        $region24: #{tpu_custom_call.1} parent=11 // pred_fallthru
          _
        // Predicated region
        $region25: #{tpu_custom_call.1} parent=11 // pred_check
          %p310 = pneg %p134
        $region26: #{tpu_custom_call.1} parent=11 // pred_check_branch
          %312 = sbr.rel (%p310) target = $region28
        $region27: #{tpu_custom_call.1} parent=11 // pred_region
          _
        $region28: #{tpu_custom_call.1} parent=11 // pred_fallthru
          _
        // Predicated region
        $region29: #{tpu_custom_call.1} parent=11 // pred_check
          %p313 = pneg %p155
        $region30: #{tpu_custom_call.1} parent=11 // pred_check_branch
          %315 = sbr.rel (%p313) target = $region32
        $region31: #{tpu_custom_call.1} parent=11 // pred_region
          _
        $region32: #{tpu_custom_call.1} parent=11 // pred_fallthru
          _
        // Predicated region
        $region33: #{tpu_custom_call.1} parent=11 // pred_check
          %p316 = pneg %p176
        $region34: #{tpu_custom_call.1} parent=11 // pred_check_branch
          %318 = sbr.rel (%p316) target = $region36
        $region35: #{tpu_custom_call.1} parent=11 // pred_region
          _
        $region36: #{tpu_custom_call.1} parent=11 // pred_fallthru
          _
        // Predicated region
        $region37: #{tpu_custom_call.1} parent=11 // pred_check
          %p319 = pneg %p197
        $region38: #{tpu_custom_call.1} parent=11 // pred_check_branch
          %321 = sbr.rel (%p319) target = $region40
        $region39: #{tpu_custom_call.1} parent=11 // pred_region
          %s323 = ssub.s32 1024, 1024
          %324 = vsyncadd [#allocation6], %s323
          %s325 = sshll.u32 [#allocation5], 4
          %s326 = int_to_ptr.vmem [resolvable:$true] %s325
          %331 = dma.hbm_to_vmem [thread:$0]  %s7, 1024, %s326, [#allocation6], 64, 64, 4
        $region40: #{tpu_custom_call.1} parent=11 // pred_fallthru
          _
        // Predicated region
        $region41: #{tpu_custom_call.1} parent=11 // pred_check
          %p332 = pneg %p218
        $region42: #{tpu_custom_call.1} parent=11 // pred_check_branch
          %334 = sbr.rel (%p332) target = $region44
        $region43: #{tpu_custom_call.1} parent=11 // pred_region
          _
        $region44: #{tpu_custom_call.1} parent=11 // pred_fallthru
          _
        // Predicated region
        $region45: #{tpu_custom_call.1} parent=11 // pred_check
          %p335 = pneg %p239
        $region46: #{tpu_custom_call.1} parent=11 // pred_check_branch
          %337 = sbr.rel (%p335) target = $region48
        $region47: #{tpu_custom_call.1} parent=11 // pred_region
          _
        $region48: #{tpu_custom_call.1} parent=11 // pred_fallthru
          _
        // Predicated region
        $region49: #{tpu_custom_call.1} parent=11 // pred_check
          %p338 = pneg %p260
        $region50: #{tpu_custom_call.1} parent=11 // pred_check_branch
          %340 = sbr.rel (%p338) target = $region52
        $region51: #{tpu_custom_call.1} parent=11 // pred_region
          _
        $region52: #{tpu_custom_call.1} parent=11 // pred_fallthru
          _
      $region12: #{tpu_custom_call.1} parent=5 // pred_fallthru
        _
      %p341 = scmp.lt.s32.totalorder %s24, 4
      // Predicated region
      $region53: #{tpu_custom_call.1} parent=5 // pred_check
        %p342 = pneg %p341
      $region54: #{tpu_custom_call.1} parent=5 // pred_check_branch
        %344 = sbr.rel (%p342) target = $region56
      $region55: #{tpu_custom_call.1} parent=5 // pred_region
        // Predicated region
        $region57: #{tpu_custom_call.1} parent=55 // pred_check
          %p345 = pneg %p44
        $region58: #{tpu_custom_call.1} parent=55 // pred_check_branch
          %347 = sbr.rel (%p345) target = $region60
        $region59: #{tpu_custom_call.1} parent=55 // pred_region
          %s348 = sand.u32 %s34, 1
          %s349 = scalar_lea.sflag [#allocation3], %s348
          %s350 = sand.u32 %s34, 1
          %s351 = smul.addr %s350, 128
          %s352 = scalar_lea.vmem [#allocation2], %s351
          %s353 = smul.u32 16, %s24
          %s355 = ssub.s32 2048, 2048
          %356 = vsyncadd %s349, %s355
          %s357 = smul.addr %s353, 128
          %s358 = scalar_lea.hbm %s0, %s357
          %s359 = sshll.u32 %s352, 4
          %s360 = int_to_ptr.vmem [resolvable:$true] %s359
          %365 = dma.hbm_to_vmem [thread:$0]  %s358, 2048, %s360, %s349, 128, 128, 8
        $region60: #{tpu_custom_call.1} parent=55 // pred_fallthru
          _
      $region56: #{tpu_custom_call.1} parent=5 // pred_fallthru
        _
      %p366 = scmp.le.s32.totalorder 1, %s24
      %p367 = scmp.lt.s32.totalorder %s24, 5
      %p368 = pnand %p366, %p367
      %p369 = pneg %p368
      // Predicated region
      $region61: #{tpu_custom_call.1} parent=5 // pred_check
        _
      $region62: #{tpu_custom_call.1} parent=5 // pred_check_branch
        %371 = sbr.rel (%p368) target = $region64
      $region63: #{tpu_custom_call.1} parent=5 // pred_region
        %s372 = ssub.s32 %s24, 1
        %s373 = sand.u32 %s37, 1
        %s374 = scalar_lea.sflag [#allocation3], %s373
        %s375 = sand.u32 %s37, 1
        %s376 = smul.addr %s375, 128
        %s377 = scalar_lea.vmem [#allocation2], %s376
        // Predicated region
        $region65: #{tpu_custom_call.1} parent=63 // pred_check
          %p378 = pneg %p50
        $region66: #{tpu_custom_call.1} parent=63 // pred_check_branch
          %380 = sbr.rel (%p378) target = $region68
        $region67: #{tpu_custom_call.1} parent=63 // pred_region
          %381 = dma.done %s374, 2048
        $region68: #{tpu_custom_call.1} parent=63 // pred_fallthru
          _
        // Predicated region
        $region69: #{tpu_custom_call.1} parent=63 // pred_check
          %p382 = pneg %p197
        $region70: #{tpu_custom_call.1} parent=63 // pred_check_branch
          %384 = sbr.rel (%p382) target = $region72
        $region71: #{tpu_custom_call.1} parent=63 // pred_region
          %385 = dma.done [#allocation6], 1024
        $region72: #{tpu_custom_call.1} parent=63 // pred_fallthru
          _
        %s386 = sand.u32 %s37, 1
        %s387 = scalar_lea.sflag [#allocation3], %s386
        %s388 = sand.u32 %s37, 1
        %s389 = smul.addr %s388, 128
        %s390 = scalar_lea.vmem [#allocation2], %s389
        %p391 = pneg %p50
        %p392 = pneg %p47
        %p393 = pneg %p71
        %p394 = pneg %p68
        %p395 = pneg %p92
        %p396 = pneg %p89
        %p397 = pneg %p113
        %p398 = pneg %p110
        %p399 = pneg %p134
        %p400 = pneg %p131
        %p401 = pneg %p155
        %p402 = pneg %p152
        %p403 = pneg %p176
        %p404 = pneg %p173
        %p405 = pneg %p197
        %p406 = pneg %p194
        %p407 = pneg %p218
        %p408 = pneg %p215
        %p409 = pneg %p239
        %p410 = pneg %p236
        %p411 = pneg %p260
        %p412 = pneg %p257
        %p413 = pneg %p286
        %p414 = pneg %p283
        %s415 = sand.u32 %s273, 1
        %s416 = scalar_lea.sflag [#allocation4], %s415
        %s417 = sand.u32 %s273, 1
        %s418 = smul.addr %s417, 128
        %s419 = scalar_lea.vmem [#allocation7], %s418
        %s420 = smul.u32 16, %s29
        %s421 = smul.u32 16, %s29
        %v423 = vld [vmem:[%s377] sm:$0xff]
        %v424 = vld [vmem:[%s377 + $0x8] sm:$0xff]
        %v425 = vld [vmem:[%s377 + $0x10] sm:$0xff]
        %v426 = vld [vmem:[%s377 + $0x18] sm:$0xff]
        %v427 = vld [vmem:[%s377 + $0x20] sm:$0xff]
        %v428 = vld [vmem:[%s377 + $0x28] sm:$0xff]
        %v429 = vld [vmem:[%s377 + $0x30] sm:$0xff]
        %v430 = vld [vmem:[%s377 + $0x38] sm:$0xff]
        %v431 = vld [vmem:[%s377 + $0x40] sm:$0xff]
        %v432 = vld [vmem:[%s377 + $0x48] sm:$0xff]
        %v433 = vld [vmem:[%s377 + $0x50] sm:$0xff]
        %v434 = vld [vmem:[%s377 + $0x58] sm:$0xff]
        %v435 = vld [vmem:[%s377 + $0x60] sm:$0xff]
        %v436 = vld [vmem:[%s377 + $0x68] sm:$0xff]
        %v437 = vld [vmem:[%s377 + $0x70] sm:$0xff]
        %v438 = vld [vmem:[%s377 + $0x78] sm:$0xff]
        %v439 = vld [vmem:[%s2] sm:$0xff]
        %441 = vset.pattern.permute.xlu0 0
        %442 = vperm.xlu0 %441, %v439
        %v443 = vpop.permute.xlu0 %442
        %v445 = vadd.f32 %v423, %v443
        %v446 = vadd.f32 %v424, %v443
        %v447 = vadd.f32 %v425, %v443
        %v448 = vadd.f32 %v426, %v443
        %v449 = vadd.f32 %v427, %v443
        %v450 = vadd.f32 %v428, %v443
        %v451 = vadd.f32 %v429, %v443
        %v452 = vadd.f32 %v430, %v443
        %v453 = vadd.f32 %v431, %v443
        %v454 = vadd.f32 %v432, %v443
        %v455 = vadd.f32 %v433, %v443
        %v456 = vadd.f32 %v434, %v443
        %v457 = vadd.f32 %v435, %v443
        %v458 = vadd.f32 %v436, %v443
        %v459 = vadd.f32 %v437, %v443
        %v460 = vadd.f32 %v438, %v443
        %v461 = vld [vmem:[%s1] sm:$0xff]
        %463 = vset.pattern.permute.xlu0 0
        %464 = vperm.xlu0 %463, %v461
        %v465 = vpop.permute.xlu0 %464
        %v467 = vlaneseq
        %v468 = vshrl.u32 %v467, 7
        %v469 = vsub.s32 0, %v468
        %v470 = vrot.slane %v423, %v469
        %v471 = vlaneseq
        %v472 = vshrl.u32 %v471, 7
        %v473 = vsub.s32 0, %v472
        %v474 = vrot.slane %v424, %v473
        %v475 = vlaneseq
        %v476 = vshrl.u32 %v475, 7
        %v477 = vsub.s32 0, %v476
        %v478 = vrot.slane %v425, %v477
        %v479 = vlaneseq
        %v480 = vshrl.u32 %v479, 7
        %v481 = vsub.s32 0, %v480
        %v482 = vrot.slane %v426, %v481
        %v483 = vlaneseq
        %v484 = vshrl.u32 %v483, 7
        %v485 = vsub.s32 0, %v484
        %v486 = vrot.slane %v427, %v485
        %v487 = vlaneseq
        %v488 = vshrl.u32 %v487, 7
        %v489 = vsub.s32 0, %v488
        %v490 = vrot.slane %v428, %v489
        %v491 = vlaneseq
        %v492 = vshrl.u32 %v491, 7
        %v493 = vsub.s32 0, %v492
        %v494 = vrot.slane %v429, %v493
        %v495 = vlaneseq
        %v496 = vshrl.u32 %v495, 7
        %v497 = vsub.s32 0, %v496
        %v498 = vrot.slane %v430, %v497
        %v499 = vlaneseq
        %v500 = vshrl.u32 %v499, 7
        %v501 = vsub.s32 0, %v500
        %v502 = vrot.slane %v431, %v501
        %v503 = vlaneseq
        %v504 = vshrl.u32 %v503, 7
        %v505 = vsub.s32 0, %v504
        %v506 = vrot.slane %v432, %v505
        %v507 = vlaneseq
        %v508 = vshrl.u32 %v507, 7
        %v509 = vsub.s32 0, %v508
        %v510 = vrot.slane %v433, %v509
        %v511 = vlaneseq
        %v512 = vshrl.u32 %v511, 7
        %v513 = vsub.s32 0, %v512
        %v514 = vrot.slane %v434, %v513
        %v515 = vlaneseq
        %v516 = vshrl.u32 %v515, 7
        %v517 = vsub.s32 0, %v516
        %v518 = vrot.slane %v435, %v517
        %v519 = vlaneseq
        %v520 = vshrl.u32 %v519, 7
        %v521 = vsub.s32 0, %v520
        %v522 = vrot.slane %v436, %v521
        %v523 = vlaneseq
        %v524 = vshrl.u32 %v523, 7
        %v525 = vsub.s32 0, %v524
        %v526 = vrot.slane %v437, %v525
        %v527 = vlaneseq
        %v528 = vshrl.u32 %v527, 7
        %v529 = vsub.s32 0, %v528
        %v530 = vrot.slane %v438, %v529
        %v531 = vmul.f32 %v465, %v470
        %v532 = vmul.f32 %v465, %v474
        %v533 = vmul.f32 %v465, %v478
        %v534 = vmul.f32 %v465, %v482
        %v535 = vmul.f32 %v465, %v486
        %v536 = vmul.f32 %v465, %v490
        %v537 = vmul.f32 %v465, %v494
        %v538 = vmul.f32 %v465, %v498
        %v539 = vmul.f32 %v465, %v502
        %v540 = vmul.f32 %v465, %v506
        %v541 = vmul.f32 %v465, %v510
        %v542 = vmul.f32 %v465, %v514
        %v543 = vmul.f32 %v465, %v518
        %v544 = vmul.f32 %v465, %v522
        %v545 = vmul.f32 %v465, %v526
        %v546 = vmul.f32 %v465, %v530
        %v547 = vadd.f32 %v445, %v531
        %v548 = vadd.f32 %v446, %v532
        %v549 = vadd.f32 %v447, %v533
        %v550 = vadd.f32 %v448, %v534
        %v551 = vadd.f32 %v449, %v535
        %v552 = vadd.f32 %v450, %v536
        %v553 = vadd.f32 %v451, %v537
        %v554 = vadd.f32 %v452, %v538
        %v555 = vadd.f32 %v453, %v539
        %v556 = vadd.f32 %v454, %v540
        %v557 = vadd.f32 %v455, %v541
        %v558 = vadd.f32 %v456, %v542
        %v559 = vadd.f32 %v457, %v543
        %v560 = vadd.f32 %v458, %v544
        %v561 = vadd.f32 %v459, %v545
        %v562 = vadd.f32 %v460, %v546
        %s563 = scalar_lea.vmem %s1, 8
        %v564 = vld [vmem:[%s563] sm:$0xff]
        %566 = vset.pattern.permute.xlu0 0
        %567 = vperm.xlu0 %566, %v564
        %v568 = vpop.permute.xlu0 %567
        %v570 = vlaneseq
        %v571 = vshrl.u32 %v570, 7
        %v572 = vsub.s32 1, %v571
        %v573 = vrot.slane %v423, %v572
        %v574 = vlaneseq
        %v575 = vshrl.u32 %v574, 7
        %v576 = vsub.s32 1, %v575
        %v577 = vrot.slane %v424, %v576
        %v578 = vlaneseq
        %v579 = vshrl.u32 %v578, 7
        %v580 = vsub.s32 1, %v579
        %v581 = vrot.slane %v425, %v580
        %v582 = vlaneseq
        %v583 = vshrl.u32 %v582, 7
        %v584 = vsub.s32 1, %v583
        %v585 = vrot.slane %v426, %v584
        %v586 = vlaneseq
        %v587 = vshrl.u32 %v586, 7
        %v588 = vsub.s32 1, %v587
        %v589 = vrot.slane %v427, %v588
        %v590 = vlaneseq
        %v591 = vshrl.u32 %v590, 7
        %v592 = vsub.s32 1, %v591
        %v593 = vrot.slane %v428, %v592
        %v594 = vlaneseq
        %v595 = vshrl.u32 %v594, 7
        %v596 = vsub.s32 1, %v595
        %v597 = vrot.slane %v429, %v596
        %v598 = vlaneseq
        %v599 = vshrl.u32 %v598, 7
        %v600 = vsub.s32 1, %v599
        %v601 = vrot.slane %v430, %v600
        %v602 = vlaneseq
        %v603 = vshrl.u32 %v602, 7
        %v604 = vsub.s32 1, %v603
        %v605 = vrot.slane %v431, %v604
        %v606 = vlaneseq
        %v607 = vshrl.u32 %v606, 7
        %v608 = vsub.s32 1, %v607
        %v609 = vrot.slane %v432, %v608
        %v610 = vlaneseq
        %v611 = vshrl.u32 %v610, 7
        %v612 = vsub.s32 1, %v611
        %v613 = vrot.slane %v433, %v612
        %v614 = vlaneseq
        %v615 = vshrl.u32 %v614, 7
        %v616 = vsub.s32 1, %v615
        %v617 = vrot.slane %v434, %v616
        %v618 = vlaneseq
        %v619 = vshrl.u32 %v618, 7
        %v620 = vsub.s32 1, %v619
        %v621 = vrot.slane %v435, %v620
        %v622 = vlaneseq
        %v623 = vshrl.u32 %v622, 7
        %v624 = vsub.s32 1, %v623
        %v625 = vrot.slane %v436, %v624
        %v626 = vlaneseq
        %v627 = vshrl.u32 %v626, 7
        %v628 = vsub.s32 1, %v627
        %v629 = vrot.slane %v437, %v628
        %v630 = vlaneseq
        %v631 = vshrl.u32 %v630, 7
        %v632 = vsub.s32 1, %v631
        %v633 = vrot.slane %v438, %v632
        %v634 = vmul.f32 %v568, %v573
        %v635 = vmul.f32 %v568, %v577
        %v636 = vmul.f32 %v568, %v581
        %v637 = vmul.f32 %v568, %v585
        %v638 = vmul.f32 %v568, %v589
        %v639 = vmul.f32 %v568, %v593
        %v640 = vmul.f32 %v568, %v597
        %v641 = vmul.f32 %v568, %v601
        %v642 = vmul.f32 %v568, %v605
        %v643 = vmul.f32 %v568, %v609
        %v644 = vmul.f32 %v568, %v613
        %v645 = vmul.f32 %v568, %v617
        %v646 = vmul.f32 %v568, %v621
        %v647 = vmul.f32 %v568, %v625
        %v648 = vmul.f32 %v568, %v629
        %v649 = vmul.f32 %v568, %v633
        %v650 = vadd.f32 %v547, %v634
        %v651 = vadd.f32 %v548, %v635
        %v652 = vadd.f32 %v549, %v636
        %v653 = vadd.f32 %v550, %v637
        %v654 = vadd.f32 %v551, %v638
        %v655 = vadd.f32 %v552, %v639
        %v656 = vadd.f32 %v553, %v640
        %v657 = vadd.f32 %v554, %v641
        %v658 = vadd.f32 %v555, %v642
        %v659 = vadd.f32 %v556, %v643
        %v660 = vadd.f32 %v557, %v644
        %v661 = vadd.f32 %v558, %v645
        %v662 = vadd.f32 %v559, %v646
        %v663 = vadd.f32 %v560, %v647
        %v664 = vadd.f32 %v561, %v648
        %v665 = vadd.f32 %v562, %v649
        %s666 = scalar_lea.vmem %s1, 16
        %v667 = vld [vmem:[%s666] sm:$0xff]
        %669 = vset.pattern.permute.xlu0 0
        %670 = vperm.xlu0 %669, %v667
        %v671 = vpop.permute.xlu0 %670
        %v673 = vlaneseq
        %v674 = vshrl.u32 %v673, 7
        %v675 = vsub.s32 2, %v674
        %v676 = vrot.slane %v423, %v675
        %v677 = vlaneseq
        %v678 = vshrl.u32 %v677, 7
        %v679 = vsub.s32 2, %v678
        %v680 = vrot.slane %v424, %v679
        %v681 = vlaneseq
        %v682 = vshrl.u32 %v681, 7
        %v683 = vsub.s32 2, %v682
        %v684 = vrot.slane %v425, %v683
        %v685 = vlaneseq
        %v686 = vshrl.u32 %v685, 7
        %v687 = vsub.s32 2, %v686
        %v688 = vrot.slane %v426, %v687
        %v689 = vlaneseq
        %v690 = vshrl.u32 %v689, 7
        %v691 = vsub.s32 2, %v690
        %v692 = vrot.slane %v427, %v691
        %v693 = vlaneseq
        %v694 = vshrl.u32 %v693, 7
        %v695 = vsub.s32 2, %v694
        %v696 = vrot.slane %v428, %v695
        %v697 = vlaneseq
        %v698 = vshrl.u32 %v697, 7
        %v699 = vsub.s32 2, %v698
        %v700 = vrot.slane %v429, %v699
        %v701 = vlaneseq
        %v702 = vshrl.u32 %v701, 7
        %v703 = vsub.s32 2, %v702
        %v704 = vrot.slane %v430, %v703
        %v705 = vlaneseq
        %v706 = vshrl.u32 %v705, 7
        %v707 = vsub.s32 2, %v706
        %v708 = vrot.slane %v431, %v707
        %v709 = vlaneseq
        %v710 = vshrl.u32 %v709, 7
        %v711 = vsub.s32 2, %v710
        %v712 = vrot.slane %v432, %v711
        %v713 = vlaneseq
        %v714 = vshrl.u32 %v713, 7
        %v715 = vsub.s32 2, %v714
        %v716 = vrot.slane %v433, %v715
        %v717 = vlaneseq
        %v718 = vshrl.u32 %v717, 7
        %v719 = vsub.s32 2, %v718
        %v720 = vrot.slane %v434, %v719
        %v721 = vlaneseq
        %v722 = vshrl.u32 %v721, 7
        %v723 = vsub.s32 2, %v722
        %v724 = vrot.slane %v435, %v723
        %v725 = vlaneseq
        %v726 = vshrl.u32 %v725, 7
        %v727 = vsub.s32 2, %v726
        %v728 = vrot.slane %v436, %v727
        %v729 = vlaneseq
        %v730 = vshrl.u32 %v729, 7
        %v731 = vsub.s32 2, %v730
        %v732 = vrot.slane %v437, %v731
        %v733 = vlaneseq
        %v734 = vshrl.u32 %v733, 7
        %v735 = vsub.s32 2, %v734
        %v736 = vrot.slane %v438, %v735
        %v737 = vmul.f32 %v671, %v676
        %v738 = vmul.f32 %v671, %v680
        %v739 = vmul.f32 %v671, %v684
        %v740 = vmul.f32 %v671, %v688
        %v741 = vmul.f32 %v671, %v692
        %v742 = vmul.f32 %v671, %v696
        %v743 = vmul.f32 %v671, %v700
        %v744 = vmul.f32 %v671, %v704
        %v745 = vmul.f32 %v671, %v708
        %v746 = vmul.f32 %v671, %v712
        %v747 = vmul.f32 %v671, %v716
        %v748 = vmul.f32 %v671, %v720
        %v749 = vmul.f32 %v671, %v724
        %v750 = vmul.f32 %v671, %v728
        %v751 = vmul.f32 %v671, %v732
        %v752 = vmul.f32 %v671, %v736
        %v753 = vadd.f32 %v650, %v737
        %v754 = vadd.f32 %v651, %v738
        %v755 = vadd.f32 %v652, %v739
        %v756 = vadd.f32 %v653, %v740
        %v757 = vadd.f32 %v654, %v741
        %v758 = vadd.f32 %v655, %v742
        %v759 = vadd.f32 %v656, %v743
        %v760 = vadd.f32 %v657, %v744
        %v761 = vadd.f32 %v658, %v745
        %v762 = vadd.f32 %v659, %v746
        %v763 = vadd.f32 %v660, %v747
        %v764 = vadd.f32 %v661, %v748
        %v765 = vadd.f32 %v662, %v749
        %v766 = vadd.f32 %v663, %v750
        %v767 = vadd.f32 %v664, %v751
        %v768 = vadd.f32 %v665, %v752
        %s769 = scalar_lea.vmem %s1, 24
        %v770 = vld [vmem:[%s769] sm:$0xff]
        %772 = vset.pattern.permute.xlu0 0
        %773 = vperm.xlu0 %772, %v770
        %v774 = vpop.permute.xlu0 %773
        %v776 = vlaneseq
        %v777 = vshrl.u32 %v776, 7
        %v778 = vsub.s32 3, %v777
        %v779 = vrot.slane %v423, %v778
        %v780 = vlaneseq
        %v781 = vshrl.u32 %v780, 7
        %v782 = vsub.s32 3, %v781
        %v783 = vrot.slane %v424, %v782
        %v784 = vlaneseq
        %v785 = vshrl.u32 %v784, 7
        %v786 = vsub.s32 3, %v785
        %v787 = vrot.slane %v425, %v786
        %v788 = vlaneseq
        %v789 = vshrl.u32 %v788, 7
        %v790 = vsub.s32 3, %v789
        %v791 = vrot.slane %v426, %v790
        %v792 = vlaneseq
        %v793 = vshrl.u32 %v792, 7
        %v794 = vsub.s32 3, %v793
        %v795 = vrot.slane %v427, %v794
        %v796 = vlaneseq
        %v797 = vshrl.u32 %v796, 7
        %v798 = vsub.s32 3, %v797
        %v799 = vrot.slane %v428, %v798
        %v800 = vlaneseq
        %v801 = vshrl.u32 %v800, 7
        %v802 = vsub.s32 3, %v801
        %v803 = vrot.slane %v429, %v802
        %v804 = vlaneseq
        %v805 = vshrl.u32 %v804, 7
        %v806 = vsub.s32 3, %v805
        %v807 = vrot.slane %v430, %v806
        %v808 = vlaneseq
        %v809 = vshrl.u32 %v808, 7
        %v810 = vsub.s32 3, %v809
        %v811 = vrot.slane %v431, %v810
        %v812 = vlaneseq
        %v813 = vshrl.u32 %v812, 7
        %v814 = vsub.s32 3, %v813
        %v815 = vrot.slane %v432, %v814
        %v816 = vlaneseq
        %v817 = vshrl.u32 %v816, 7
        %v818 = vsub.s32 3, %v817
        %v819 = vrot.slane %v433, %v818
        %v820 = vlaneseq
        %v821 = vshrl.u32 %v820, 7
        %v822 = vsub.s32 3, %v821
        %v823 = vrot.slane %v434, %v822
        %v824 = vlaneseq
        %v825 = vshrl.u32 %v824, 7
        %v826 = vsub.s32 3, %v825
        %v827 = vrot.slane %v435, %v826
        %v828 = vlaneseq
        %v829 = vshrl.u32 %v828, 7
        %v830 = vsub.s32 3, %v829
        %v831 = vrot.slane %v436, %v830
        %v832 = vlaneseq
        %v833 = vshrl.u32 %v832, 7
        %v834 = vsub.s32 3, %v833
        %v835 = vrot.slane %v437, %v834
        %v836 = vlaneseq
        %v837 = vshrl.u32 %v836, 7
        %v838 = vsub.s32 3, %v837
        %v839 = vrot.slane %v438, %v838
        %v840 = vmul.f32 %v774, %v779
        %v841 = vmul.f32 %v774, %v783
        %v842 = vmul.f32 %v774, %v787
        %v843 = vmul.f32 %v774, %v791
        %v844 = vmul.f32 %v774, %v795
        %v845 = vmul.f32 %v774, %v799
        %v846 = vmul.f32 %v774, %v803
        %v847 = vmul.f32 %v774, %v807
        %v848 = vmul.f32 %v774, %v811
        %v849 = vmul.f32 %v774, %v815
        %v850 = vmul.f32 %v774, %v819
        %v851 = vmul.f32 %v774, %v823
        %v852 = vmul.f32 %v774, %v827
        %v853 = vmul.f32 %v774, %v831
        %v854 = vmul.f32 %v774, %v835
        %v855 = vmul.f32 %v774, %v839
        %v856 = vadd.f32 %v753, %v840
        %v857 = vadd.f32 %v754, %v841
        %v858 = vadd.f32 %v755, %v842
        %v859 = vadd.f32 %v756, %v843
        %v860 = vadd.f32 %v757, %v844
        %v861 = vadd.f32 %v758, %v845
        %v862 = vadd.f32 %v759, %v846
        %v863 = vadd.f32 %v760, %v847
        %v864 = vadd.f32 %v761, %v848
        %v865 = vadd.f32 %v762, %v849
        %v866 = vadd.f32 %v763, %v850
        %v867 = vadd.f32 %v764, %v851
        %v868 = vadd.f32 %v765, %v852
        %v869 = vadd.f32 %v766, %v853
        %v870 = vadd.f32 %v767, %v854
        %v871 = vadd.f32 %v768, %v855
        %s872 = scalar_lea.vmem %s1, 32
        %v873 = vld [vmem:[%s872] sm:$0xff]
        %875 = vset.pattern.permute.xlu0 0
        %876 = vperm.xlu0 %875, %v873
        %v877 = vpop.permute.xlu0 %876
        %v879 = vlaneseq
        %v880 = vshrl.u32 %v879, 7
        %v881 = vsub.s32 4, %v880
        %v882 = vrot.slane %v423, %v881
        %v883 = vlaneseq
        %v884 = vshrl.u32 %v883, 7
        %v885 = vsub.s32 4, %v884
        %v886 = vrot.slane %v424, %v885
        %v887 = vlaneseq
        %v888 = vshrl.u32 %v887, 7
        %v889 = vsub.s32 4, %v888
        %v890 = vrot.slane %v425, %v889
        %v891 = vlaneseq
        %v892 = vshrl.u32 %v891, 7
        %v893 = vsub.s32 4, %v892
        %v894 = vrot.slane %v426, %v893
        %v895 = vlaneseq
        %v896 = vshrl.u32 %v895, 7
        %v897 = vsub.s32 4, %v896
        %v898 = vrot.slane %v427, %v897
        %v899 = vlaneseq
        %v900 = vshrl.u32 %v899, 7
        %v901 = vsub.s32 4, %v900
        %v902 = vrot.slane %v428, %v901
        %v903 = vlaneseq
        %v904 = vshrl.u32 %v903, 7
        %v905 = vsub.s32 4, %v904
        %v906 = vrot.slane %v429, %v905
        %v907 = vlaneseq
        %v908 = vshrl.u32 %v907, 7
        %v909 = vsub.s32 4, %v908
        %v910 = vrot.slane %v430, %v909
        %v911 = vlaneseq
        %v912 = vshrl.u32 %v911, 7
        %v913 = vsub.s32 4, %v912
        %v914 = vrot.slane %v431, %v913
        %v915 = vlaneseq
        %v916 = vshrl.u32 %v915, 7
        %v917 = vsub.s32 4, %v916
        %v918 = vrot.slane %v432, %v917
        %v919 = vlaneseq
        %v920 = vshrl.u32 %v919, 7
        %v921 = vsub.s32 4, %v920
        %v922 = vrot.slane %v433, %v921
        %v923 = vlaneseq
        %v924 = vshrl.u32 %v923, 7
        %v925 = vsub.s32 4, %v924
        %v926 = vrot.slane %v434, %v925
        %v927 = vlaneseq
        %v928 = vshrl.u32 %v927, 7
        %v929 = vsub.s32 4, %v928
        %v930 = vrot.slane %v435, %v929
        %v931 = vlaneseq
        %v932 = vshrl.u32 %v931, 7
        %v933 = vsub.s32 4, %v932
        %v934 = vrot.slane %v436, %v933
        %v935 = vlaneseq
        %v936 = vshrl.u32 %v935, 7
        %v937 = vsub.s32 4, %v936
        %v938 = vrot.slane %v437, %v937
        %v939 = vlaneseq
        %v940 = vshrl.u32 %v939, 7
        %v941 = vsub.s32 4, %v940
        %v942 = vrot.slane %v438, %v941
        %v943 = vmul.f32 %v877, %v882
        %v944 = vmul.f32 %v877, %v886
        %v945 = vmul.f32 %v877, %v890
        %v946 = vmul.f32 %v877, %v894
        %v947 = vmul.f32 %v877, %v898
        %v948 = vmul.f32 %v877, %v902
        %v949 = vmul.f32 %v877, %v906
        %v950 = vmul.f32 %v877, %v910
        %v951 = vmul.f32 %v877, %v914
        %v952 = vmul.f32 %v877, %v918
        %v953 = vmul.f32 %v877, %v922
        %v954 = vmul.f32 %v877, %v926
        %v955 = vmul.f32 %v877, %v930
        %v956 = vmul.f32 %v877, %v934
        %v957 = vmul.f32 %v877, %v938
        %v958 = vmul.f32 %v877, %v942
        %v959 = vadd.f32 %v856, %v943
        %v960 = vadd.f32 %v857, %v944
        %v961 = vadd.f32 %v858, %v945
        %v962 = vadd.f32 %v859, %v946
        %v963 = vadd.f32 %v860, %v947
        %v964 = vadd.f32 %v861, %v948
        %v965 = vadd.f32 %v862, %v949
        %v966 = vadd.f32 %v863, %v950
        %v967 = vadd.f32 %v864, %v951
        %v968 = vadd.f32 %v865, %v952
        %v969 = vadd.f32 %v866, %v953
        %v970 = vadd.f32 %v867, %v954
        %v971 = vadd.f32 %v868, %v955
        %v972 = vadd.f32 %v869, %v956
        %v973 = vadd.f32 %v870, %v957
        %v974 = vadd.f32 %v871, %v958
        %s975 = scalar_lea.vmem %s1, 40
        %v976 = vld [vmem:[%s975] sm:$0xff]
        %978 = vset.pattern.permute.xlu0 0
        %979 = vperm.xlu0 %978, %v976
        %v980 = vpop.permute.xlu0 %979
        %v982 = vlaneseq
        %v983 = vshrl.u32 %v982, 7
        %v984 = vsub.s32 5, %v983
        %v985 = vrot.slane %v423, %v984
        %v986 = vlaneseq
        %v987 = vshrl.u32 %v986, 7
        %v988 = vsub.s32 5, %v987
        %v989 = vrot.slane %v424, %v988
        %v990 = vlaneseq
        %v991 = vshrl.u32 %v990, 7
        %v992 = vsub.s32 5, %v991
        %v993 = vrot.slane %v425, %v992
        %v994 = vlaneseq
        %v995 = vshrl.u32 %v994, 7
        %v996 = vsub.s32 5, %v995
        %v997 = vrot.slane %v426, %v996
        %v998 = vlaneseq
        %v999 = vshrl.u32 %v998, 7
        %v1000 = vsub.s32 5, %v999
        %v1001 = vrot.slane %v427, %v1000
        %v1002 = vlaneseq
        %v1003 = vshrl.u32 %v1002, 7
        %v1004 = vsub.s32 5, %v1003
        %v1005 = vrot.slane %v428, %v1004
        %v1006 = vlaneseq
        %v1007 = vshrl.u32 %v1006, 7
        %v1008 = vsub.s32 5, %v1007
        %v1009 = vrot.slane %v429, %v1008
        %v1010 = vlaneseq
        %v1011 = vshrl.u32 %v1010, 7
        %v1012 = vsub.s32 5, %v1011
        %v1013 = vrot.slane %v430, %v1012
        %v1014 = vlaneseq
        %v1015 = vshrl.u32 %v1014, 7
        %v1016 = vsub.s32 5, %v1015
        %v1017 = vrot.slane %v431, %v1016
        %v1018 = vlaneseq
        %v1019 = vshrl.u32 %v1018, 7
        %v1020 = vsub.s32 5, %v1019
        %v1021 = vrot.slane %v432, %v1020
        %v1022 = vlaneseq
        %v1023 = vshrl.u32 %v1022, 7
        %v1024 = vsub.s32 5, %v1023
        %v1025 = vrot.slane %v433, %v1024
        %v1026 = vlaneseq
        %v1027 = vshrl.u32 %v1026, 7
        %v1028 = vsub.s32 5, %v1027
        %v1029 = vrot.slane %v434, %v1028
        %v1030 = vlaneseq
        %v1031 = vshrl.u32 %v1030, 7
        %v1032 = vsub.s32 5, %v1031
        %v1033 = vrot.slane %v435, %v1032
        %v1034 = vlaneseq
        %v1035 = vshrl.u32 %v1034, 7
        %v1036 = vsub.s32 5, %v1035
        %v1037 = vrot.slane %v436, %v1036
        %v1038 = vlaneseq
        %v1039 = vshrl.u32 %v1038, 7
        %v1040 = vsub.s32 5, %v1039
        %v1041 = vrot.slane %v437, %v1040
        %v1042 = vlaneseq
        %v1043 = vshrl.u32 %v1042, 7
        %v1044 = vsub.s32 5, %v1043
        %v1045 = vrot.slane %v438, %v1044
        %v1046 = vmul.f32 %v980, %v985
        %v1047 = vmul.f32 %v980, %v989
        %v1048 = vmul.f32 %v980, %v993
        %v1049 = vmul.f32 %v980, %v997
        %v1050 = vmul.f32 %v980, %v1001
        %v1051 = vmul.f32 %v980, %v1005
        %v1052 = vmul.f32 %v980, %v1009
        %v1053 = vmul.f32 %v980, %v1013
        %v1054 = vmul.f32 %v980, %v1017
        %v1055 = vmul.f32 %v980, %v1021
        %v1056 = vmul.f32 %v980, %v1025
        %v1057 = vmul.f32 %v980, %v1029
        %v1058 = vmul.f32 %v980, %v1033
        %v1059 = vmul.f32 %v980, %v1037
        %v1060 = vmul.f32 %v980, %v1041
        %v1061 = vmul.f32 %v980, %v1045
        %v1062 = vadd.f32 %v959, %v1046
        %v1063 = vadd.f32 %v960, %v1047
        %v1064 = vadd.f32 %v961, %v1048
        %v1065 = vadd.f32 %v962, %v1049
        %v1066 = vadd.f32 %v963, %v1050
        %v1067 = vadd.f32 %v964, %v1051
        %v1068 = vadd.f32 %v965, %v1052
        %v1069 = vadd.f32 %v966, %v1053
        %v1070 = vadd.f32 %v967, %v1054
        %v1071 = vadd.f32 %v968, %v1055
        %v1072 = vadd.f32 %v969, %v1056
        %v1073 = vadd.f32 %v970, %v1057
        %v1074 = vadd.f32 %v971, %v1058
        %v1075 = vadd.f32 %v972, %v1059
        %v1076 = vadd.f32 %v973, %v1060
        %v1077 = vadd.f32 %v974, %v1061
        %s1078 = scalar_lea.vmem %s1, 48
        %v1079 = vld [vmem:[%s1078] sm:$0xff]
        %1081 = vset.pattern.permute.xlu0 0
        %1082 = vperm.xlu0 %1081, %v1079
        %v1083 = vpop.permute.xlu0 %1082
        %v1085 = vlaneseq
        %v1086 = vshrl.u32 %v1085, 7
        %v1087 = vsub.s32 6, %v1086
        %v1088 = vrot.slane %v423, %v1087
        %v1089 = vlaneseq
        %v1090 = vshrl.u32 %v1089, 7
        %v1091 = vsub.s32 6, %v1090
        %v1092 = vrot.slane %v424, %v1091
        %v1093 = vlaneseq
        %v1094 = vshrl.u32 %v1093, 7
        %v1095 = vsub.s32 6, %v1094
        %v1096 = vrot.slane %v425, %v1095
        %v1097 = vlaneseq
        %v1098 = vshrl.u32 %v1097, 7
        %v1099 = vsub.s32 6, %v1098
        %v1100 = vrot.slane %v426, %v1099
        %v1101 = vlaneseq
        %v1102 = vshrl.u32 %v1101, 7
        %v1103 = vsub.s32 6, %v1102
        %v1104 = vrot.slane %v427, %v1103
        %v1105 = vlaneseq
        %v1106 = vshrl.u32 %v1105, 7
        %v1107 = vsub.s32 6, %v1106
        %v1108 = vrot.slane %v428, %v1107
        %v1109 = vlaneseq
        %v1110 = vshrl.u32 %v1109, 7
        %v1111 = vsub.s32 6, %v1110
        %v1112 = vrot.slane %v429, %v1111
        %v1113 = vlaneseq
        %v1114 = vshrl.u32 %v1113, 7
        %v1115 = vsub.s32 6, %v1114
        %v1116 = vrot.slane %v430, %v1115
        %v1117 = vlaneseq
        %v1118 = vshrl.u32 %v1117, 7
        %v1119 = vsub.s32 6, %v1118
        %v1120 = vrot.slane %v431, %v1119
        %v1121 = vlaneseq
        %v1122 = vshrl.u32 %v1121, 7
        %v1123 = vsub.s32 6, %v1122
        %v1124 = vrot.slane %v432, %v1123
        %v1125 = vlaneseq
        %v1126 = vshrl.u32 %v1125, 7
        %v1127 = vsub.s32 6, %v1126
        %v1128 = vrot.slane %v433, %v1127
        %v1129 = vlaneseq
        %v1130 = vshrl.u32 %v1129, 7
        %v1131 = vsub.s32 6, %v1130
        %v1132 = vrot.slane %v434, %v1131
        %v1133 = vlaneseq
        %v1134 = vshrl.u32 %v1133, 7
        %v1135 = vsub.s32 6, %v1134
        %v1136 = vrot.slane %v435, %v1135
        %v1137 = vlaneseq
        %v1138 = vshrl.u32 %v1137, 7
        %v1139 = vsub.s32 6, %v1138
        %v1140 = vrot.slane %v436, %v1139
        %v1141 = vlaneseq
        %v1142 = vshrl.u32 %v1141, 7
        %v1143 = vsub.s32 6, %v1142
        %v1144 = vrot.slane %v437, %v1143
        %v1145 = vlaneseq
        %v1146 = vshrl.u32 %v1145, 7
        %v1147 = vsub.s32 6, %v1146
        %v1148 = vrot.slane %v438, %v1147
        %v1149 = vmul.f32 %v1083, %v1088
        %v1150 = vmul.f32 %v1083, %v1092
        %v1151 = vmul.f32 %v1083, %v1096
        %v1152 = vmul.f32 %v1083, %v1100
        %v1153 = vmul.f32 %v1083, %v1104
        %v1154 = vmul.f32 %v1083, %v1108
        %v1155 = vmul.f32 %v1083, %v1112
        %v1156 = vmul.f32 %v1083, %v1116
        %v1157 = vmul.f32 %v1083, %v1120
        %v1158 = vmul.f32 %v1083, %v1124
        %v1159 = vmul.f32 %v1083, %v1128
        %v1160 = vmul.f32 %v1083, %v1132
        %v1161 = vmul.f32 %v1083, %v1136
        %v1162 = vmul.f32 %v1083, %v1140
        %v1163 = vmul.f32 %v1083, %v1144
        %v1164 = vmul.f32 %v1083, %v1148
        %v1165 = vadd.f32 %v1062, %v1149
        %v1166 = vadd.f32 %v1063, %v1150
        %v1167 = vadd.f32 %v1064, %v1151
        %v1168 = vadd.f32 %v1065, %v1152
        %v1169 = vadd.f32 %v1066, %v1153
        %v1170 = vadd.f32 %v1067, %v1154
        %v1171 = vadd.f32 %v1068, %v1155
        %v1172 = vadd.f32 %v1069, %v1156
        %v1173 = vadd.f32 %v1070, %v1157
        %v1174 = vadd.f32 %v1071, %v1158
        %v1175 = vadd.f32 %v1072, %v1159
        %v1176 = vadd.f32 %v1073, %v1160
        %v1177 = vadd.f32 %v1074, %v1161
        %v1178 = vadd.f32 %v1075, %v1162
        %v1179 = vadd.f32 %v1076, %v1163
        %v1180 = vadd.f32 %v1077, %v1164
        %s1181 = scalar_lea.vmem %s1, 56
        %v1182 = vld [vmem:[%s1181] sm:$0xff]
        %1184 = vset.pattern.permute.xlu0 0
        %1185 = vperm.xlu0 %1184, %v1182
        %v1186 = vpop.permute.xlu0 %1185
        %v1188 = vlaneseq
        %v1189 = vshrl.u32 %v1188, 7
        %v1190 = vsub.s32 7, %v1189
        %v1191 = vrot.slane %v423, %v1190
        %v1192 = vlaneseq
        %v1193 = vshrl.u32 %v1192, 7
        %v1194 = vsub.s32 7, %v1193
        %v1195 = vrot.slane %v424, %v1194
        %v1196 = vlaneseq
        %v1197 = vshrl.u32 %v1196, 7
        %v1198 = vsub.s32 7, %v1197
        %v1199 = vrot.slane %v425, %v1198
        %v1200 = vlaneseq
        %v1201 = vshrl.u32 %v1200, 7
        %v1202 = vsub.s32 7, %v1201
        %v1203 = vrot.slane %v426, %v1202
        %v1204 = vlaneseq
        %v1205 = vshrl.u32 %v1204, 7
        %v1206 = vsub.s32 7, %v1205
        %v1207 = vrot.slane %v427, %v1206
        %v1208 = vlaneseq
        %v1209 = vshrl.u32 %v1208, 7
        %v1210 = vsub.s32 7, %v1209
        %v1211 = vrot.slane %v428, %v1210
        %v1212 = vlaneseq
        %v1213 = vshrl.u32 %v1212, 7
        %v1214 = vsub.s32 7, %v1213
        %v1215 = vrot.slane %v429, %v1214
        %v1216 = vlaneseq
        %v1217 = vshrl.u32 %v1216, 7
        %v1218 = vsub.s32 7, %v1217
        %v1219 = vrot.slane %v430, %v1218
        %v1220 = vlaneseq
        %v1221 = vshrl.u32 %v1220, 7
        %v1222 = vsub.s32 7, %v1221
        %v1223 = vrot.slane %v431, %v1222
        %v1224 = vlaneseq
        %v1225 = vshrl.u32 %v1224, 7
        %v1226 = vsub.s32 7, %v1225
        %v1227 = vrot.slane %v432, %v1226
        %v1228 = vlaneseq
        %v1229 = vshrl.u32 %v1228, 7
        %v1230 = vsub.s32 7, %v1229
        %v1231 = vrot.slane %v433, %v1230
        %v1232 = vlaneseq
        %v1233 = vshrl.u32 %v1232, 7
        %v1234 = vsub.s32 7, %v1233
        %v1235 = vrot.slane %v434, %v1234
        %v1236 = vlaneseq
        %v1237 = vshrl.u32 %v1236, 7
        %v1238 = vsub.s32 7, %v1237
        %v1239 = vrot.slane %v435, %v1238
        %v1240 = vlaneseq
        %v1241 = vshrl.u32 %v1240, 7
        %v1242 = vsub.s32 7, %v1241
        %v1243 = vrot.slane %v436, %v1242
        %v1244 = vlaneseq
        %v1245 = vshrl.u32 %v1244, 7
        %v1246 = vsub.s32 7, %v1245
        %v1247 = vrot.slane %v437, %v1246
        %v1248 = vlaneseq
        %v1249 = vshrl.u32 %v1248, 7
        %v1250 = vsub.s32 7, %v1249
        %v1251 = vrot.slane %v438, %v1250
        %v1252 = vmul.f32 %v1186, %v1191
        %v1253 = vmul.f32 %v1186, %v1195
        %v1254 = vmul.f32 %v1186, %v1199
        %v1255 = vmul.f32 %v1186, %v1203
        %v1256 = vmul.f32 %v1186, %v1207
        %v1257 = vmul.f32 %v1186, %v1211
        %v1258 = vmul.f32 %v1186, %v1215
        %v1259 = vmul.f32 %v1186, %v1219
        %v1260 = vmul.f32 %v1186, %v1223
        %v1261 = vmul.f32 %v1186, %v1227
        %v1262 = vmul.f32 %v1186, %v1231
        %v1263 = vmul.f32 %v1186, %v1235
        %v1264 = vmul.f32 %v1186, %v1239
        %v1265 = vmul.f32 %v1186, %v1243
        %v1266 = vmul.f32 %v1186, %v1247
        %v1267 = vmul.f32 %v1186, %v1251
        %v1268 = vadd.f32 %v1165, %v1252
        %v1269 = vadd.f32 %v1166, %v1253
        %v1270 = vadd.f32 %v1167, %v1254
        %v1271 = vadd.f32 %v1168, %v1255
        %v1272 = vadd.f32 %v1169, %v1256
        %v1273 = vadd.f32 %v1170, %v1257
        %v1274 = vadd.f32 %v1171, %v1258
        %v1275 = vadd.f32 %v1172, %v1259
        %v1276 = vadd.f32 %v1173, %v1260
        %v1277 = vadd.f32 %v1174, %v1261
        %v1278 = vadd.f32 %v1175, %v1262
        %v1279 = vadd.f32 %v1176, %v1263
        %v1280 = vadd.f32 %v1177, %v1264
        %v1281 = vadd.f32 %v1178, %v1265
        %v1282 = vadd.f32 %v1179, %v1266
        %v1283 = vadd.f32 %v1180, %v1267
        %v1284 = vld [vmem:[%s3] sm:$0x1]
        %v1285 = vld [vmem:[%s4] sm:$0x1]
        %1286 = vadd.xlane.f32.xlu0 %v1268
        %v1287 = vpop.xlane.xlu0 %1286
        %1288 = vadd.xlane.f32.xlu0 %v1269
        %v1289 = vpop.xlane.xlu0 %1288
        %1290 = vadd.xlane.f32.xlu0 %v1270
        %v1291 = vpop.xlane.xlu0 %1290
        %1292 = vadd.xlane.f32.xlu0 %v1271
        %v1293 = vpop.xlane.xlu0 %1292
        %1294 = vadd.xlane.f32.xlu0 %v1272
        %v1295 = vpop.xlane.xlu0 %1294
        %1296 = vadd.xlane.f32.xlu0 %v1273
        %v1297 = vpop.xlane.xlu0 %1296
        %1298 = vadd.xlane.f32.xlu0 %v1274
        %v1299 = vpop.xlane.xlu0 %1298
        %1300 = vadd.xlane.f32.xlu0 %v1275
        %v1301 = vpop.xlane.xlu0 %1300
        %1302 = vadd.xlane.f32.xlu0 %v1276
        %v1303 = vpop.xlane.xlu0 %1302
        %1304 = vadd.xlane.f32.xlu0 %v1277
        %v1305 = vpop.xlane.xlu0 %1304
        %1306 = vadd.xlane.f32.xlu0 %v1278
        %v1307 = vpop.xlane.xlu0 %1306
        %1308 = vadd.xlane.f32.xlu0 %v1279
        %v1309 = vpop.xlane.xlu0 %1308
        %1310 = vadd.xlane.f32.xlu0 %v1280
        %v1311 = vpop.xlane.xlu0 %1310
        %1312 = vadd.xlane.f32.xlu0 %v1281
        %v1313 = vpop.xlane.xlu0 %1312
        %1314 = vadd.xlane.f32.xlu0 %v1282
        %v1315 = vpop.xlane.xlu0 %1314
        %1316 = vadd.xlane.f32.xlu0 %v1283
        %v1317 = vpop.xlane.xlu0 %1316
        %v1318 = vrcp.pop 128.0
        %v1319 = vmul.f32 %v1287, %v1318
        %v1320 = vmul.f32 %v1289, %v1318
        %v1321 = vmul.f32 %v1291, %v1318
        %v1322 = vmul.f32 %v1293, %v1318
        %v1323 = vmul.f32 %v1295, %v1318
        %v1324 = vmul.f32 %v1297, %v1318
        %v1325 = vmul.f32 %v1299, %v1318
        %v1326 = vmul.f32 %v1301, %v1318
        %v1327 = vmul.f32 %v1303, %v1318
        %v1328 = vmul.f32 %v1305, %v1318
        %v1329 = vmul.f32 %v1307, %v1318
        %v1330 = vmul.f32 %v1309, %v1318
        %v1331 = vmul.f32 %v1311, %v1318
        %v1332 = vmul.f32 %v1313, %v1318
        %v1333 = vmul.f32 %v1315, %v1318
        %v1334 = vmul.f32 %v1317, %v1318
        %v1335 = vsub.f32 %v1268, %v1319
        %v1336 = vsub.f32 %v1269, %v1320
        %v1337 = vsub.f32 %v1270, %v1321
        %v1338 = vsub.f32 %v1271, %v1322
        %v1339 = vsub.f32 %v1272, %v1323
        %v1340 = vsub.f32 %v1273, %v1324
        %v1341 = vsub.f32 %v1274, %v1325
        %v1342 = vsub.f32 %v1275, %v1326
        %v1343 = vsub.f32 %v1276, %v1327
        %v1344 = vsub.f32 %v1277, %v1328
        %v1345 = vsub.f32 %v1278, %v1329
        %v1346 = vsub.f32 %v1279, %v1330
        %v1347 = vsub.f32 %v1280, %v1331
        %v1348 = vsub.f32 %v1281, %v1332
        %v1349 = vsub.f32 %v1282, %v1333
        %v1350 = vsub.f32 %v1283, %v1334
        %v1351 = vmul.f32 %v1335, %v1335
        %v1352 = vmul.f32 %v1336, %v1336
        %v1353 = vmul.f32 %v1337, %v1337
        %v1354 = vmul.f32 %v1338, %v1338
        %v1355 = vmul.f32 %v1339, %v1339
        %v1356 = vmul.f32 %v1340, %v1340
        %v1357 = vmul.f32 %v1341, %v1341
        %v1358 = vmul.f32 %v1342, %v1342
        %v1359 = vmul.f32 %v1343, %v1343
        %v1360 = vmul.f32 %v1344, %v1344
        %v1361 = vmul.f32 %v1345, %v1345
        %v1362 = vmul.f32 %v1346, %v1346
        %v1363 = vmul.f32 %v1347, %v1347
        %v1364 = vmul.f32 %v1348, %v1348
        %v1365 = vmul.f32 %v1349, %v1349
        %v1366 = vmul.f32 %v1350, %v1350
        %1367 = vadd.xlane.f32.xlu0 %v1351
        %v1368 = vpop.xlane.xlu0 %1367
        %1369 = vadd.xlane.f32.xlu0 %v1352
        %v1370 = vpop.xlane.xlu0 %1369
        %1371 = vadd.xlane.f32.xlu0 %v1353
        %v1372 = vpop.xlane.xlu0 %1371
        %1373 = vadd.xlane.f32.xlu0 %v1354
        %v1374 = vpop.xlane.xlu0 %1373
        %1375 = vadd.xlane.f32.xlu0 %v1355
        %v1376 = vpop.xlane.xlu0 %1375
        %1377 = vadd.xlane.f32.xlu0 %v1356
        %v1378 = vpop.xlane.xlu0 %1377
        %1379 = vadd.xlane.f32.xlu0 %v1357
        %v1380 = vpop.xlane.xlu0 %1379
        %1381 = vadd.xlane.f32.xlu0 %v1358
        %v1382 = vpop.xlane.xlu0 %1381
        %1383 = vadd.xlane.f32.xlu0 %v1359
        %v1384 = vpop.xlane.xlu0 %1383
        %1385 = vadd.xlane.f32.xlu0 %v1360
        %v1386 = vpop.xlane.xlu0 %1385
        %1387 = vadd.xlane.f32.xlu0 %v1361
        %v1388 = vpop.xlane.xlu0 %1387
        %1389 = vadd.xlane.f32.xlu0 %v1362
        %v1390 = vpop.xlane.xlu0 %1389
        %1391 = vadd.xlane.f32.xlu0 %v1363
        %v1392 = vpop.xlane.xlu0 %1391
        %1393 = vadd.xlane.f32.xlu0 %v1364
        %v1394 = vpop.xlane.xlu0 %1393
        %1395 = vadd.xlane.f32.xlu0 %v1365
        %v1396 = vpop.xlane.xlu0 %1395
        %1397 = vadd.xlane.f32.xlu0 %v1366
        %v1398 = vpop.xlane.xlu0 %1397
        %v1399 = vmul.f32 %v1368, %v1318
        %v1400 = vmul.f32 %v1370, %v1318
        %v1401 = vmul.f32 %v1372, %v1318
        %v1402 = vmul.f32 %v1374, %v1318
        %v1403 = vmul.f32 %v1376, %v1318
        %v1404 = vmul.f32 %v1378, %v1318
        %v1405 = vmul.f32 %v1380, %v1318
        %v1406 = vmul.f32 %v1382, %v1318
        %v1407 = vmul.f32 %v1384, %v1318
        %v1408 = vmul.f32 %v1386, %v1318
        %v1409 = vmul.f32 %v1388, %v1318
        %v1410 = vmul.f32 %v1390, %v1318
        %v1411 = vmul.f32 %v1392, %v1318
        %v1412 = vmul.f32 %v1394, %v1318
        %v1413 = vmul.f32 %v1396, %v1318
        %v1414 = vmul.f32 %v1398, %v1318
        %v1415 = vadd.f32 %v1399, 1e-12
        %v1416 = vadd.f32 %v1400, 1e-12
        %v1417 = vadd.f32 %v1401, 1e-12
        %v1418 = vadd.f32 %v1402, 1e-12
        %v1419 = vadd.f32 %v1403, 1e-12
        %v1420 = vadd.f32 %v1404, 1e-12
        %v1421 = vadd.f32 %v1405, 1e-12
        %v1422 = vadd.f32 %v1406, 1e-12
        %v1423 = vadd.f32 %v1407, 1e-12
        %v1424 = vadd.f32 %v1408, 1e-12
        %v1425 = vadd.f32 %v1409, 1e-12
        %v1426 = vadd.f32 %v1410, 1e-12
        %v1427 = vadd.f32 %v1411, 1e-12
        %v1428 = vadd.f32 %v1412, 1e-12
        %v1429 = vadd.f32 %v1413, 1e-12
        %v1430 = vadd.f32 %v1414, 1e-12
        %v1431 = vrsqrt.pop %v1415
        %v1432 = vrsqrt.pop %v1416
        %v1433 = vrsqrt.pop %v1417
        %v1434 = vrsqrt.pop %v1418
        %v1435 = vrsqrt.pop %v1419
        %v1436 = vrsqrt.pop %v1420
        %v1437 = vrsqrt.pop %v1421
        %v1438 = vrsqrt.pop %v1422
        %v1439 = vrsqrt.pop %v1423
        %v1440 = vrsqrt.pop %v1424
        %v1441 = vrsqrt.pop %v1425
        %v1442 = vrsqrt.pop %v1426
        %v1443 = vrsqrt.pop %v1427
        %v1444 = vrsqrt.pop %v1428
        %v1445 = vrsqrt.pop %v1429
        %v1446 = vrsqrt.pop %v1430
        %v1447 = vmul.f32 %v1335, %v1431
        %v1448 = vmul.f32 %v1336, %v1432
        %v1449 = vmul.f32 %v1337, %v1433
        %v1450 = vmul.f32 %v1338, %v1434
        %v1451 = vmul.f32 %v1339, %v1435
        %v1452 = vmul.f32 %v1340, %v1436
        %v1453 = vmul.f32 %v1341, %v1437
        %v1454 = vmul.f32 %v1342, %v1438
        %v1455 = vmul.f32 %v1343, %v1439
        %v1456 = vmul.f32 %v1344, %v1440
        %v1457 = vmul.f32 %v1345, %v1441
        %v1458 = vmul.f32 %v1346, %v1442
        %v1459 = vmul.f32 %v1347, %v1443
        %v1460 = vmul.f32 %v1348, %v1444
        %v1461 = vmul.f32 %v1349, %v1445
        %v1462 = vmul.f32 %v1350, %v1446
        %v1464 = vlaneseq
        %v1465 = vshrl.u32 %v1464, 7
        %v1466 = vsub.s32 0, %v1465
        %v1467 = vrot.slane %v1284, %v1466
        %v1469 = vmul.f32 %v1447, %v1467
        %v1470 = vmul.f32 %v1448, %v1467
        %v1471 = vmul.f32 %v1449, %v1467
        %v1472 = vmul.f32 %v1450, %v1467
        %v1473 = vmul.f32 %v1451, %v1467
        %v1474 = vmul.f32 %v1452, %v1467
        %v1475 = vmul.f32 %v1453, %v1467
        %v1476 = vmul.f32 %v1454, %v1467
        %v1477 = vmul.f32 %v1455, %v1467
        %v1478 = vmul.f32 %v1456, %v1467
        %v1479 = vmul.f32 %v1457, %v1467
        %v1480 = vmul.f32 %v1458, %v1467
        %v1481 = vmul.f32 %v1459, %v1467
        %v1482 = vmul.f32 %v1460, %v1467
        %v1483 = vmul.f32 %v1461, %v1467
        %v1484 = vmul.f32 %v1462, %v1467
        %v1486 = vlaneseq
        %v1487 = vshrl.u32 %v1486, 7
        %v1488 = vsub.s32 0, %v1487
        %v1489 = vrot.slane %v1285, %v1488
        %v1491 = vadd.f32 %v1469, %v1489
        %v1492 = vadd.f32 %v1470, %v1489
        %v1493 = vadd.f32 %v1471, %v1489
        %v1494 = vadd.f32 %v1472, %v1489
        %v1495 = vadd.f32 %v1473, %v1489
        %v1496 = vadd.f32 %v1474, %v1489
        %v1497 = vadd.f32 %v1475, %v1489
        %v1498 = vadd.f32 %v1476, %v1489
        %v1499 = vadd.f32 %v1477, %v1489
        %v1500 = vadd.f32 %v1478, %v1489
        %v1501 = vadd.f32 %v1479, %v1489
        %v1502 = vadd.f32 %v1480, %v1489
        %v1503 = vadd.f32 %v1481, %v1489
        %v1504 = vadd.f32 %v1482, %v1489
        %v1505 = vadd.f32 %v1483, %v1489
        %v1506 = vadd.f32 %v1484, %v1489
        %v1507 = vpack.c.bf16 %v1492, %v1491
        %v1508 = vpack.c.bf16 %v1494, %v1493
        %v1509 = vpack.c.bf16 %v1496, %v1495
        %v1510 = vpack.c.bf16 %v1498, %v1497
        %v1511 = vpack.c.bf16 %v1500, %v1499
        %v1512 = vpack.c.bf16 %v1502, %v1501
        %v1513 = vpack.c.bf16 %v1504, %v1503
        %v1514 = vpack.c.bf16 %v1506, %v1505
        %v1515 = vld [vmem:[%s5] sm:$0xf]
        %v1516 = vld [vmem:[%s5 + $0x4] sm:$0xf]
        %v1517 = vld [vmem:[%s5 + $0x8] sm:$0xf]
        %v1518 = vld [vmem:[%s5 + $0xc] sm:$0xf]
        %v1519 = vld [vmem:[%s5 + $0x10] sm:$0xf]
        %v1520 = vld [vmem:[%s5 + $0x14] sm:$0xf]
        %v1521 = vld [vmem:[%s5 + $0x18] sm:$0xf]
        %v1522 = vld [vmem:[%s5 + $0x1c] sm:$0xf]
        %v1523 = vld [vmem:[%s5 + $0x20] sm:$0xf]
        %v1524 = vld [vmem:[%s5 + $0x24] sm:$0xf]
        %v1525 = vld [vmem:[%s5 + $0x28] sm:$0xf]
        %v1526 = vld [vmem:[%s5 + $0x2c] sm:$0xf]
        %v1527 = vld [vmem:[%s5 + $0x30] sm:$0xf]
        %v1528 = vld [vmem:[%s5 + $0x34] sm:$0xf]
        %v1529 = vld [vmem:[%s5 + $0x38] sm:$0xf]
        %v1530 = vld [vmem:[%s5 + $0x3c] sm:$0xf]
        %v1531 = vld [vmem:[%s6] sm:$0x1]
        %v1533 = vlaneseq
        %v1534 = vshrl.u32 %v1533, 7
        %v1535 = vsub.s32 0, %v1534
        %v1536 = vrot.slane %v1531, %v1535
        %v1554 = vunpack.c.l.b16 %v1515
        %v1555 = vunpack.c.l.b16 %v1516
        %v1556 = vunpack.c.l.b16 %v1517
        %v1557 = vunpack.c.l.b16 %v1518
        %v1558 = vunpack.c.l.b16 %v1519
        %v1559 = vunpack.c.l.b16 %v1520
        %v1560 = vunpack.c.l.b16 %v1521
        %v1561 = vunpack.c.l.b16 %v1522
        %v1562 = vunpack.c.l.b16 %v1523
        %v1563 = vunpack.c.l.b16 %v1524
        %v1564 = vunpack.c.l.b16 %v1525
        %v1565 = vunpack.c.l.b16 %v1526
        %v1566 = vunpack.c.l.b16 %v1527
        %v1567 = vunpack.c.l.b16 %v1528
        %v1568 = vunpack.c.l.b16 %v1529
        %v1569 = vunpack.c.l.b16 %v1530
        %v1570 = vpack.c.b16 %v1555, %v1554
        %v1571 = vpack.c.b16 %v1557, %v1556
        %v1572 = vpack.c.b16 %v1559, %v1558
        %v1573 = vpack.c.b16 %v1561, %v1560
        %v1574 = vpack.c.b16 %v1563, %v1562
        %v1575 = vpack.c.b16 %v1565, %v1564
        %v1576 = vpack.c.b16 %v1567, %v1566
        %v1577 = vpack.c.b16 %v1569, %v1568
        %1586 = vmatprep.subr.bf16.mxu0 0
        %1587 = vmatpush1.bf16.msra.mxu0 %v1577
        %1588 = vmatprep.subr.bf16.mxu0 0
        %1589 = vmatpush1.bf16.msra.mxu0 %v1576
        %1590 = vmatprep.subr.bf16.mxu0 0
        %1591 = vmatpush1.bf16.msra.mxu0 %v1575
        %1592 = vmatprep.subr.bf16.mxu0 0
        %1593 = vmatpush1.bf16.msra.mxu0 %v1574
        %1594 = vmatprep.subr.bf16.mxu0 0
        %1595 = vmatpush1.bf16.msra.mxu0 %v1573
        %1596 = vmatprep.subr.bf16.mxu0 0
        %1597 = vmatpush1.bf16.msra.mxu0 %v1572
        %1598 = vmatprep.subr.bf16.mxu0 0
        %1599 = vmatpush1.bf16.msra.mxu0 %v1571
        %1600 = vmatprep.subr.bf16.mxu0 0
        %1601 = vmatpush1.bf16.msra.mxu0 %v1570
        %1602 = vmatprep.subr.bf16.mxu0 0
        %1603 = vmatpush2.bf16.msra.mxu0 0
        %1604 = vmatprep.subr.bf16.mxu0 0
        %1605 = vmatpush2.bf16.msra.mxu0 0
        %1606 = vmatprep.subr.bf16.mxu0 0
        %1607 = vmatpush2.bf16.msra.mxu0 0
        %1608 = vmatprep.subr.bf16.mxu0 0
        %1609 = vmatpush2.bf16.msra.mxu0 0
        %1610 = vmatprep.subr.bf16.mxu0 0
        %1611 = vmatpush2.bf16.msra.mxu0 0
        %1612 = vmatprep.subr.bf16.mxu0 0
        %1613 = vmatpush2.bf16.msra.mxu0 0
        %1614 = vmatprep.subr.bf16.mxu0 0
        %1615 = vmatpush2.bf16.msra.mxu0 0
        %1616 = vmatprep.subr.bf16.mxu0 0
        %1617 = vmatpush2.bf16.msra.mxu0 0
        %1618 = vmatprep.mubr.bf16.mxu0 0
        %1619 = vmatmul.mubr.bf16.gmra.mxu0 %v1507
        %v1620 = vpop.f32.mrf.mxu0
        %v1621 = vadd.f32 %v1536, %v1620
        %v1622 = vpop.f32.mrf.mxu0
        %v1623 = vpop.f32.mrf.mxu0
        %v1624 = vadd.f32 %v1536, %v1623
        %v1625 = vpop.f32.mrf.mxu0
        %1626 = vmatprep.mubr.bf16.mxu0 0
        %1627 = vmatmul.mubr.bf16.gmra.mxu0 %v1508
        %v1628 = vpop.f32.mrf.mxu0
        %v1629 = vadd.f32 %v1536, %v1628
        %v1630 = vpop.f32.mrf.mxu0
        %v1631 = vpop.f32.mrf.mxu0
        %v1632 = vadd.f32 %v1536, %v1631
        %v1633 = vpop.f32.mrf.mxu0
        %1634 = vmatprep.mubr.bf16.mxu0 0
        %1635 = vmatmul.mubr.bf16.gmra.mxu0 %v1509
        %v1636 = vpop.f32.mrf.mxu0
        %v1637 = vadd.f32 %v1536, %v1636
        %v1638 = vpop.f32.mrf.mxu0
        %v1639 = vpop.f32.mrf.mxu0
        %v1640 = vadd.f32 %v1536, %v1639
        %v1641 = vpop.f32.mrf.mxu0
        %1642 = vmatprep.mubr.bf16.mxu0 0
        %1643 = vmatmul.mubr.bf16.gmra.mxu0 %v1510
        %v1644 = vpop.f32.mrf.mxu0
        %v1645 = vadd.f32 %v1536, %v1644
        %v1646 = vpop.f32.mrf.mxu0
        %v1647 = vpop.f32.mrf.mxu0
        %v1648 = vadd.f32 %v1536, %v1647
        %v1649 = vpop.f32.mrf.mxu0
        %1650 = vmatprep.mubr.bf16.mxu0 0
        %1651 = vmatmul.mubr.bf16.gmra.mxu0 %v1511
        %v1652 = vpop.f32.mrf.mxu0
        %v1653 = vadd.f32 %v1536, %v1652
        %v1654 = vpop.f32.mrf.mxu0
        %v1655 = vpop.f32.mrf.mxu0
        %v1656 = vadd.f32 %v1536, %v1655
        %v1657 = vpop.f32.mrf.mxu0
        %1658 = vmatprep.mubr.bf16.mxu0 0
        %1659 = vmatmul.mubr.bf16.gmra.mxu0 %v1512
        %v1660 = vpop.f32.mrf.mxu0
        %v1661 = vadd.f32 %v1536, %v1660
        %v1662 = vpop.f32.mrf.mxu0
        %v1663 = vpop.f32.mrf.mxu0
        %v1664 = vadd.f32 %v1536, %v1663
        %v1665 = vpop.f32.mrf.mxu0
        %1666 = vmatprep.mubr.bf16.mxu0 0
        %1667 = vmatmul.mubr.bf16.gmra.mxu0 %v1513
        %v1668 = vpop.f32.mrf.mxu0
        %v1669 = vadd.f32 %v1536, %v1668
        %v1670 = vpop.f32.mrf.mxu0
        %v1671 = vpop.f32.mrf.mxu0
        %v1672 = vadd.f32 %v1536, %v1671
        %v1673 = vpop.f32.mrf.mxu0
        %1674 = vmatprep.mubr.bf16.mxu0 0
        %1675 = vmatmul.mubr.bf16.gmra.mxu0 %v1514
        %v1676 = vpop.f32.mrf.mxu0
        %v1677 = vadd.f32 %v1536, %v1676
        %v1678 = vpop.f32.mrf.mxu0
        %v1679 = vpop.f32.mrf.mxu0
        %v1680 = vadd.f32 %v1536, %v1679
        %v1681 = vpop.f32.mrf.mxu0
        %1682 = vdwg.mxu0
        %v1683 = vmul.f32 %v1621, 0.5
        %v1684 = vmul.f32 %v1624, 0.5
        %v1685 = vmul.f32 %v1629, 0.5
        %v1686 = vmul.f32 %v1632, 0.5
        %v1687 = vmul.f32 %v1637, 0.5
        %v1688 = vmul.f32 %v1640, 0.5
        %v1689 = vmul.f32 %v1645, 0.5
        %v1690 = vmul.f32 %v1648, 0.5
        %v1691 = vmul.f32 %v1653, 0.5
        %v1692 = vmul.f32 %v1656, 0.5
        %v1693 = vmul.f32 %v1661, 0.5
        %v1694 = vmul.f32 %v1664, 0.5
        %v1695 = vmul.f32 %v1669, 0.5
        %v1696 = vmul.f32 %v1672, 0.5
        %v1697 = vmul.f32 %v1677, 0.5
        %v1698 = vmul.f32 %v1680, 0.5
        %v1699 = vmul.f32 %v1621, 0.70710677
        %v1700 = vmul.f32 %v1624, 0.70710677
        %v1701 = vmul.f32 %v1629, 0.70710677
        %v1702 = vmul.f32 %v1632, 0.70710677
        %v1703 = vmul.f32 %v1637, 0.70710677
        %v1704 = vmul.f32 %v1640, 0.70710677
        %v1705 = vmul.f32 %v1645, 0.70710677
        %v1706 = vmul.f32 %v1648, 0.70710677
        %v1707 = vmul.f32 %v1653, 0.70710677
        %v1708 = vmul.f32 %v1656, 0.70710677
        %v1709 = vmul.f32 %v1661, 0.70710677
        %v1710 = vmul.f32 %v1664, 0.70710677
        %v1711 = vmul.f32 %v1669, 0.70710677
        %v1712 = vmul.f32 %v1672, 0.70710677
        %v1713 = vmul.f32 %v1677, 0.70710677
        %v1714 = vmul.f32 %v1680, 0.70710677
        %v1715 = verf.f32.pop %v1699
        %v1716 = verf.f32.pop %v1700
        %v1717 = verf.f32.pop %v1701
        %v1718 = verf.f32.pop %v1702
        %v1719 = verf.f32.pop %v1703
        %v1720 = verf.f32.pop %v1704
        %v1721 = verf.f32.pop %v1705
        %v1722 = verf.f32.pop %v1706
        %v1723 = verf.f32.pop %v1707
        %v1724 = verf.f32.pop %v1708
        %v1725 = verf.f32.pop %v1709
        %v1726 = verf.f32.pop %v1710
        %v1727 = verf.f32.pop %v1711
        %v1728 = verf.f32.pop %v1712
        %v1729 = verf.f32.pop %v1713
        %v1730 = verf.f32.pop %v1714
        %v1731 = vadd.f32 %v1715, 1.0
        %v1732 = vadd.f32 %v1716, 1.0
        %v1733 = vadd.f32 %v1717, 1.0
        %v1734 = vadd.f32 %v1718, 1.0
        %v1735 = vadd.f32 %v1719, 1.0
        %v1736 = vadd.f32 %v1720, 1.0
        %v1737 = vadd.f32 %v1721, 1.0
        %v1738 = vadd.f32 %v1722, 1.0
        %v1739 = vadd.f32 %v1723, 1.0
        %v1740 = vadd.f32 %v1724, 1.0
        %v1741 = vadd.f32 %v1725, 1.0
        %v1742 = vadd.f32 %v1726, 1.0
        %v1743 = vadd.f32 %v1727, 1.0
        %v1744 = vadd.f32 %v1728, 1.0
        %v1745 = vadd.f32 %v1729, 1.0
        %v1746 = vadd.f32 %v1730, 1.0
        %v1747 = vmul.f32 %v1683, %v1731
        %v1748 = vmul.f32 %v1684, %v1732
        %v1749 = vmul.f32 %v1685, %v1733
        %v1750 = vmul.f32 %v1686, %v1734
        %v1751 = vmul.f32 %v1687, %v1735
        %v1752 = vmul.f32 %v1688, %v1736
        %v1753 = vmul.f32 %v1689, %v1737
        %v1754 = vmul.f32 %v1690, %v1738
        %v1755 = vmul.f32 %v1691, %v1739
        %v1756 = vmul.f32 %v1692, %v1740
        %v1757 = vmul.f32 %v1693, %v1741
        %v1758 = vmul.f32 %v1694, %v1742
        %v1759 = vmul.f32 %v1695, %v1743
        %v1760 = vmul.f32 %v1696, %v1744
        %v1761 = vmul.f32 %v1697, %v1745
        %v1762 = vmul.f32 %v1698, %v1746
        %v1763 = vpack.c.bf16 %v1748, %v1747
        %v1764 = vpack.c.bf16 %v1750, %v1749
        %v1765 = vpack.c.bf16 %v1752, %v1751
        %v1766 = vpack.c.bf16 %v1754, %v1753
        %v1767 = vpack.c.bf16 %v1756, %v1755
        %v1768 = vpack.c.bf16 %v1758, %v1757
        %v1769 = vpack.c.bf16 %v1760, %v1759
        %v1770 = vpack.c.bf16 %v1762, %v1761
        %v1771 = vld [vmem:[#allocation5] sm:$0xf]
        %v1772 = vld [vmem:[#allocation5 + $0x4] sm:$0xf]
        %v1773 = vld [vmem:[#allocation5 + $0x8] sm:$0xf]
        %v1774 = vld [vmem:[#allocation5 + $0xc] sm:$0xf]
        %v1775 = vld [vmem:[#allocation5 + $0x10] sm:$0xf]
        %v1776 = vld [vmem:[#allocation5 + $0x14] sm:$0xf]
        %v1777 = vld [vmem:[#allocation5 + $0x18] sm:$0xf]
        %v1778 = vld [vmem:[#allocation5 + $0x1c] sm:$0xf]
        %v1779 = vld [vmem:[#allocation5 + $0x20] sm:$0xf]
        %v1780 = vld [vmem:[#allocation5 + $0x24] sm:$0xf]
        %v1781 = vld [vmem:[#allocation5 + $0x28] sm:$0xf]
        %v1782 = vld [vmem:[#allocation5 + $0x2c] sm:$0xf]
        %v1783 = vld [vmem:[#allocation5 + $0x30] sm:$0xf]
        %v1784 = vld [vmem:[#allocation5 + $0x34] sm:$0xf]
        %v1785 = vld [vmem:[#allocation5 + $0x38] sm:$0xf]
        %v1786 = vld [vmem:[#allocation5 + $0x3c] sm:$0xf]
        %v1787 = vld [vmem:[%s8] sm:$0x1]
        %v1789 = vlaneseq
        %v1790 = vshrl.u32 %v1789, 7
        %v1791 = vsub.s32 0, %v1790
        %v1792 = vrot.slane %v1787, %v1791
        %v1810 = vunpack.c.l.b16 %v1771
        %v1811 = vunpack.c.l.b16 %v1772
        %v1812 = vunpack.c.l.b16 %v1773
        %v1813 = vunpack.c.l.b16 %v1774
        %v1814 = vunpack.c.l.b16 %v1775
        %v1815 = vunpack.c.l.b16 %v1776
        %v1816 = vunpack.c.l.b16 %v1777
        %v1817 = vunpack.c.l.b16 %v1778
        %v1818 = vunpack.c.l.b16 %v1779
        %v1819 = vunpack.c.l.b16 %v1780
        %v1820 = vunpack.c.l.b16 %v1781
        %v1821 = vunpack.c.l.b16 %v1782
        %v1822 = vunpack.c.l.b16 %v1783
        %v1823 = vunpack.c.l.b16 %v1784
        %v1824 = vunpack.c.l.b16 %v1785
        %v1825 = vunpack.c.l.b16 %v1786
        %v1826 = vpack.c.b16 %v1811, %v1810
        %v1827 = vpack.c.b16 %v1813, %v1812
        %v1828 = vpack.c.b16 %v1815, %v1814
        %v1829 = vpack.c.b16 %v1817, %v1816
        %v1830 = vpack.c.b16 %v1819, %v1818
        %v1831 = vpack.c.b16 %v1821, %v1820
        %v1832 = vpack.c.b16 %v1823, %v1822
        %v1833 = vpack.c.b16 %v1825, %v1824
        %1842 = vmatprep.subr.bf16.mxu0 0
        %1843 = vmatpush1.bf16.msra.mxu0 %v1833
        %1844 = vmatprep.subr.bf16.mxu0 0
        %1845 = vmatpush1.bf16.msra.mxu0 %v1832
        %1846 = vmatprep.subr.bf16.mxu0 0
        %1847 = vmatpush1.bf16.msra.mxu0 %v1831
        %1848 = vmatprep.subr.bf16.mxu0 0
        %1849 = vmatpush1.bf16.msra.mxu0 %v1830
        %1850 = vmatprep.subr.bf16.mxu0 0
        %1851 = vmatpush1.bf16.msra.mxu0 %v1829
        %1852 = vmatprep.subr.bf16.mxu0 0
        %1853 = vmatpush1.bf16.msra.mxu0 %v1828
        %1854 = vmatprep.subr.bf16.mxu0 0
        %1855 = vmatpush1.bf16.msra.mxu0 %v1827
        %1856 = vmatprep.subr.bf16.mxu0 0
        %1857 = vmatpush1.bf16.msra.mxu0 %v1826
        %1858 = vmatprep.subr.bf16.mxu0 0
        %1859 = vmatpush2.bf16.msra.mxu0 0
        %1860 = vmatprep.subr.bf16.mxu0 0
        %1861 = vmatpush2.bf16.msra.mxu0 0
        %1862 = vmatprep.subr.bf16.mxu0 0
        %1863 = vmatpush2.bf16.msra.mxu0 0
        %1864 = vmatprep.subr.bf16.mxu0 0
        %1865 = vmatpush2.bf16.msra.mxu0 0
        %1866 = vmatprep.subr.bf16.mxu0 0
        %1867 = vmatpush2.bf16.msra.mxu0 0
        %1868 = vmatprep.subr.bf16.mxu0 0
        %1869 = vmatpush2.bf16.msra.mxu0 0
        %1870 = vmatprep.subr.bf16.mxu0 0
        %1871 = vmatpush2.bf16.msra.mxu0 0
        %1872 = vmatprep.subr.bf16.mxu0 0
        %1873 = vmatpush2.bf16.msra.mxu0 0
        %1874 = vmatprep.mubr.bf16.mxu0 0
        %1875 = vmatmul.mubr.bf16.gmra.mxu0 %v1763
        %v1876 = vpop.f32.mrf.mxu0
        %v1877 = vadd.f32 %v1792, %v1876
        %v1878 = vpop.f32.mrf.mxu0
        %v1879 = vpop.f32.mrf.mxu0
        %v1880 = vadd.f32 %v1792, %v1879
        %v1881 = vpop.f32.mrf.mxu0
        %1882 = vmatprep.mubr.bf16.mxu0 0
        %1883 = vmatmul.mubr.bf16.gmra.mxu0 %v1764
        %v1884 = vpop.f32.mrf.mxu0
        %v1885 = vadd.f32 %v1792, %v1884
        %v1886 = vpop.f32.mrf.mxu0
        %v1887 = vpop.f32.mrf.mxu0
        %v1888 = vadd.f32 %v1792, %v1887
        %v1889 = vpop.f32.mrf.mxu0
        %1890 = vmatprep.mubr.bf16.mxu0 0
        %1891 = vmatmul.mubr.bf16.gmra.mxu0 %v1765
        %v1892 = vpop.f32.mrf.mxu0
        %v1893 = vadd.f32 %v1792, %v1892
        %v1894 = vpop.f32.mrf.mxu0
        %v1895 = vpop.f32.mrf.mxu0
        %v1896 = vadd.f32 %v1792, %v1895
        %v1897 = vpop.f32.mrf.mxu0
        %1898 = vmatprep.mubr.bf16.mxu0 0
        %1899 = vmatmul.mubr.bf16.gmra.mxu0 %v1766
        %v1900 = vpop.f32.mrf.mxu0
        %v1901 = vadd.f32 %v1792, %v1900
        %v1902 = vpop.f32.mrf.mxu0
        %v1903 = vpop.f32.mrf.mxu0
        %v1904 = vadd.f32 %v1792, %v1903
        %v1905 = vpop.f32.mrf.mxu0
        %1906 = vmatprep.mubr.bf16.mxu0 0
        %1907 = vmatmul.mubr.bf16.gmra.mxu0 %v1767
        %v1908 = vpop.f32.mrf.mxu0
        %v1909 = vadd.f32 %v1792, %v1908
        %v1910 = vpop.f32.mrf.mxu0
        %v1911 = vpop.f32.mrf.mxu0
        %v1912 = vadd.f32 %v1792, %v1911
        %v1913 = vpop.f32.mrf.mxu0
        %1914 = vmatprep.mubr.bf16.mxu0 0
        %1915 = vmatmul.mubr.bf16.gmra.mxu0 %v1768
        %v1916 = vpop.f32.mrf.mxu0
        %v1917 = vadd.f32 %v1792, %v1916
        %v1918 = vpop.f32.mrf.mxu0
        %v1919 = vpop.f32.mrf.mxu0
        %v1920 = vadd.f32 %v1792, %v1919
        %v1921 = vpop.f32.mrf.mxu0
        %1922 = vmatprep.mubr.bf16.mxu0 0
        %1923 = vmatmul.mubr.bf16.gmra.mxu0 %v1769
        %v1924 = vpop.f32.mrf.mxu0
        %v1925 = vadd.f32 %v1792, %v1924
        %v1926 = vpop.f32.mrf.mxu0
        %v1927 = vpop.f32.mrf.mxu0
        %v1928 = vadd.f32 %v1792, %v1927
        %v1929 = vpop.f32.mrf.mxu0
        %1930 = vmatprep.mubr.bf16.mxu0 0
        %1931 = vmatmul.mubr.bf16.gmra.mxu0 %v1770
        %v1932 = vpop.f32.mrf.mxu0
        %v1933 = vadd.f32 %v1792, %v1932
        %v1934 = vpop.f32.mrf.mxu0
        %v1935 = vpop.f32.mrf.mxu0
        %v1936 = vadd.f32 %v1792, %v1935
        %v1937 = vpop.f32.mrf.mxu0
        %1938 = vdwg.mxu0
        %v1939 = vadd.f32 %v1491, %v1877
        %v1940 = vadd.f32 %v1492, %v1880
        %v1941 = vadd.f32 %v1493, %v1885
        %v1942 = vadd.f32 %v1494, %v1888
        %v1943 = vadd.f32 %v1495, %v1893
        %v1944 = vadd.f32 %v1496, %v1896
        %v1945 = vadd.f32 %v1497, %v1901
        %v1946 = vadd.f32 %v1498, %v1904
        %v1947 = vadd.f32 %v1499, %v1909
        %v1948 = vadd.f32 %v1500, %v1912
        %v1949 = vadd.f32 %v1501, %v1917
        %v1950 = vadd.f32 %v1502, %v1920
        %v1951 = vadd.f32 %v1503, %v1925
        %v1952 = vadd.f32 %v1504, %v1928
        %v1953 = vadd.f32 %v1505, %v1933
        %v1954 = vadd.f32 %v1506, %v1936
        %v1955 = vld [vmem:[%s9] sm:$0x1]
        %v1956 = vld [vmem:[%s10] sm:$0x1]
        %1957 = vadd.xlane.f32.xlu0 %v1939
        %v1958 = vpop.xlane.xlu0 %1957
        %1959 = vadd.xlane.f32.xlu0 %v1940
        %v1960 = vpop.xlane.xlu0 %1959
        %1961 = vadd.xlane.f32.xlu0 %v1941
        %v1962 = vpop.xlane.xlu0 %1961
        %1963 = vadd.xlane.f32.xlu0 %v1942
        %v1964 = vpop.xlane.xlu0 %1963
        %1965 = vadd.xlane.f32.xlu0 %v1943
        %v1966 = vpop.xlane.xlu0 %1965
        %1967 = vadd.xlane.f32.xlu0 %v1944
        %v1968 = vpop.xlane.xlu0 %1967
        %1969 = vadd.xlane.f32.xlu0 %v1945
        %v1970 = vpop.xlane.xlu0 %1969
        %1971 = vadd.xlane.f32.xlu0 %v1946
        %v1972 = vpop.xlane.xlu0 %1971
        %1973 = vadd.xlane.f32.xlu0 %v1947
        %v1974 = vpop.xlane.xlu0 %1973
        %1975 = vadd.xlane.f32.xlu0 %v1948
        %v1976 = vpop.xlane.xlu0 %1975
        %1977 = vadd.xlane.f32.xlu0 %v1949
        %v1978 = vpop.xlane.xlu0 %1977
        %1979 = vadd.xlane.f32.xlu0 %v1950
        %v1980 = vpop.xlane.xlu0 %1979
        %1981 = vadd.xlane.f32.xlu0 %v1951
        %v1982 = vpop.xlane.xlu0 %1981
        %1983 = vadd.xlane.f32.xlu0 %v1952
        %v1984 = vpop.xlane.xlu0 %1983
        %1985 = vadd.xlane.f32.xlu0 %v1953
        %v1986 = vpop.xlane.xlu0 %1985
        %1987 = vadd.xlane.f32.xlu0 %v1954
        %v1988 = vpop.xlane.xlu0 %1987
        %v1989 = vmul.f32 %v1958, %v1318
        %v1990 = vmul.f32 %v1960, %v1318
        %v1991 = vmul.f32 %v1962, %v1318
        %v1992 = vmul.f32 %v1964, %v1318
        %v1993 = vmul.f32 %v1966, %v1318
        %v1994 = vmul.f32 %v1968, %v1318
        %v1995 = vmul.f32 %v1970, %v1318
        %v1996 = vmul.f32 %v1972, %v1318
        %v1997 = vmul.f32 %v1974, %v1318
        %v1998 = vmul.f32 %v1976, %v1318
        %v1999 = vmul.f32 %v1978, %v1318
        %v2000 = vmul.f32 %v1980, %v1318
        %v2001 = vmul.f32 %v1982, %v1318
        %v2002 = vmul.f32 %v1984, %v1318
        %v2003 = vmul.f32 %v1986, %v1318
        %v2004 = vmul.f32 %v1988, %v1318
        %v2005 = vsub.f32 %v1939, %v1989
        %v2006 = vsub.f32 %v1940, %v1990
        %v2007 = vsub.f32 %v1941, %v1991
        %v2008 = vsub.f32 %v1942, %v1992
        %v2009 = vsub.f32 %v1943, %v1993
        %v2010 = vsub.f32 %v1944, %v1994
        %v2011 = vsub.f32 %v1945, %v1995
        %v2012 = vsub.f32 %v1946, %v1996
        %v2013 = vsub.f32 %v1947, %v1997
        %v2014 = vsub.f32 %v1948, %v1998
        %v2015 = vsub.f32 %v1949, %v1999
        %v2016 = vsub.f32 %v1950, %v2000
        %v2017 = vsub.f32 %v1951, %v2001
        %v2018 = vsub.f32 %v1952, %v2002
        %v2019 = vsub.f32 %v1953, %v2003
        %v2020 = vsub.f32 %v1954, %v2004
        %v2021 = vmul.f32 %v2005, %v2005
        %v2022 = vmul.f32 %v2006, %v2006
        %v2023 = vmul.f32 %v2007, %v2007
        %v2024 = vmul.f32 %v2008, %v2008
        %v2025 = vmul.f32 %v2009, %v2009
        %v2026 = vmul.f32 %v2010, %v2010
        %v2027 = vmul.f32 %v2011, %v2011
        %v2028 = vmul.f32 %v2012, %v2012
        %v2029 = vmul.f32 %v2013, %v2013
        %v2030 = vmul.f32 %v2014, %v2014
        %v2031 = vmul.f32 %v2015, %v2015
        %v2032 = vmul.f32 %v2016, %v2016
        %v2033 = vmul.f32 %v2017, %v2017
        %v2034 = vmul.f32 %v2018, %v2018
        %v2035 = vmul.f32 %v2019, %v2019
        %v2036 = vmul.f32 %v2020, %v2020
        %2037 = vadd.xlane.f32.xlu0 %v2021
        %v2038 = vpop.xlane.xlu0 %2037
        %2039 = vadd.xlane.f32.xlu0 %v2022
        %v2040 = vpop.xlane.xlu0 %2039
        %2041 = vadd.xlane.f32.xlu0 %v2023
        %v2042 = vpop.xlane.xlu0 %2041
        %2043 = vadd.xlane.f32.xlu0 %v2024
        %v2044 = vpop.xlane.xlu0 %2043
        %2045 = vadd.xlane.f32.xlu0 %v2025
        %v2046 = vpop.xlane.xlu0 %2045
        %2047 = vadd.xlane.f32.xlu0 %v2026
        %v2048 = vpop.xlane.xlu0 %2047
        %2049 = vadd.xlane.f32.xlu0 %v2027
        %v2050 = vpop.xlane.xlu0 %2049
        %2051 = vadd.xlane.f32.xlu0 %v2028
        %v2052 = vpop.xlane.xlu0 %2051
        %2053 = vadd.xlane.f32.xlu0 %v2029
        %v2054 = vpop.xlane.xlu0 %2053
        %2055 = vadd.xlane.f32.xlu0 %v2030
        %v2056 = vpop.xlane.xlu0 %2055
        %2057 = vadd.xlane.f32.xlu0 %v2031
        %v2058 = vpop.xlane.xlu0 %2057
        %2059 = vadd.xlane.f32.xlu0 %v2032
        %v2060 = vpop.xlane.xlu0 %2059
        %2061 = vadd.xlane.f32.xlu0 %v2033
        %v2062 = vpop.xlane.xlu0 %2061
        %2063 = vadd.xlane.f32.xlu0 %v2034
        %v2064 = vpop.xlane.xlu0 %2063
        %2065 = vadd.xlane.f32.xlu0 %v2035
        %v2066 = vpop.xlane.xlu0 %2065
        %2067 = vadd.xlane.f32.xlu0 %v2036
        %v2068 = vpop.xlane.xlu0 %2067
        %v2069 = vmul.f32 %v2038, %v1318
        %v2070 = vmul.f32 %v2040, %v1318
        %v2071 = vmul.f32 %v2042, %v1318
        %v2072 = vmul.f32 %v2044, %v1318
        %v2073 = vmul.f32 %v2046, %v1318
        %v2074 = vmul.f32 %v2048, %v1318
        %v2075 = vmul.f32 %v2050, %v1318
        %v2076 = vmul.f32 %v2052, %v1318
        %v2077 = vmul.f32 %v2054, %v1318
        %v2078 = vmul.f32 %v2056, %v1318
        %v2079 = vmul.f32 %v2058, %v1318
        %v2080 = vmul.f32 %v2060, %v1318
        %v2081 = vmul.f32 %v2062, %v1318
        %v2082 = vmul.f32 %v2064, %v1318
        %v2083 = vmul.f32 %v2066, %v1318
        %v2084 = vmul.f32 %v2068, %v1318
        %v2085 = vadd.f32 %v2069, 1e-12
        %v2086 = vadd.f32 %v2070, 1e-12
        %v2087 = vadd.f32 %v2071, 1e-12
        %v2088 = vadd.f32 %v2072, 1e-12
        %v2089 = vadd.f32 %v2073, 1e-12
        %v2090 = vadd.f32 %v2074, 1e-12
        %v2091 = vadd.f32 %v2075, 1e-12
        %v2092 = vadd.f32 %v2076, 1e-12
        %v2093 = vadd.f32 %v2077, 1e-12
        %v2094 = vadd.f32 %v2078, 1e-12
        %v2095 = vadd.f32 %v2079, 1e-12
        %v2096 = vadd.f32 %v2080, 1e-12
        %v2097 = vadd.f32 %v2081, 1e-12
        %v2098 = vadd.f32 %v2082, 1e-12
        %v2099 = vadd.f32 %v2083, 1e-12
        %v2100 = vadd.f32 %v2084, 1e-12
        %v2101 = vrsqrt.pop %v2085
        %v2102 = vrsqrt.pop %v2086
        %v2103 = vrsqrt.pop %v2087
        %v2104 = vrsqrt.pop %v2088
        %v2105 = vrsqrt.pop %v2089
        %v2106 = vrsqrt.pop %v2090
        %v2107 = vrsqrt.pop %v2091
        %v2108 = vrsqrt.pop %v2092
        %v2109 = vrsqrt.pop %v2093
        %v2110 = vrsqrt.pop %v2094
        %v2111 = vrsqrt.pop %v2095
        %v2112 = vrsqrt.pop %v2096
        %v2113 = vrsqrt.pop %v2097
        %v2114 = vrsqrt.pop %v2098
        %v2115 = vrsqrt.pop %v2099
        %v2116 = vrsqrt.pop %v2100
        %v2117 = vmul.f32 %v2005, %v2101
        %v2118 = vmul.f32 %v2006, %v2102
        %v2119 = vmul.f32 %v2007, %v2103
        %v2120 = vmul.f32 %v2008, %v2104
        %v2121 = vmul.f32 %v2009, %v2105
        %v2122 = vmul.f32 %v2010, %v2106
        %v2123 = vmul.f32 %v2011, %v2107
        %v2124 = vmul.f32 %v2012, %v2108
        %v2125 = vmul.f32 %v2013, %v2109
        %v2126 = vmul.f32 %v2014, %v2110
        %v2127 = vmul.f32 %v2015, %v2111
        %v2128 = vmul.f32 %v2016, %v2112
        %v2129 = vmul.f32 %v2017, %v2113
        %v2130 = vmul.f32 %v2018, %v2114
        %v2131 = vmul.f32 %v2019, %v2115
        %v2132 = vmul.f32 %v2020, %v2116
        %v2134 = vlaneseq
        %v2135 = vshrl.u32 %v2134, 7
        %v2136 = vsub.s32 0, %v2135
        %v2137 = vrot.slane %v1955, %v2136
        %v2139 = vmul.f32 %v2117, %v2137
        %v2140 = vmul.f32 %v2118, %v2137
        %v2141 = vmul.f32 %v2119, %v2137
        %v2142 = vmul.f32 %v2120, %v2137
        %v2143 = vmul.f32 %v2121, %v2137
        %v2144 = vmul.f32 %v2122, %v2137
        %v2145 = vmul.f32 %v2123, %v2137
        %v2146 = vmul.f32 %v2124, %v2137
        %v2147 = vmul.f32 %v2125, %v2137
        %v2148 = vmul.f32 %v2126, %v2137
        %v2149 = vmul.f32 %v2127, %v2137
        %v2150 = vmul.f32 %v2128, %v2137
        %v2151 = vmul.f32 %v2129, %v2137
        %v2152 = vmul.f32 %v2130, %v2137
        %v2153 = vmul.f32 %v2131, %v2137
        %v2154 = vmul.f32 %v2132, %v2137
        %v2156 = vlaneseq
        %v2157 = vshrl.u32 %v2156, 7
        %v2158 = vsub.s32 0, %v2157
        %v2159 = vrot.slane %v1956, %v2158
        %v2161 = vadd.f32 %v2139, %v2159
        %v2162 = vadd.f32 %v2140, %v2159
        %v2163 = vadd.f32 %v2141, %v2159
        %v2164 = vadd.f32 %v2142, %v2159
        %v2165 = vadd.f32 %v2143, %v2159
        %v2166 = vadd.f32 %v2144, %v2159
        %v2167 = vadd.f32 %v2145, %v2159
        %v2168 = vadd.f32 %v2146, %v2159
        %v2169 = vadd.f32 %v2147, %v2159
        %v2170 = vadd.f32 %v2148, %v2159
        %v2171 = vadd.f32 %v2149, %v2159
        %v2172 = vadd.f32 %v2150, %v2159
        %v2173 = vadd.f32 %v2151, %v2159
        %v2174 = vadd.f32 %v2152, %v2159
        %v2175 = vadd.f32 %v2153, %v2159
        %v2176 = vadd.f32 %v2154, %v2159
        %2177 = vst [vmem:[%s419] sm:$0xff] %v2161
        %2178 = vst [vmem:[%s419 + $0x8] sm:$0xff] %v2162
        %2179 = vst [vmem:[%s419 + $0x10] sm:$0xff] %v2163
        %2180 = vst [vmem:[%s419 + $0x18] sm:$0xff] %v2164
        %2181 = vst [vmem:[%s419 + $0x20] sm:$0xff] %v2165
        %2182 = vst [vmem:[%s419 + $0x28] sm:$0xff] %v2166
        %2183 = vst [vmem:[%s419 + $0x30] sm:$0xff] %v2167
        %2184 = vst [vmem:[%s419 + $0x38] sm:$0xff] %v2168
        %2185 = vst [vmem:[%s419 + $0x40] sm:$0xff] %v2169
        %2186 = vst [vmem:[%s419 + $0x48] sm:$0xff] %v2170
        %2187 = vst [vmem:[%s419 + $0x50] sm:$0xff] %v2171
        %2188 = vst [vmem:[%s419 + $0x58] sm:$0xff] %v2172
        %2189 = vst [vmem:[%s419 + $0x60] sm:$0xff] %v2173
        %2190 = vst [vmem:[%s419 + $0x68] sm:$0xff] %v2174
        %2191 = vst [vmem:[%s419 + $0x70] sm:$0xff] %v2175
        %2192 = vst [vmem:[%s419 + $0x78] sm:$0xff] %v2176
        %s2193 = sand.u32 %s273, 1
        %s2194 = scalar_lea.sflag [#allocation4], %s2193
        %s2195 = sand.u32 %s273, 1
        %s2196 = smul.addr %s2195, 128
        %s2197 = scalar_lea.vmem [#allocation7], %s2196
        // Predicated region
        $region73: #{tpu_custom_call.1} parent=63 // pred_check
          %p2198 = pneg %p283
        $region74: #{tpu_custom_call.1} parent=63 // pred_check_branch
          %2200 = sbr.rel (%p2198) target = $region76
        $region75: #{tpu_custom_call.1} parent=63 // pred_region
          %s2201 = smul.u32 16, %s29
          %s2203 = ssub.s32 2048, 2048
          %2204 = vsyncadd %s2194, %s2203
          %s2205 = smul.addr %s2201, 128
          %s2206 = scalar_lea.hbm %s11, %s2205
          %s2207 = sshll.u32 %s2197, 4
          %s2208 = int_to_ptr.vmem [resolvable:$true] %s2207
          %2213 = dma.vmem_to_hbm [thread:$0]  %s2208, 2048, %s2206, %s2194, 128, 128, 8
        $region76: #{tpu_custom_call.1} parent=63 // pred_fallthru
          _
      $region64: #{tpu_custom_call.1} parent=5 // pred_fallthru
        _
      %p2214 = scmp.le.s32.totalorder 2, %s24
      // Predicated region
      $region77: #{tpu_custom_call.1} parent=5 // pred_check
        %p2215 = pneg %p2214
      $region78: #{tpu_custom_call.1} parent=5 // pred_check_branch
        %2217 = sbr.rel (%p2215) target = $region80
      $region79: #{tpu_custom_call.1} parent=5 // pred_region
        %s2218 = ssub.s32 %s24, 2
        // Predicated region
        $region81: #{tpu_custom_call.1} parent=79 // pred_check
          %p2219 = pneg %p289
        $region82: #{tpu_custom_call.1} parent=79 // pred_check_branch
          %2221 = sbr.rel (%p2219) target = $region84
        $region83: #{tpu_custom_call.1} parent=79 // pred_region
          %s2222 = sand.u32 %s274, 1
          %s2223 = scalar_lea.sflag [#allocation4], %s2222
          %s2224 = sand.u32 %s274, 1
          %s2225 = smul.addr %s2224, 128
          %s2226 = scalar_lea.vmem [#allocation7], %s2225
          %2227 = dma.done %s2223, 2048
        $region84: #{tpu_custom_call.1} parent=79 // pred_fallthru
          _
      $region80: #{tpu_custom_call.1} parent=5 // pred_fallthru
        _
    $region6: #{tpu_custom_call.1} parent=1 // loop_footer
      %s28 = sadd.s32 1, %s24
    $region7: #{tpu_custom_call.1} parent=1 // loop_footer_branch
      %23 = sbr.rel target = $region3
    $region8: #{tpu_custom_call.1} parent=1 // loop_exit
      _
    %2228 = vsyncpa [#allocation3], 1
    %s2229 = scalar_lea.sflag [#allocation3], 1
    %2230 = vsyncpa %s2229, 1
    %2231 = vsyncpa [#allocation6], 1
    %2232 = vsyncpa [#allocation4], 1
    %s2233 = scalar_lea.sflag [#allocation4], 1
    %2234 = vsyncpa %s2233, 1

</llo_original>
